<compile_context>
chip_gen: v7x
topology: tpu7x:2x2x1
jax: 0.10.0
libtpu: 0.0.40
codegen_flags: <defaults>
</compile_context>

<pallas_src>
import functools

import jax
import jax.numpy as jnp
from jax.experimental import pallas as pl
from jax.experimental.pallas import tpu as pltpu


def _lstm_decoder_kernel(feats_ref, w_ih_ref, w_hh_ref, b_lstm_ref,
                         w_hc_h_ref, w_hc_c_ref, aff_ref,
                         vocab_t_ref, vocab_bias_ref,
                         out_ref, *, dim_feat, max_seq_len):
    D = dim_feat

    feats = feats_ref[...]            # (B, D)   pooled graph features
    w_ih = w_ih_ref[...]              # (D, 4D)  LSTMCell input weights (transposed, i|f|g|o)
    w_hh = w_hh_ref[...]              # (D, 4D)  LSTMCell hidden weights (transposed)
    b_lstm = b_lstm_ref[...]          # (1, 4D)  b_ih + b_hh
    w_hc_h = w_hc_h_ref[...]          # (D, D)   w_hc half acting on h
    w_hc_c = w_hc_c_ref[...]          # (D, D)   w_hc half acting on context
    b_hc = aff_ref[0:1, :]            # (1, D)
    gamma = aff_ref[1:2, :]           # (1, D)   LayerNorm weight
    beta = aff_ref[2:3, :]            # (1, D)   LayerNorm bias
    vocab_t = vocab_t_ref[...]        # (D, V)   Embedding.weight^T
    vocab_bias = vocab_bias_ref[...]  # (1, V)

    # Attention over a length-1 encoder "sequence": softmax of a single score is 1,
    # so context == feats every step.  The context half of the w_hc Linear (and its
    # bias) is therefore loop-invariant -> hoist it out of the recurrence.
    ctx_term = (jnp.dot(feats, w_hc_c, preferred_element_type=jnp.float32)
                + b_hc)                                      # (B, D)

    # h_0 = c_0 = feats ; pred_emb_0 = embedding of token 0 (padding_idx=0 -> zeros)
    h = feats
    c = feats
    pred_emb = jnp.zeros_like(feats)

    preds = []
    # Static unroll of the recurrence (max_seq_len is small and fixed).
    for t in range(max_seq_len):
        # --- LSTMCell: fused (B,D)x(D,4D) matmuls, gate order i|f|g|o ---
        gates = jnp.dot(h, w_hh, preferred_element_type=jnp.float32) + b_lstm
        if t > 0:  # pred_emb_0 == 0, its matmul contributes nothing
            gates = gates + jnp.dot(pred_emb, w_ih,
                                    preferred_element_type=jnp.float32)
        i_g = jax.nn.sigmoid(gates[:, 0 * D:1 * D])
        f_g = jax.nn.sigmoid(gates[:, 1 * D:2 * D])
        g_g = jnp.tanh(gates[:, 2 * D:3 * D])
        o_g = jax.nn.sigmoid(gates[:, 3 * D:4 * D])
        c = f_g * c + i_g * g_g
        h = o_g * jnp.tanh(c)

        # --- w_hc(hstack(h, context)) without materializing the lane-concat ---
        z = (jnp.dot(h, w_hc_h, preferred_element_type=jnp.float32)
             + ctx_term)                                     # (B, D)

        # --- LayerNorm (eps=1e-5, biased variance, affine) + tanh ---
        mu = jnp.mean(z, axis=-1, keepdims=True)
        zc = z - mu
        var = jnp.mean(zc * zc, axis=-1, keepdims=True)
        pred_emb = jnp.tanh(zc * jax.lax.rsqrt(var + 1e-5) * gamma + beta)
        preds.append(pred_emb)

    # --- vocab logits for all steps in one lane-dense (T*B,D)x(D,V) matmul ---
    pred_all = jnp.concatenate(preds, axis=0)                # (T*B, D), sublane-aligned
    logits = (jnp.dot(pred_all, vocab_t, preferred_element_type=jnp.float32)
              + vocab_bias)                                  # (T*B, V)
    out_ref[...] = logits                                    # one full unmasked store


def lstm_decoder_forward(feats, params, *, dim_feat, max_seq_len, vocab_size):
    """feats: (B, dim_feat). Returns logits of shape (max_seq_len, B, vocab_size)."""
    batch = feats.shape[0]
    n_inputs = 1 + len(params)
    kernel = functools.partial(_lstm_decoder_kernel,
                               dim_feat=dim_feat, max_seq_len=max_seq_len)
    flat = pl.pallas_call(
        kernel,
        out_shape=jax.ShapeDtypeStruct((max_seq_len * batch, vocab_size), jnp.float32),
        in_specs=[pl.BlockSpec(memory_space=pltpu.MemorySpace.VMEM)] * n_inputs,
        out_specs=pl.BlockSpec(memory_space=pltpu.MemorySpace.VMEM),
    )(feats, *params)
    # Wrapper-side reshape: layout plumbing only (row-major split of the T*B axis).
    return flat.reshape(max_seq_len, batch, vocab_size)


def _reference(feats, w_ih, w_hh, b_lstm, w_hc_h, w_hc_c, b_hc, gamma, beta,
               vocab_t, vocab_bias, max_seq_len):
    """Pure-JAX reference mirroring the PyTorch forward (for correctness check)."""
    D = feats.shape[1]
    h, c = feats, feats
    pred_emb = jnp.zeros_like(feats)
    outs = []
    for _ in range(max_seq_len):
        gates = pred_emb @ w_ih + h @ w_hh + b_lstm
        i_g = jax.nn.sigmoid(gates[:, 0 * D:1 * D])
        f_g = jax.nn.sigmoid(gates[:, 1 * D:2 * D])
        g_g = jnp.tanh(gates[:, 2 * D:3 * D])
        o_g = jax.nn.sigmoid(gates[:, 3 * D:4 * D])
        c = f_g * c + i_g * g_g
        h = o_g * jnp.tanh(c)
        # attention over the length-1 feature sequence (softmax of one score == 1)
        a = jax.nn.softmax(jnp.sum(feats * h, axis=-1, keepdims=True), axis=1)
        context = a * feats
        z = h @ w_hc_h + context @ w_hc_c + b_hc
        mu = z.mean(-1, keepdims=True)
        var = ((z - mu) ** 2).mean(-1, keepdims=True)
        pred_emb = jnp.tanh(((z - mu) / jnp.sqrt(var + 1e-5)) * gamma + beta)
        outs.append(pred_emb @ vocab_t + vocab_bias)
    return jnp.stack(outs, axis=0)


if __name__ == "__main__":
    B = 8      # batch of graphs (one full sublane group)
    D = 128    # dim_feat (one full lane width -> lane-dense matmuls/gates)
    V = 256    # vocab size (2 full lane tiles)
    T = 8      # max_seq_len

    key = jax.random.PRNGKey(0)
    ks = jax.random.split(key, 9)

    # Pooled per-graph features coming from the graph encoder.
    feats = jax.random.normal(ks[0], (B, D), dtype=jnp.float32)

    # nn.LSTMCell(D, D): uniform(+-1/sqrt(D)); weights stored transposed (D, 4D),
    # gate order i|f|g|o along lanes; biases pre-summed (b_ih + b_hh).
    k_lstm = 1.0 / D ** 0.5
    w_ih = jax.random.uniform(ks[1], (D, 4 * D), minval=-k_lstm, maxval=k_lstm, dtype=jnp.float32)
    w_hh = jax.random.uniform(ks[2], (D, 4 * D), minval=-k_lstm, maxval=k_lstm, dtype=jnp.float32)
    b_ih = jax.random.uniform(ks[3], (1, 4 * D), minval=-k_lstm, maxval=k_lstm, dtype=jnp.float32)
    b_hh = jax.random.uniform(ks[4], (1, 4 * D), minval=-k_lstm, maxval=k_lstm, dtype=jnp.float32)
    b_lstm = b_ih + b_hh

    # nn.Linear(2D, D) = w_hc: uniform(+-1/sqrt(2D)); split into the halves that
    # multiply h and context respectively (avoids the hstack concat in-kernel).
    k_hc = 1.0 / (2 * D) ** 0.5
    w_hc_h = jax.random.uniform(ks[5], (D, D), minval=-k_hc, maxval=k_hc, dtype=jnp.float32)
    w_hc_c = jax.random.uniform(ks[6], (D, D), minval=-k_hc, maxval=k_hc, dtype=jnp.float32)
    b_hc = jax.random.uniform(ks[7], (1, D), minval=-k_hc, maxval=k_hc, dtype=jnp.float32)

    # nn.LayerNorm(D): gamma=1, beta=0.  Packed with b_hc into one (3, D) array.
    gamma = jnp.ones((1, D), dtype=jnp.float32)
    beta = jnp.zeros((1, D), dtype=jnp.float32)
    aff = jnp.concatenate([b_hc, gamma, beta], axis=0)       # (3, D)

    # nn.Embedding(V, D, padding_idx=0): N(0,1) with row 0 zeroed.
    vocab = jax.random.normal(ks[8], (V, D), dtype=jnp.float32)
    vocab = vocab.at[0].set(0.0)
    vocab_t = vocab.T                                        # (D, V)
    vocab_bias = jnp.zeros((1, V), dtype=jnp.float32)        # nn.Parameter(zeros(V))

    params = (w_ih, w_hh, b_lstm, w_hc_h, w_hc_c, aff, vocab_t, vocab_bias)

    out = lstm_decoder_forward(feats, params, dim_feat=D, max_seq_len=T, vocab_size=V)
    out = jax.block_until_ready(out)

    assert out.shape == (T, B, V)
    assert bool(jnp.all(jnp.isfinite(out)))

    ref = _reference(feats, w_ih, w_hh, b_lstm, w_hc_h, w_hc_c, b_hc, gamma, beta,
                     vocab_t, vocab_bias, T)
    max_err = float(jnp.max(jnp.abs(out - ref)))
    assert max_err < 5e-2, f"kernel mismatch vs reference: max abs err {max_err}"

    print("KERNEL_OK")
</pallas_src>

<mosaic_0001>
module attributes {stable_mosaic.version = 11 : i64} {
  func.func @_lstm_decoder_kernel(%arg0: memref<8x128xf32, #tpu.memory_space<vmem>>, %arg1: memref<128x512xf32, #tpu.memory_space<vmem>>, %arg2: memref<128x512xf32, #tpu.memory_space<vmem>>, %arg3: memref<1x512xf32, #tpu.memory_space<vmem>>, %arg4: memref<128x128xf32, #tpu.memory_space<vmem>>, %arg5: memref<128x128xf32, #tpu.memory_space<vmem>>, %arg6: memref<3x128xf32, #tpu.memory_space<vmem>>, %arg7: memref<128x256xf32, #tpu.memory_space<vmem>>, %arg8: memref<1x256xf32, #tpu.memory_space<vmem>>, %arg9: memref<64x256xf32, #tpu.memory_space<vmem>>) attributes {dimension_semantics = [], scalar_prefetch = 0 : i64, scratch_operands = 0 : i64, tpu.core_type = #tpu.core_type<tc>} {
    %c0 = arith.constant 0 : index
    %c0_0 = arith.constant 0 : index
    %0 = vector.load %arg0[%c0, %c0_0] : memref<8x128xf32, #tpu.memory_space<vmem>>, vector<8x128xf32>
    %c0_1 = arith.constant 0 : index
    %c0_2 = arith.constant 0 : index
    %1 = vector.load %arg1[%c0_1, %c0_2] : memref<128x512xf32, #tpu.memory_space<vmem>>, vector<128x512xf32>
    %c0_3 = arith.constant 0 : index
    %c0_4 = arith.constant 0 : index
    %2 = vector.load %arg2[%c0_3, %c0_4] : memref<128x512xf32, #tpu.memory_space<vmem>>, vector<128x512xf32>
    %c0_5 = arith.constant 0 : index
    %c0_6 = arith.constant 0 : index
    %3 = vector.load %arg3[%c0_5, %c0_6] : memref<1x512xf32, #tpu.memory_space<vmem>>, vector<1x512xf32>
    %c0_7 = arith.constant 0 : index
    %c0_8 = arith.constant 0 : index
    %4 = vector.load %arg4[%c0_7, %c0_8] : memref<128x128xf32, #tpu.memory_space<vmem>>, vector<128x128xf32>
    %c0_9 = arith.constant 0 : index
    %c0_10 = arith.constant 0 : index
    %5 = vector.load %arg5[%c0_9, %c0_10] : memref<128x128xf32, #tpu.memory_space<vmem>>, vector<128x128xf32>
    %c0_11 = arith.constant 0 : index
    %c0_12 = arith.constant 0 : index
    %6 = vector.load %arg6[%c0_11, %c0_12] : memref<3x128xf32, #tpu.memory_space<vmem>>, vector<1x128xf32>
    %c1 = arith.constant 1 : index
    %c0_13 = arith.constant 0 : index
    %7 = vector.load %arg6[%c1, %c0_13] : memref<3x128xf32, #tpu.memory_space<vmem>>, vector<1x128xf32>
    %c2 = arith.constant 2 : index
    %c0_14 = arith.constant 0 : index
    %8 = vector.load %arg6[%c2, %c0_14] : memref<3x128xf32, #tpu.memory_space<vmem>>, vector<1x128xf32>
    %c0_15 = arith.constant 0 : index
    %c0_16 = arith.constant 0 : index
    %9 = vector.load %arg7[%c0_15, %c0_16] : memref<128x256xf32, #tpu.memory_space<vmem>>, vector<128x256xf32>
    %c0_17 = arith.constant 0 : index
    %c0_18 = arith.constant 0 : index
    %10 = vector.load %arg8[%c0_17, %c0_18] : memref<1x256xf32, #tpu.memory_space<vmem>>, vector<1x256xf32>
    %cst = arith.constant dense<0.000000e+00> : vector<8x128xf32>
    %11 = tpu.matmul %0, %5, %cst {dimension_numbers = #tpu.dot_dimension_numbers<[1], [0], [0], [1], [0, 0, 1, 1], [], []>} : vector<8x128xf32>, vector<128x128xf32>, vector<8x128xf32> -> vector<8x128xf32>
    %12 = vector.broadcast %6 : vector<1x128xf32> to vector<8x128xf32>
    %13 = arith.addf %11, %12 : vector<8x128xf32>
    %cst_19 = arith.constant dense<0.000000e+00> : vector<8x512xf32>
    %14 = tpu.matmul %0, %2, %cst_19 {dimension_numbers = #tpu.dot_dimension_numbers<[1], [0], [0], [1], [0, 0, 1, 1], [], []>} : vector<8x128xf32>, vector<128x512xf32>, vector<8x512xf32> -> vector<8x512xf32>
    %15 = vector.broadcast %3 : vector<1x512xf32> to vector<8x512xf32>
    %16 = arith.addf %14, %15 : vector<8x512xf32>
    %17 = vector.extract_strided_slice %16 {offsets = [0, 0], sizes = [8, 128], strides = [1, 1]} : vector<8x512xf32> to vector<8x128xf32>
    %18 = arith.negf %17 : vector<8x128xf32>
    %19 = math.exp %18 : vector<8x128xf32>
    %cst_20 = arith.constant 1.000000e+00 : f32
    %20 = vector.broadcast %cst_20 : f32 to vector<8x128xf32>
    %21 = arith.addf %20, %19 : vector<8x128xf32>
    %22 = arith.divf %20, %21 : vector<8x128xf32>
    %23 = vector.extract_strided_slice %16 {offsets = [0, 128], sizes = [8, 128], strides = [1, 1]} : vector<8x512xf32> to vector<8x128xf32>
    %24 = arith.negf %23 : vector<8x128xf32>
    %25 = math.exp %24 : vector<8x128xf32>
    %cst_21 = arith.constant 1.000000e+00 : f32
    %26 = vector.broadcast %cst_21 : f32 to vector<8x128xf32>
    %27 = arith.addf %26, %25 : vector<8x128xf32>
    %28 = arith.divf %26, %27 : vector<8x128xf32>
    %29 = vector.extract_strided_slice %16 {offsets = [0, 256], sizes = [8, 128], strides = [1, 1]} : vector<8x512xf32> to vector<8x128xf32>
    %30 = math.tanh %29 : vector<8x128xf32>
    %31 = vector.extract_strided_slice %16 {offsets = [0, 384], sizes = [8, 128], strides = [1, 1]} : vector<8x512xf32> to vector<8x128xf32>
    %32 = arith.negf %31 : vector<8x128xf32>
    %33 = math.exp %32 : vector<8x128xf32>
    %cst_22 = arith.constant 1.000000e+00 : f32
    %34 = vector.broadcast %cst_22 : f32 to vector<8x128xf32>
    %35 = arith.addf %34, %33 : vector<8x128xf32>
    %36 = arith.divf %34, %35 : vector<8x128xf32>
    %37 = arith.mulf %28, %0 : vector<8x128xf32>
    %38 = arith.mulf %22, %30 : vector<8x128xf32>
    %39 = arith.addf %37, %38 : vector<8x128xf32>
    %40 = math.tanh %39 : vector<8x128xf32>
    %41 = arith.mulf %36, %40 : vector<8x128xf32>
    %cst_23 = arith.constant dense<0.000000e+00> : vector<8x128xf32>
    %42 = tpu.matmul %41, %4, %cst_23 {dimension_numbers = #tpu.dot_dimension_numbers<[1], [0], [0], [1], [0, 0, 1, 1], [], []>} : vector<8x128xf32>, vector<128x128xf32>, vector<8x128xf32> -> vector<8x128xf32>
    %43 = arith.addf %42, %13 : vector<8x128xf32>
    %cst_24 = arith.constant dense<0.000000e+00> : vector<8xf32>
    %44 = vector.multi_reduction <add>, %43, %cst_24 [1] : vector<8x128xf32> to vector<8xf32>
    %45 = vector.shape_cast %44 : vector<8xf32> to vector<8x1xf32>
    %cst_25 = arith.constant 1.280000e+02 : f32
    %46 = vector.broadcast %cst_25 : f32 to vector<8x1xf32>
    %47 = arith.divf %45, %46 : vector<8x1xf32>
    %48 = vector.broadcast %47 : vector<8x1xf32> to vector<8x128xf32>
    %49 = arith.subf %43, %48 : vector<8x128xf32>
    %50 = arith.mulf %49, %49 : vector<8x128xf32>
    %cst_26 = arith.constant dense<0.000000e+00> : vector<8xf32>
    %51 = vector.multi_reduction <add>, %50, %cst_26 [1] : vector<8x128xf32> to vector<8xf32>
    %52 = vector.shape_cast %51 : vector<8xf32> to vector<8x1xf32>
    %cst_27 = arith.constant 1.280000e+02 : f32
    %53 = vector.broadcast %cst_27 : f32 to vector<8x1xf32>
    %54 = arith.divf %52, %53 : vector<8x1xf32>
    %cst_28 = arith.constant 9.99999974E-6 : f32
    %55 = vector.broadcast %cst_28 : f32 to vector<8x1xf32>
    %56 = arith.addf %54, %55 : vector<8x1xf32>
    %57 = math.rsqrt %56 : vector<8x1xf32>
    %58 = vector.broadcast %57 : vector<8x1xf32> to vector<8x128xf32>
    %59 = arith.mulf %49, %58 : vector<8x128xf32>
    %60 = vector.broadcast %7 : vector<1x128xf32> to vector<8x128xf32>
    %61 = arith.mulf %59, %60 : vector<8x128xf32>
    %62 = vector.broadcast %8 : vector<1x128xf32> to vector<8x128xf32>
    %63 = arith.addf %61, %62 : vector<8x128xf32>
    %64 = math.tanh %63 : vector<8x128xf32>
    %cst_29 = arith.constant dense<0.000000e+00> : vector<8x512xf32>
    %65 = tpu.matmul %41, %2, %cst_29 {dimension_numbers = #tpu.dot_dimension_numbers<[1], [0], [0], [1], [0, 0, 1, 1], [], []>} : vector<8x128xf32>, vector<128x512xf32>, vector<8x512xf32> -> vector<8x512xf32>
    %66 = vector.broadcast %3 : vector<1x512xf32> to vector<8x512xf32>
    %67 = arith.addf %65, %66 : vector<8x512xf32>
    %cst_30 = arith.constant dense<0.000000e+00> : vector<8x512xf32>
    %68 = tpu.matmul %64, %1, %cst_30 {dimension_numbers = #tpu.dot_dimension_numbers<[1], [0], [0], [1], [0, 0, 1, 1], [], []>} : vector<8x128xf32>, vector<128x512xf32>, vector<8x512xf32> -> vector<8x512xf32>
    %69 = arith.addf %67, %68 : vector<8x512xf32>
    %70 = vector.extract_strided_slice %69 {offsets = [0, 0], sizes = [8, 128], strides = [1, 1]} : vector<8x512xf32> to vector<8x128xf32>
    %71 = arith.negf %70 : vector<8x128xf32>
    %72 = math.exp %71 : vector<8x128xf32>
    %cst_31 = arith.constant 1.000000e+00 : f32
    %73 = vector.broadcast %cst_31 : f32 to vector<8x128xf32>
    %74 = arith.addf %73, %72 : vector<8x128xf32>
    %75 = arith.divf %73, %74 : vector<8x128xf32>
    %76 = vector.extract_strided_slice %69 {offsets = [0, 128], sizes = [8, 128], strides = [1, 1]} : vector<8x512xf32> to vector<8x128xf32>
    %77 = arith.negf %76 : vector<8x128xf32>
    %78 = math.exp %77 : vector<8x128xf32>
    %cst_32 = arith.constant 1.000000e+00 : f32
    %79 = vector.broadcast %cst_32 : f32 to vector<8x128xf32>
    %80 = arith.addf %79, %78 : vector<8x128xf32>
    %81 = arith.divf %79, %80 : vector<8x128xf32>
    %82 = vector.extract_strided_slice %69 {offsets = [0, 256], sizes = [8, 128], strides = [1, 1]} : vector<8x512xf32> to vector<8x128xf32>
    %83 = math.tanh %82 : vector<8x128xf32>
    %84 = vector.extract_strided_slice %69 {offsets = [0, 384], sizes = [8, 128], strides = [1, 1]} : vector<8x512xf32> to vector<8x128xf32>
    %85 = arith.negf %84 : vector<8x128xf32>
    %86 = math.exp %85 : vector<8x128xf32>
    %cst_33 = arith.constant 1.000000e+00 : f32
    %87 = vector.broadcast %cst_33 : f32 to vector<8x128xf32>
    %88 = arith.addf %87, %86 : vector<8x128xf32>
    %89 = arith.divf %87, %88 : vector<8x128xf32>
    %90 = arith.mulf %81, %39 : vector<8x128xf32>
    %91 = arith.mulf %75, %83 : vector<8x128xf32>
    %92 = arith.addf %90, %91 : vector<8x128xf32>
    %93 = math.tanh %92 : vector<8x128xf32>
    %94 = arith.mulf %89, %93 : vector<8x128xf32>
    %cst_34 = arith.constant dense<0.000000e+00> : vector<8x128xf32>
    %95 = tpu.matmul %94, %4, %cst_34 {dimension_numbers = #tpu.dot_dimension_numbers<[1], [0], [0], [1], [0, 0, 1, 1], [], []>} : vector<8x128xf32>, vector<128x128xf32>, vector<8x128xf32> -> vector<8x128xf32>
    %96 = arith.addf %95, %13 : vector<8x128xf32>
    %cst_35 = arith.constant dense<0.000000e+00> : vector<8xf32>
    %97 = vector.multi_reduction <add>, %96, %cst_35 [1] : vector<8x128xf32> to vector<8xf32>
    %98 = vector.shape_cast %97 : vector<8xf32> to vector<8x1xf32>
    %cst_36 = arith.constant 1.280000e+02 : f32
    %99 = vector.broadcast %cst_36 : f32 to vector<8x1xf32>
    %100 = arith.divf %98, %99 : vector<8x1xf32>
    %101 = vector.broadcast %100 : vector<8x1xf32> to vector<8x128xf32>
    %102 = arith.subf %96, %101 : vector<8x128xf32>
    %103 = arith.mulf %102, %102 : vector<8x128xf32>
    %cst_37 = arith.constant dense<0.000000e+00> : vector<8xf32>
    %104 = vector.multi_reduction <add>, %103, %cst_37 [1] : vector<8x128xf32> to vector<8xf32>
    %105 = vector.shape_cast %104 : vector<8xf32> to vector<8x1xf32>
    %cst_38 = arith.constant 1.280000e+02 : f32
    %106 = vector.broadcast %cst_38 : f32 to vector<8x1xf32>
    %107 = arith.divf %105, %106 : vector<8x1xf32>
    %cst_39 = arith.constant 9.99999974E-6 : f32
    %108 = vector.broadcast %cst_39 : f32 to vector<8x1xf32>
    %109 = arith.addf %107, %108 : vector<8x1xf32>
    %110 = math.rsqrt %109 : vector<8x1xf32>
    %111 = vector.broadcast %110 : vector<8x1xf32> to vector<8x128xf32>
    %112 = arith.mulf %102, %111 : vector<8x128xf32>
    %113 = vector.broadcast %7 : vector<1x128xf32> to vector<8x128xf32>
    %114 = arith.mulf %112, %113 : vector<8x128xf32>
    %115 = vector.broadcast %8 : vector<1x128xf32> to vector<8x128xf32>
    %116 = arith.addf %114, %115 : vector<8x128xf32>
    %117 = math.tanh %116 : vector<8x128xf32>
    %cst_40 = arith.constant dense<0.000000e+00> : vector<8x512xf32>
    %118 = tpu.matmul %94, %2, %cst_40 {dimension_numbers = #tpu.dot_dimension_numbers<[1], [0], [0], [1], [0, 0, 1, 1], [], []>} : vector<8x128xf32>, vector<128x512xf32>, vector<8x512xf32> -> vector<8x512xf32>
    %119 = vector.broadcast %3 : vector<1x512xf32> to vector<8x512xf32>
    %120 = arith.addf %118, %119 : vector<8x512xf32>
    %cst_41 = arith.constant dense<0.000000e+00> : vector<8x512xf32>
    %121 = tpu.matmul %117, %1, %cst_41 {dimension_numbers = #tpu.dot_dimension_numbers<[1], [0], [0], [1], [0, 0, 1, 1], [], []>} : vector<8x128xf32>, vector<128x512xf32>, vector<8x512xf32> -> vector<8x512xf32>
    %122 = arith.addf %120, %121 : vector<8x512xf32>
    %123 = vector.extract_strided_slice %122 {offsets = [0, 0], sizes = [8, 128], strides = [1, 1]} : vector<8x512xf32> to vector<8x128xf32>
    %124 = arith.negf %123 : vector<8x128xf32>
    %125 = math.exp %124 : vector<8x128xf32>
    %cst_42 = arith.constant 1.000000e+00 : f32
    %126 = vector.broadcast %cst_42 : f32 to vector<8x128xf32>
    %127 = arith.addf %126, %125 : vector<8x128xf32>
    %128 = arith.divf %126, %127 : vector<8x128xf32>
    %129 = vector.extract_strided_slice %122 {offsets = [0, 128], sizes = [8, 128], strides = [1, 1]} : vector<8x512xf32> to vector<8x128xf32>
    %130 = arith.negf %129 : vector<8x128xf32>
    %131 = math.exp %130 : vector<8x128xf32>
    %cst_43 = arith.constant 1.000000e+00 : f32
    %132 = vector.broadcast %cst_43 : f32 to vector<8x128xf32>
    %133 = arith.addf %132, %131 : vector<8x128xf32>
    %134 = arith.divf %132, %133 : vector<8x128xf32>
    %135 = vector.extract_strided_slice %122 {offsets = [0, 256], sizes = [8, 128], strides = [1, 1]} : vector<8x512xf32> to vector<8x128xf32>
    %136 = math.tanh %135 : vector<8x128xf32>
    %137 = vector.extract_strided_slice %122 {offsets = [0, 384], sizes = [8, 128], strides = [1, 1]} : vector<8x512xf32> to vector<8x128xf32>
    %138 = arith.negf %137 : vector<8x128xf32>
    %139 = math.exp %138 : vector<8x128xf32>
    %cst_44 = arith.constant 1.000000e+00 : f32
    %140 = vector.broadcast %cst_44 : f32 to vector<8x128xf32>
    %141 = arith.addf %140, %139 : vector<8x128xf32>
    %142 = arith.divf %140, %141 : vector<8x128xf32>
    %143 = arith.mulf %134, %92 : vector<8x128xf32>
    %144 = arith.mulf %128, %136 : vector<8x128xf32>
    %145 = arith.addf %143, %144 : vector<8x128xf32>
    %146 = math.tanh %145 : vector<8x128xf32>
    %147 = arith.mulf %142, %146 : vector<8x128xf32>
    %cst_45 = arith.constant dense<0.000000e+00> : vector<8x128xf32>
    %148 = tpu.matmul %147, %4, %cst_45 {dimension_numbers = #tpu.dot_dimension_numbers<[1], [0], [0], [1], [0, 0, 1, 1], [], []>} : vector<8x128xf32>, vector<128x128xf32>, vector<8x128xf32> -> vector<8x128xf32>
    %149 = arith.addf %148, %13 : vector<8x128xf32>
    %cst_46 = arith.constant dense<0.000000e+00> : vector<8xf32>
    %150 = vector.multi_reduction <add>, %149, %cst_46 [1] : vector<8x128xf32> to vector<8xf32>
    %151 = vector.shape_cast %150 : vector<8xf32> to vector<8x1xf32>
    %cst_47 = arith.constant 1.280000e+02 : f32
    %152 = vector.broadcast %cst_47 : f32 to vector<8x1xf32>
    %153 = arith.divf %151, %152 : vector<8x1xf32>
    %154 = vector.broadcast %153 : vector<8x1xf32> to vector<8x128xf32>
    %155 = arith.subf %149, %154 : vector<8x128xf32>
    %156 = arith.mulf %155, %155 : vector<8x128xf32>
    %cst_48 = arith.constant dense<0.000000e+00> : vector<8xf32>
    %157 = vector.multi_reduction <add>, %156, %cst_48 [1] : vector<8x128xf32> to vector<8xf32>
    %158 = vector.shape_cast %157 : vector<8xf32> to vector<8x1xf32>
    %cst_49 = arith.constant 1.280000e+02 : f32
    %159 = vector.broadcast %cst_49 : f32 to vector<8x1xf32>
    %160 = arith.divf %158, %159 : vector<8x1xf32>
    %cst_50 = arith.constant 9.99999974E-6 : f32
    %161 = vector.broadcast %cst_50 : f32 to vector<8x1xf32>
    %162 = arith.addf %160, %161 : vector<8x1xf32>
    %163 = math.rsqrt %162 : vector<8x1xf32>
    %164 = vector.broadcast %163 : vector<8x1xf32> to vector<8x128xf32>
    %165 = arith.mulf %155, %164 : vector<8x128xf32>
    %166 = vector.broadcast %7 : vector<1x128xf32> to vector<8x128xf32>
    %167 = arith.mulf %165, %166 : vector<8x128xf32>
    %168 = vector.broadcast %8 : vector<1x128xf32> to vector<8x128xf32>
    %169 = arith.addf %167, %168 : vector<8x128xf32>
    %170 = math.tanh %169 : vector<8x128xf32>
    %cst_51 = arith.constant dense<0.000000e+00> : vector<8x512xf32>
    %171 = tpu.matmul %147, %2, %cst_51 {dimension_numbers = #tpu.dot_dimension_numbers<[1], [0], [0], [1], [0, 0, 1, 1], [], []>} : vector<8x128xf32>, vector<128x512xf32>, vector<8x512xf32> -> vector<8x512xf32>
    %172 = vector.broadcast %3 : vector<1x512xf32> to vector<8x512xf32>
    %173 = arith.addf %171, %172 : vector<8x512xf32>
    %cst_52 = arith.constant dense<0.000000e+00> : vector<8x512xf32>
    %174 = tpu.matmul %170, %1, %cst_52 {dimension_numbers = #tpu.dot_dimension_numbers<[1], [0], [0], [1], [0, 0, 1, 1], [], []>} : vector<8x128xf32>, vector<128x512xf32>, vector<8x512xf32> -> vector<8x512xf32>
    %175 = arith.addf %173, %174 : vector<8x512xf32>
    %176 = vector.extract_strided_slice %175 {offsets = [0, 0], sizes = [8, 128], strides = [1, 1]} : vector<8x512xf32> to vector<8x128xf32>
    %177 = arith.negf %176 : vector<8x128xf32>
    %178 = math.exp %177 : vector<8x128xf32>
    %cst_53 = arith.constant 1.000000e+00 : f32
    %179 = vector.broadcast %cst_53 : f32 to vector<8x128xf32>
    %180 = arith.addf %179, %178 : vector<8x128xf32>
    %181 = arith.divf %179, %180 : vector<8x128xf32>
    %182 = vector.extract_strided_slice %175 {offsets = [0, 128], sizes = [8, 128], strides = [1, 1]} : vector<8x512xf32> to vector<8x128xf32>
    %183 = arith.negf %182 : vector<8x128xf32>
    %184 = math.exp %183 : vector<8x128xf32>
    %cst_54 = arith.constant 1.000000e+00 : f32
    %185 = vector.broadcast %cst_54 : f32 to vector<8x128xf32>
    %186 = arith.addf %185, %184 : vector<8x128xf32>
    %187 = arith.divf %185, %186 : vector<8x128xf32>
    %188 = vector.extract_strided_slice %175 {offsets = [0, 256], sizes = [8, 128], strides = [1, 1]} : vector<8x512xf32> to vector<8x128xf32>
    %189 = math.tanh %188 : vector<8x128xf32>
    %190 = vector.extract_strided_slice %175 {offsets = [0, 384], sizes = [8, 128], strides = [1, 1]} : vector<8x512xf32> to vector<8x128xf32>
    %191 = arith.negf %190 : vector<8x128xf32>
    %192 = math.exp %191 : vector<8x128xf32>
    %cst_55 = arith.constant 1.000000e+00 : f32
    %193 = vector.broadcast %cst_55 : f32 to vector<8x128xf32>
    %194 = arith.addf %193, %192 : vector<8x128xf32>
    %195 = arith.divf %193, %194 : vector<8x128xf32>
    %196 = arith.mulf %187, %145 : vector<8x128xf32>
    %197 = arith.mulf %181, %189 : vector<8x128xf32>
    %198 = arith.addf %196, %197 : vector<8x128xf32>
    %199 = math.tanh %198 : vector<8x128xf32>
    %200 = arith.mulf %195, %199 : vector<8x128xf32>
    %cst_56 = arith.constant dense<0.000000e+00> : vector<8x128xf32>
    %201 = tpu.matmul %200, %4, %cst_56 {dimension_numbers = #tpu.dot_dimension_numbers<[1], [0], [0], [1], [0, 0, 1, 1], [], []>} : vector<8x128xf32>, vector<128x128xf32>, vector<8x128xf32> -> vector<8x128xf32>
    %202 = arith.addf %201, %13 : vector<8x128xf32>
    %cst_57 = arith.constant dense<0.000000e+00> : vector<8xf32>
    %203 = vector.multi_reduction <add>, %202, %cst_57 [1] : vector<8x128xf32> to vector<8xf32>
    %204 = vector.shape_cast %203 : vector<8xf32> to vector<8x1xf32>
    %cst_58 = arith.constant 1.280000e+02 : f32
    %205 = vector.broadcast %cst_58 : f32 to vector<8x1xf32>
    %206 = arith.divf %204, %205 : vector<8x1xf32>
    %207 = vector.broadcast %206 : vector<8x1xf32> to vector<8x128xf32>
    %208 = arith.subf %202, %207 : vector<8x128xf32>
    %209 = arith.mulf %208, %208 : vector<8x128xf32>
    %cst_59 = arith.constant dense<0.000000e+00> : vector<8xf32>
    %210 = vector.multi_reduction <add>, %209, %cst_59 [1] : vector<8x128xf32> to vector<8xf32>
    %211 = vector.shape_cast %210 : vector<8xf32> to vector<8x1xf32>
    %cst_60 = arith.constant 1.280000e+02 : f32
    %212 = vector.broadcast %cst_60 : f32 to vector<8x1xf32>
    %213 = arith.divf %211, %212 : vector<8x1xf32>
    %cst_61 = arith.constant 9.99999974E-6 : f32
    %214 = vector.broadcast %cst_61 : f32 to vector<8x1xf32>
    %215 = arith.addf %213, %214 : vector<8x1xf32>
    %216 = math.rsqrt %215 : vector<8x1xf32>
    %217 = vector.broadcast %216 : vector<8x1xf32> to vector<8x128xf32>
    %218 = arith.mulf %208, %217 : vector<8x128xf32>
    %219 = vector.broadcast %7 : vector<1x128xf32> to vector<8x128xf32>
    %220 = arith.mulf %218, %219 : vector<8x128xf32>
    %221 = vector.broadcast %8 : vector<1x128xf32> to vector<8x128xf32>
    %222 = arith.addf %220, %221 : vector<8x128xf32>
    %223 = math.tanh %222 : vector<8x128xf32>
    %cst_62 = arith.constant dense<0.000000e+00> : vector<8x512xf32>
    %224 = tpu.matmul %200, %2, %cst_62 {dimension_numbers = #tpu.dot_dimension_numbers<[1], [0], [0], [1], [0, 0, 1, 1], [], []>} : vector<8x128xf32>, vector<128x512xf32>, vector<8x512xf32> -> vector<8x512xf32>
    %225 = vector.broadcast %3 : vector<1x512xf32> to vector<8x512xf32>
    %226 = arith.addf %224, %225 : vector<8x512xf32>
    %cst_63 = arith.constant dense<0.000000e+00> : vector<8x512xf32>
    %227 = tpu.matmul %223, %1, %cst_63 {dimension_numbers = #tpu.dot_dimension_numbers<[1], [0], [0], [1], [0, 0, 1, 1], [], []>} : vector<8x128xf32>, vector<128x512xf32>, vector<8x512xf32> -> vector<8x512xf32>
    %228 = arith.addf %226, %227 : vector<8x512xf32>
    %229 = vector.extract_strided_slice %228 {offsets = [0, 0], sizes = [8, 128], strides = [1, 1]} : vector<8x512xf32> to vector<8x128xf32>
    %230 = arith.negf %229 : vector<8x128xf32>
    %231 = math.exp %230 : vector<8x128xf32>
    %cst_64 = arith.constant 1.000000e+00 : f32
    %232 = vector.broadcast %cst_64 : f32 to vector<8x128xf32>
    %233 = arith.addf %232, %231 : vector<8x128xf32>
    %234 = arith.divf %232, %233 : vector<8x128xf32>
    %235 = vector.extract_strided_slice %228 {offsets = [0, 128], sizes = [8, 128], strides = [1, 1]} : vector<8x512xf32> to vector<8x128xf32>
    %236 = arith.negf %235 : vector<8x128xf32>
    %237 = math.exp %236 : vector<8x128xf32>
    %cst_65 = arith.constant 1.000000e+00 : f32
    %238 = vector.broadcast %cst_65 : f32 to vector<8x128xf32>
    %239 = arith.addf %238, %237 : vector<8x128xf32>
    %240 = arith.divf %238, %239 : vector<8x128xf32>
    %241 = vector.extract_strided_slice %228 {offsets = [0, 256], sizes = [8, 128], strides = [1, 1]} : vector<8x512xf32> to vector<8x128xf32>
    %242 = math.tanh %241 : vector<8x128xf32>
    %243 = vector.extract_strided_slice %228 {offsets = [0, 384], sizes = [8, 128], strides = [1, 1]} : vector<8x512xf32> to vector<8x128xf32>
    %244 = arith.negf %243 : vector<8x128xf32>
    %245 = math.exp %244 : vector<8x128xf32>
    %cst_66 = arith.constant 1.000000e+00 : f32
    %246 = vector.broadcast %cst_66 : f32 to vector<8x128xf32>
    %247 = arith.addf %246, %245 : vector<8x128xf32>
    %248 = arith.divf %246, %247 : vector<8x128xf32>
    %249 = arith.mulf %240, %198 : vector<8x128xf32>
    %250 = arith.mulf %234, %242 : vector<8x128xf32>
    %251 = arith.addf %249, %250 : vector<8x128xf32>
    %252 = math.tanh %251 : vector<8x128xf32>
    %253 = arith.mulf %248, %252 : vector<8x128xf32>
    %cst_67 = arith.constant dense<0.000000e+00> : vector<8x128xf32>
    %254 = tpu.matmul %253, %4, %cst_67 {dimension_numbers = #tpu.dot_dimension_numbers<[1], [0], [0], [1], [0, 0, 1, 1], [], []>} : vector<8x128xf32>, vector<128x128xf32>, vector<8x128xf32> -> vector<8x128xf32>
    %255 = arith.addf %254, %13 : vector<8x128xf32>
    %cst_68 = arith.constant dense<0.000000e+00> : vector<8xf32>
    %256 = vector.multi_reduction <add>, %255, %cst_68 [1] : vector<8x128xf32> to vector<8xf32>
    %257 = vector.shape_cast %256 : vector<8xf32> to vector<8x1xf32>
    %cst_69 = arith.constant 1.280000e+02 : f32
    %258 = vector.broadcast %cst_69 : f32 to vector<8x1xf32>
    %259 = arith.divf %257, %258 : vector<8x1xf32>
    %260 = vector.broadcast %259 : vector<8x1xf32> to vector<8x128xf32>
    %261 = arith.subf %255, %260 : vector<8x128xf32>
    %262 = arith.mulf %261, %261 : vector<8x128xf32>
    %cst_70 = arith.constant dense<0.000000e+00> : vector<8xf32>
    %263 = vector.multi_reduction <add>, %262, %cst_70 [1] : vector<8x128xf32> to vector<8xf32>
    %264 = vector.shape_cast %263 : vector<8xf32> to vector<8x1xf32>
    %cst_71 = arith.constant 1.280000e+02 : f32
    %265 = vector.broadcast %cst_71 : f32 to vector<8x1xf32>
    %266 = arith.divf %264, %265 : vector<8x1xf32>
    %cst_72 = arith.constant 9.99999974E-6 : f32
    %267 = vector.broadcast %cst_72 : f32 to vector<8x1xf32>
    %268 = arith.addf %266, %267 : vector<8x1xf32>
    %269 = math.rsqrt %268 : vector<8x1xf32>
    %270 = vector.broadcast %269 : vector<8x1xf32> to vector<8x128xf32>
    %271 = arith.mulf %261, %270 : vector<8x128xf32>
    %272 = vector.broadcast %7 : vector<1x128xf32> to vector<8x128xf32>
    %273 = arith.mulf %271, %272 : vector<8x128xf32>
    %274 = vector.broadcast %8 : vector<1x128xf32> to vector<8x128xf32>
    %275 = arith.addf %273, %274 : vector<8x128xf32>
    %276 = math.tanh %275 : vector<8x128xf32>
    %cst_73 = arith.constant dense<0.000000e+00> : vector<8x512xf32>
    %277 = tpu.matmul %253, %2, %cst_73 {dimension_numbers = #tpu.dot_dimension_numbers<[1], [0], [0], [1], [0, 0, 1, 1], [], []>} : vector<8x128xf32>, vector<128x512xf32>, vector<8x512xf32> -> vector<8x512xf32>
    %278 = vector.broadcast %3 : vector<1x512xf32> to vector<8x512xf32>
    %279 = arith.addf %277, %278 : vector<8x512xf32>
    %cst_74 = arith.constant dense<0.000000e+00> : vector<8x512xf32>
    %280 = tpu.matmul %276, %1, %cst_74 {dimension_numbers = #tpu.dot_dimension_numbers<[1], [0], [0], [1], [0, 0, 1, 1], [], []>} : vector<8x128xf32>, vector<128x512xf32>, vector<8x512xf32> -> vector<8x512xf32>
    %281 = arith.addf %279, %280 : vector<8x512xf32>
    %282 = vector.extract_strided_slice %281 {offsets = [0, 0], sizes = [8, 128], strides = [1, 1]} : vector<8x512xf32> to vector<8x128xf32>
    %283 = arith.negf %282 : vector<8x128xf32>
    %284 = math.exp %283 : vector<8x128xf32>
    %cst_75 = arith.constant 1.000000e+00 : f32
    %285 = vector.broadcast %cst_75 : f32 to vector<8x128xf32>
    %286 = arith.addf %285, %284 : vector<8x128xf32>
    %287 = arith.divf %285, %286 : vector<8x128xf32>
    %288 = vector.extract_strided_slice %281 {offsets = [0, 128], sizes = [8, 128], strides = [1, 1]} : vector<8x512xf32> to vector<8x128xf32>
    %289 = arith.negf %288 : vector<8x128xf32>
    %290 = math.exp %289 : vector<8x128xf32>
    %cst_76 = arith.constant 1.000000e+00 : f32
    %291 = vector.broadcast %cst_76 : f32 to vector<8x128xf32>
    %292 = arith.addf %291, %290 : vector<8x128xf32>
    %293 = arith.divf %291, %292 : vector<8x128xf32>
    %294 = vector.extract_strided_slice %281 {offsets = [0, 256], sizes = [8, 128], strides = [1, 1]} : vector<8x512xf32> to vector<8x128xf32>
    %295 = math.tanh %294 : vector<8x128xf32>
    %296 = vector.extract_strided_slice %281 {offsets = [0, 384], sizes = [8, 128], strides = [1, 1]} : vector<8x512xf32> to vector<8x128xf32>
    %297 = arith.negf %296 : vector<8x128xf32>
    %298 = math.exp %297 : vector<8x128xf32>
    %cst_77 = arith.constant 1.000000e+00 : f32
    %299 = vector.broadcast %cst_77 : f32 to vector<8x128xf32>
    %300 = arith.addf %299, %298 : vector<8x128xf32>
    %301 = arith.divf %299, %300 : vector<8x128xf32>
    %302 = arith.mulf %293, %251 : vector<8x128xf32>
    %303 = arith.mulf %287, %295 : vector<8x128xf32>
    %304 = arith.addf %302, %303 : vector<8x128xf32>
    %305 = math.tanh %304 : vector<8x128xf32>
    %306 = arith.mulf %301, %305 : vector<8x128xf32>
    %cst_78 = arith.constant dense<0.000000e+00> : vector<8x128xf32>
    %307 = tpu.matmul %306, %4, %cst_78 {dimension_numbers = #tpu.dot_dimension_numbers<[1], [0], [0], [1], [0, 0, 1, 1], [], []>} : vector<8x128xf32>, vector<128x128xf32>, vector<8x128xf32> -> vector<8x128xf32>
    %308 = arith.addf %307, %13 : vector<8x128xf32>
    %cst_79 = arith.constant dense<0.000000e+00> : vector<8xf32>
    %309 = vector.multi_reduction <add>, %308, %cst_79 [1] : vector<8x128xf32> to vector<8xf32>
    %310 = vector.shape_cast %309 : vector<8xf32> to vector<8x1xf32>
    %cst_80 = arith.constant 1.280000e+02 : f32
    %311 = vector.broadcast %cst_80 : f32 to vector<8x1xf32>
    %312 = arith.divf %310, %311 : vector<8x1xf32>
    %313 = vector.broadcast %312 : vector<8x1xf32> to vector<8x128xf32>
    %314 = arith.subf %308, %313 : vector<8x128xf32>
    %315 = arith.mulf %314, %314 : vector<8x128xf32>
    %cst_81 = arith.constant dense<0.000000e+00> : vector<8xf32>
    %316 = vector.multi_reduction <add>, %315, %cst_81 [1] : vector<8x128xf32> to vector<8xf32>
    %317 = vector.shape_cast %316 : vector<8xf32> to vector<8x1xf32>
    %cst_82 = arith.constant 1.280000e+02 : f32
    %318 = vector.broadcast %cst_82 : f32 to vector<8x1xf32>
    %319 = arith.divf %317, %318 : vector<8x1xf32>
    %cst_83 = arith.constant 9.99999974E-6 : f32
    %320 = vector.broadcast %cst_83 : f32 to vector<8x1xf32>
    %321 = arith.addf %319, %320 : vector<8x1xf32>
    %322 = math.rsqrt %321 : vector<8x1xf32>
    %323 = vector.broadcast %322 : vector<8x1xf32> to vector<8x128xf32>
    %324 = arith.mulf %314, %323 : vector<8x128xf32>
    %325 = vector.broadcast %7 : vector<1x128xf32> to vector<8x128xf32>
    %326 = arith.mulf %324, %325 : vector<8x128xf32>
    %327 = vector.broadcast %8 : vector<1x128xf32> to vector<8x128xf32>
    %328 = arith.addf %326, %327 : vector<8x128xf32>
    %329 = math.tanh %328 : vector<8x128xf32>
    %cst_84 = arith.constant dense<0.000000e+00> : vector<8x512xf32>
    %330 = tpu.matmul %306, %2, %cst_84 {dimension_numbers = #tpu.dot_dimension_numbers<[1], [0], [0], [1], [0, 0, 1, 1], [], []>} : vector<8x128xf32>, vector<128x512xf32>, vector<8x512xf32> -> vector<8x512xf32>
    %331 = vector.broadcast %3 : vector<1x512xf32> to vector<8x512xf32>
    %332 = arith.addf %330, %331 : vector<8x512xf32>
    %cst_85 = arith.constant dense<0.000000e+00> : vector<8x512xf32>
    %333 = tpu.matmul %329, %1, %cst_85 {dimension_numbers = #tpu.dot_dimension_numbers<[1], [0], [0], [1], [0, 0, 1, 1], [], []>} : vector<8x128xf32>, vector<128x512xf32>, vector<8x512xf32> -> vector<8x512xf32>
    %334 = arith.addf %332, %333 : vector<8x512xf32>
    %335 = vector.extract_strided_slice %334 {offsets = [0, 0], sizes = [8, 128], strides = [1, 1]} : vector<8x512xf32> to vector<8x128xf32>
    %336 = arith.negf %335 : vector<8x128xf32>
    %337 = math.exp %336 : vector<8x128xf32>
    %cst_86 = arith.constant 1.000000e+00 : f32
    %338 = vector.broadcast %cst_86 : f32 to vector<8x128xf32>
    %339 = arith.addf %338, %337 : vector<8x128xf32>
    %340 = arith.divf %338, %339 : vector<8x128xf32>
    %341 = vector.extract_strided_slice %334 {offsets = [0, 128], sizes = [8, 128], strides = [1, 1]} : vector<8x512xf32> to vector<8x128xf32>
    %342 = arith.negf %341 : vector<8x128xf32>
    %343 = math.exp %342 : vector<8x128xf32>
    %cst_87 = arith.constant 1.000000e+00 : f32
    %344 = vector.broadcast %cst_87 : f32 to vector<8x128xf32>
    %345 = arith.addf %344, %343 : vector<8x128xf32>
    %346 = arith.divf %344, %345 : vector<8x128xf32>
    %347 = vector.extract_strided_slice %334 {offsets = [0, 256], sizes = [8, 128], strides = [1, 1]} : vector<8x512xf32> to vector<8x128xf32>
    %348 = math.tanh %347 : vector<8x128xf32>
    %349 = vector.extract_strided_slice %334 {offsets = [0, 384], sizes = [8, 128], strides = [1, 1]} : vector<8x512xf32> to vector<8x128xf32>
    %350 = arith.negf %349 : vector<8x128xf32>
    %351 = math.exp %350 : vector<8x128xf32>
    %cst_88 = arith.constant 1.000000e+00 : f32
    %352 = vector.broadcast %cst_88 : f32 to vector<8x128xf32>
    %353 = arith.addf %352, %351 : vector<8x128xf32>
    %354 = arith.divf %352, %353 : vector<8x128xf32>
    %355 = arith.mulf %346, %304 : vector<8x128xf32>
    %356 = arith.mulf %340, %348 : vector<8x128xf32>
    %357 = arith.addf %355, %356 : vector<8x128xf32>
    %358 = math.tanh %357 : vector<8x128xf32>
    %359 = arith.mulf %354, %358 : vector<8x128xf32>
    %cst_89 = arith.constant dense<0.000000e+00> : vector<8x128xf32>
    %360 = tpu.matmul %359, %4, %cst_89 {dimension_numbers = #tpu.dot_dimension_numbers<[1], [0], [0], [1], [0, 0, 1, 1], [], []>} : vector<8x128xf32>, vector<128x128xf32>, vector<8x128xf32> -> vector<8x128xf32>
    %361 = arith.addf %360, %13 : vector<8x128xf32>
    %cst_90 = arith.constant dense<0.000000e+00> : vector<8xf32>
    %362 = vector.multi_reduction <add>, %361, %cst_90 [1] : vector<8x128xf32> to vector<8xf32>
    %363 = vector.shape_cast %362 : vector<8xf32> to vector<8x1xf32>
    %cst_91 = arith.constant 1.280000e+02 : f32
    %364 = vector.broadcast %cst_91 : f32 to vector<8x1xf32>
    %365 = arith.divf %363, %364 : vector<8x1xf32>
    %366 = vector.broadcast %365 : vector<8x1xf32> to vector<8x128xf32>
    %367 = arith.subf %361, %366 : vector<8x128xf32>
    %368 = arith.mulf %367, %367 : vector<8x128xf32>
    %cst_92 = arith.constant dense<0.000000e+00> : vector<8xf32>
    %369 = vector.multi_reduction <add>, %368, %cst_92 [1] : vector<8x128xf32> to vector<8xf32>
    %370 = vector.shape_cast %369 : vector<8xf32> to vector<8x1xf32>
    %cst_93 = arith.constant 1.280000e+02 : f32
    %371 = vector.broadcast %cst_93 : f32 to vector<8x1xf32>
    %372 = arith.divf %370, %371 : vector<8x1xf32>
    %cst_94 = arith.constant 9.99999974E-6 : f32
    %373 = vector.broadcast %cst_94 : f32 to vector<8x1xf32>
    %374 = arith.addf %372, %373 : vector<8x1xf32>
    %375 = math.rsqrt %374 : vector<8x1xf32>
    %376 = vector.broadcast %375 : vector<8x1xf32> to vector<8x128xf32>
    %377 = arith.mulf %367, %376 : vector<8x128xf32>
    %378 = vector.broadcast %7 : vector<1x128xf32> to vector<8x128xf32>
    %379 = arith.mulf %377, %378 : vector<8x128xf32>
    %380 = vector.broadcast %8 : vector<1x128xf32> to vector<8x128xf32>
    %381 = arith.addf %379, %380 : vector<8x128xf32>
    %382 = math.tanh %381 : vector<8x128xf32>
    %cst_95 = arith.constant dense<0.000000e+00> : vector<8x512xf32>
    %383 = tpu.matmul %359, %2, %cst_95 {dimension_numbers = #tpu.dot_dimension_numbers<[1], [0], [0], [1], [0, 0, 1, 1], [], []>} : vector<8x128xf32>, vector<128x512xf32>, vector<8x512xf32> -> vector<8x512xf32>
    %384 = vector.broadcast %3 : vector<1x512xf32> to vector<8x512xf32>
    %385 = arith.addf %383, %384 : vector<8x512xf32>
    %cst_96 = arith.constant dense<0.000000e+00> : vector<8x512xf32>
    %386 = tpu.matmul %382, %1, %cst_96 {dimension_numbers = #tpu.dot_dimension_numbers<[1], [0], [0], [1], [0, 0, 1, 1], [], []>} : vector<8x128xf32>, vector<128x512xf32>, vector<8x512xf32> -> vector<8x512xf32>
    %387 = arith.addf %385, %386 : vector<8x512xf32>
    %388 = vector.extract_strided_slice %387 {offsets = [0, 0], sizes = [8, 128], strides = [1, 1]} : vector<8x512xf32> to vector<8x128xf32>
    %389 = arith.negf %388 : vector<8x128xf32>
    %390 = math.exp %389 : vector<8x128xf32>
    %cst_97 = arith.constant 1.000000e+00 : f32
    %391 = vector.broadcast %cst_97 : f32 to vector<8x128xf32>
    %392 = arith.addf %391, %390 : vector<8x128xf32>
    %393 = arith.divf %391, %392 : vector<8x128xf32>
    %394 = vector.extract_strided_slice %387 {offsets = [0, 128], sizes = [8, 128], strides = [1, 1]} : vector<8x512xf32> to vector<8x128xf32>
    %395 = arith.negf %394 : vector<8x128xf32>
    %396 = math.exp %395 : vector<8x128xf32>
    %cst_98 = arith.constant 1.000000e+00 : f32
    %397 = vector.broadcast %cst_98 : f32 to vector<8x128xf32>
    %398 = arith.addf %397, %396 : vector<8x128xf32>
    %399 = arith.divf %397, %398 : vector<8x128xf32>
    %400 = vector.extract_strided_slice %387 {offsets = [0, 256], sizes = [8, 128], strides = [1, 1]} : vector<8x512xf32> to vector<8x128xf32>
    %401 = math.tanh %400 : vector<8x128xf32>
    %402 = vector.extract_strided_slice %387 {offsets = [0, 384], sizes = [8, 128], strides = [1, 1]} : vector<8x512xf32> to vector<8x128xf32>
    %403 = arith.negf %402 : vector<8x128xf32>
    %404 = math.exp %403 : vector<8x128xf32>
    %cst_99 = arith.constant 1.000000e+00 : f32
    %405 = vector.broadcast %cst_99 : f32 to vector<8x128xf32>
    %406 = arith.addf %405, %404 : vector<8x128xf32>
    %407 = arith.divf %405, %406 : vector<8x128xf32>
    %408 = arith.mulf %399, %357 : vector<8x128xf32>
    %409 = arith.mulf %393, %401 : vector<8x128xf32>
    %410 = arith.addf %408, %409 : vector<8x128xf32>
    %411 = math.tanh %410 : vector<8x128xf32>
    %412 = arith.mulf %407, %411 : vector<8x128xf32>
    %cst_100 = arith.constant dense<0.000000e+00> : vector<8x128xf32>
    %413 = tpu.matmul %412, %4, %cst_100 {dimension_numbers = #tpu.dot_dimension_numbers<[1], [0], [0], [1], [0, 0, 1, 1], [], []>} : vector<8x128xf32>, vector<128x128xf32>, vector<8x128xf32> -> vector<8x128xf32>
    %414 = arith.addf %413, %13 : vector<8x128xf32>
    %cst_101 = arith.constant dense<0.000000e+00> : vector<8xf32>
    %415 = vector.multi_reduction <add>, %414, %cst_101 [1] : vector<8x128xf32> to vector<8xf32>
    %416 = vector.shape_cast %415 : vector<8xf32> to vector<8x1xf32>
    %cst_102 = arith.constant 1.280000e+02 : f32
    %417 = vector.broadcast %cst_102 : f32 to vector<8x1xf32>
    %418 = arith.divf %416, %417 : vector<8x1xf32>
    %419 = vector.broadcast %418 : vector<8x1xf32> to vector<8x128xf32>
    %420 = arith.subf %414, %419 : vector<8x128xf32>
    %421 = arith.mulf %420, %420 : vector<8x128xf32>
    %cst_103 = arith.constant dense<0.000000e+00> : vector<8xf32>
    %422 = vector.multi_reduction <add>, %421, %cst_103 [1] : vector<8x128xf32> to vector<8xf32>
    %423 = vector.shape_cast %422 : vector<8xf32> to vector<8x1xf32>
    %cst_104 = arith.constant 1.280000e+02 : f32
    %424 = vector.broadcast %cst_104 : f32 to vector<8x1xf32>
    %425 = arith.divf %423, %424 : vector<8x1xf32>
    %cst_105 = arith.constant 9.99999974E-6 : f32
    %426 = vector.broadcast %cst_105 : f32 to vector<8x1xf32>
    %427 = arith.addf %425, %426 : vector<8x1xf32>
    %428 = math.rsqrt %427 : vector<8x1xf32>
    %429 = vector.broadcast %428 : vector<8x1xf32> to vector<8x128xf32>
    %430 = arith.mulf %420, %429 : vector<8x128xf32>
    %431 = vector.broadcast %7 : vector<1x128xf32> to vector<8x128xf32>
    %432 = arith.mulf %430, %431 : vector<8x128xf32>
    %433 = vector.broadcast %8 : vector<1x128xf32> to vector<8x128xf32>
    %434 = arith.addf %432, %433 : vector<8x128xf32>
    %435 = math.tanh %434 : vector<8x128xf32>
    %436 = tpu.concatenate %64, %117, %170, %223, %276, %329, %382, %435 in 0 : vector<8x128xf32>, vector<8x128xf32>, vector<8x128xf32>, vector<8x128xf32>, vector<8x128xf32>, vector<8x128xf32>, vector<8x128xf32>, vector<8x128xf32> -> vector<64x128xf32>
    %cst_106 = arith.constant dense<0.000000e+00> : vector<64x256xf32>
    %437 = tpu.matmul %436, %9, %cst_106 {dimension_numbers = #tpu.dot_dimension_numbers<[1], [0], [0], [1], [0, 0, 1, 1], [], []>} : vector<64x128xf32>, vector<128x256xf32>, vector<64x256xf32> -> vector<64x256xf32>
    %438 = vector.broadcast %10 : vector<1x256xf32> to vector<64x256xf32>
    %439 = arith.addf %437, %438 : vector<64x256xf32>
    %c0_107 = arith.constant 0 : index
    %c0_108 = arith.constant 0 : index
    %440 = vector.load %arg9[%c0_107, %c0_108] : memref<64x256xf32, #tpu.memory_space<vmem>>, vector<64x256xf32>
    tpu.vector_store %arg9[%c0_107, %c0_108], %439 {strides = array<i32>} : memref<64x256xf32, #tpu.memory_space<vmem>>, vector<64x256xf32>,
    return
  }
}

</mosaic_0001>

<llo_original>
// kernel: tpu_custom_call.1
$region0: #{tpu_custom_call.1}
  #allocation0 [shape = 'u32[]', space=smem, size = 0x4, offset = 0x4, fixed_abs, tag = 'smem constant byte address 0x4 - core index']
  #allocation1 [shape = 'u32[144,128]{1,0:T(1,128)}', space=vmem, size = 0x12000, scoped, tag = 'internal scratch']
  %s0 = inlined_call_operand.hbm [shape: f32[8,128], index: 0, kind: input, shape index: {}]
  %s1 = inlined_call_operand.hbm [shape: f32[128,512], index: 1, kind: input, shape index: {}]
  %s2 = inlined_call_operand.hbm [shape: f32[128,512], index: 2, kind: input, shape index: {}]
  %s3 = inlined_call_operand.vmem [shape: f32[1,512], index: 3, kind: input, shape index: {}]
  %s4 = inlined_call_operand.hbm [shape: f32[128,128], index: 4, kind: input, shape index: {}]
  %s5 = inlined_call_operand.hbm [shape: f32[128,128], index: 5, kind: input, shape index: {}]
  %s6 = inlined_call_operand.vmem [shape: f32[3,128], index: 6, kind: input, shape index: {}]
  %s7 = inlined_call_operand.hbm [shape: f32[128,256], index: 7, kind: input, shape index: {}]
  %s8 = inlined_call_operand.vmem [shape: f32[1,256], index: 8, kind: input, shape index: {}]
  %s9 = inlined_call_operand.hbm [shape: f32[64,256], index: 9, kind: output, shape index: {}]
  %s10 = sld [smem:[#allocation0]]
  $region70: #{tpu_custom_call.1} parent=0
    _
  %s12 = ssub.s32 1, %s10
  %s13 = scalar_select 0, %s12, %s10
  $region1: #{tpu_custom_call.1} parent=0
    #allocation2 [shape = 'u8[4096]{0}', space=vmem, size = 0x1000, scoped, tag = 'input window, operand 0, single buffered']
    #allocation3 [shape = 's32[1]{0}', space=sflag, size = 0x4, scoped, tag = 'scoped memory for tpu_custom_call.1']
    #allocation4 [shape = 's32[1]{0}', space=sflag, size = 0x4, scoped, tag = 'scoped memory for tpu_custom_call.1']
    #allocation5 [shape = 'u8[262144]{0}', space=vmem, size = 0x40000, scoped, tag = 'input window, operand 1, single buffered']
    #allocation6 [shape = 's32[1]{0}', space=sflag, size = 0x4, scoped, tag = 'scoped memory for tpu_custom_call.1']
    #allocation7 [shape = 'u8[262144]{0}', space=vmem, size = 0x40000, scoped, tag = 'input window, operand 2, single buffered']
    #allocation8 [shape = 'u8[65536]{0}', space=vmem, size = 0x10000, scoped, tag = 'input window, operand 4, single buffered']
    #allocation9 [shape = 's32[1]{0}', space=sflag, size = 0x4, scoped, tag = 'scoped memory for tpu_custom_call.1']
    #allocation10 [shape = 'u8[65536]{0}', space=vmem, size = 0x10000, scoped, tag = 'input window, operand 5, single buffered']
    #allocation11 [shape = 'u8[131072]{0}', space=vmem, size = 0x20000, scoped, tag = 'input window, operand 7, single buffered']
    #allocation12 [shape = 's32[1]{0}', space=sflag, size = 0x4, scoped, tag = 'scoped memory for tpu_custom_call.1']
    #allocation13 [shape = 'u8[65536]{0}', space=vmem, size = 0x10000, scoped, tag = 'output window, operand 0, single buffered']
    %14 = vsyncpa [#allocation3], 0
    %15 = vsyncpa [#allocation6], 0
    %16 = vsyncpa [#allocation9], 0
    %17 = vsyncpa [#allocation12], 0
    %18 = vsyncpa [#allocation4], 0
    // Predicated region
    $region2: #{tpu_custom_call.1} parent=1 // pred_check
      _
    $region3: #{tpu_custom_call.1} parent=1 // pred_check_branch
      %20 = sbr.rel (0) target = $region5
    $region4: #{tpu_custom_call.1} parent=1 // pred_region
      %s22 = ssub.s32 128, 128
      %23 = vsyncadd [#allocation3], %s22
      %s25 = sshll.u32 [#allocation2], 4
      %s26 = int_to_ptr.vmem [resolvable:$true] %s25
      %28 = dma.hbm_to_vmem [thread:$0]  %s0, 128, %s26, [#allocation3]
    $region5: #{tpu_custom_call.1} parent=1 // pred_fallthru
      _
    // Predicated region
    $region6: #{tpu_custom_call.1} parent=1 // pred_check
      _
    $region7: #{tpu_custom_call.1} parent=1 // pred_check_branch
      %30 = sbr.rel (0) target = $region9
    $region8: #{tpu_custom_call.1} parent=1 // pred_region
      %s32 = ssub.s32 8192, 8192
      %33 = vsyncadd [#allocation6], %s32
      %s34 = sshll.u32 [#allocation5], 4
      %s35 = int_to_ptr.vmem [resolvable:$true] %s34
      %40 = dma.hbm_to_vmem [thread:$0]  %s1, 8192, %s35, [#allocation6], 512, 512, 32
    $region9: #{tpu_custom_call.1} parent=1 // pred_fallthru
      _
    // Predicated region
    $region10: #{tpu_custom_call.1} parent=1 // pred_check
      _
    $region11: #{tpu_custom_call.1} parent=1 // pred_check_branch
      %42 = sbr.rel (0) target = $region13
    $region12: #{tpu_custom_call.1} parent=1 // pred_region
      %s44 = ssub.s32 8192, 8192
      %45 = vsyncadd [#allocation6], %s44
      %s46 = sshll.u32 [#allocation7], 4
      %s47 = int_to_ptr.vmem [resolvable:$true] %s46
      %52 = dma.hbm_to_vmem [thread:$0]  %s2, 8192, %s47, [#allocation6], 512, 512, 32
    $region13: #{tpu_custom_call.1} parent=1 // pred_fallthru
      _
    // Predicated region
    $region14: #{tpu_custom_call.1} parent=1 // pred_check
      _
    $region15: #{tpu_custom_call.1} parent=1 // pred_check_branch
      %54 = sbr.rel (0) target = $region17
    $region16: #{tpu_custom_call.1} parent=1 // pred_region
      _
    $region17: #{tpu_custom_call.1} parent=1 // pred_fallthru
      _
    // Predicated region
    $region18: #{tpu_custom_call.1} parent=1 // pred_check
      _
    $region19: #{tpu_custom_call.1} parent=1 // pred_check_branch
      %56 = sbr.rel (0) target = $region21
    $region20: #{tpu_custom_call.1} parent=1 // pred_region
      %s58 = ssub.s32 2048, 2048
      %59 = vsyncadd [#allocation9], %s58
      %s60 = sshll.u32 [#allocation8], 4
      %s61 = int_to_ptr.vmem [resolvable:$true] %s60
      %66 = dma.hbm_to_vmem [thread:$0]  %s4, 2048, %s61, [#allocation9], 128, 128, 8
    $region21: #{tpu_custom_call.1} parent=1 // pred_fallthru
      _
    // Predicated region
    $region22: #{tpu_custom_call.1} parent=1 // pred_check
      _
    $region23: #{tpu_custom_call.1} parent=1 // pred_check_branch
      %68 = sbr.rel (0) target = $region25
    $region24: #{tpu_custom_call.1} parent=1 // pred_region
      %s70 = ssub.s32 2048, 2048
      %71 = vsyncadd [#allocation9], %s70
      %s72 = sshll.u32 [#allocation10], 4
      %s73 = int_to_ptr.vmem [resolvable:$true] %s72
      %78 = dma.hbm_to_vmem [thread:$0]  %s5, 2048, %s73, [#allocation9], 128, 128, 8
    $region25: #{tpu_custom_call.1} parent=1 // pred_fallthru
      _
    // Predicated region
    $region26: #{tpu_custom_call.1} parent=1 // pred_check
      _
    $region27: #{tpu_custom_call.1} parent=1 // pred_check_branch
      %80 = sbr.rel (0) target = $region29
    $region28: #{tpu_custom_call.1} parent=1 // pred_region
      _
    $region29: #{tpu_custom_call.1} parent=1 // pred_fallthru
      _
    // Predicated region
    $region30: #{tpu_custom_call.1} parent=1 // pred_check
      _
    $region31: #{tpu_custom_call.1} parent=1 // pred_check_branch
      %82 = sbr.rel (0) target = $region33
    $region32: #{tpu_custom_call.1} parent=1 // pred_region
      %s84 = ssub.s32 4096, 4096
      %85 = vsyncadd [#allocation12], %s84
      %s86 = sshll.u32 [#allocation11], 4
      %s87 = int_to_ptr.vmem [resolvable:$true] %s86
      %92 = dma.hbm_to_vmem [thread:$0]  %s7, 4096, %s87, [#allocation12], 256, 256, 16
    $region33: #{tpu_custom_call.1} parent=1 // pred_fallthru
      _
    // Predicated region
    $region34: #{tpu_custom_call.1} parent=1 // pred_check
      _
    $region35: #{tpu_custom_call.1} parent=1 // pred_check_branch
      %94 = sbr.rel (0) target = $region37
    $region36: #{tpu_custom_call.1} parent=1 // pred_region
      _
    $region37: #{tpu_custom_call.1} parent=1 // pred_fallthru
      _
    // Predicated region
    $region38: #{tpu_custom_call.1} parent=1 // pred_check
      _
    $region39: #{tpu_custom_call.1} parent=1 // pred_check_branch
      %96 = sbr.rel (0) target = $region41
    $region40: #{tpu_custom_call.1} parent=1 // pred_region
      %97 = dma.done [#allocation3], 128
    $region41: #{tpu_custom_call.1} parent=1 // pred_fallthru
      _
    // Predicated region
    $region42: #{tpu_custom_call.1} parent=1 // pred_check
      _
    $region43: #{tpu_custom_call.1} parent=1 // pred_check_branch
      %99 = sbr.rel (0) target = $region45
    $region44: #{tpu_custom_call.1} parent=1 // pred_region
      %100 = dma.done [#allocation6], 8192
    $region45: #{tpu_custom_call.1} parent=1 // pred_fallthru
      _
    // Predicated region
    $region46: #{tpu_custom_call.1} parent=1 // pred_check
      _
    $region47: #{tpu_custom_call.1} parent=1 // pred_check_branch
      %102 = sbr.rel (0) target = $region49
    $region48: #{tpu_custom_call.1} parent=1 // pred_region
      %103 = dma.done [#allocation6], 8192
    $region49: #{tpu_custom_call.1} parent=1 // pred_fallthru
      _
    // Predicated region
    $region50: #{tpu_custom_call.1} parent=1 // pred_check
      _
    $region51: #{tpu_custom_call.1} parent=1 // pred_check_branch
      %105 = sbr.rel (0) target = $region53
    $region52: #{tpu_custom_call.1} parent=1 // pred_region
      %106 = dma.done [#allocation9], 2048
    $region53: #{tpu_custom_call.1} parent=1 // pred_fallthru
      _
    // Predicated region
    $region54: #{tpu_custom_call.1} parent=1 // pred_check
      _
    $region55: #{tpu_custom_call.1} parent=1 // pred_check_branch
      %108 = sbr.rel (0) target = $region57
    $region56: #{tpu_custom_call.1} parent=1 // pred_region
      %109 = dma.done [#allocation9], 2048
    $region57: #{tpu_custom_call.1} parent=1 // pred_fallthru
      _
    // Predicated region
    $region58: #{tpu_custom_call.1} parent=1 // pred_check
      _
    $region59: #{tpu_custom_call.1} parent=1 // pred_check_branch
      %111 = sbr.rel (0) target = $region61
    $region60: #{tpu_custom_call.1} parent=1 // pred_region
      %112 = dma.done [#allocation12], 4096
    $region61: #{tpu_custom_call.1} parent=1 // pred_fallthru
      _
    %v113 = vld [vmem:[#allocation2] sm:$0xff]
    %v114 = vld [vmem:[#allocation5] sm:$0xff]
    %v115 = vld [vmem:[#allocation5 + $0x8] sm:$0xff]
    %v116 = vld [vmem:[#allocation5 + $0x10] sm:$0xff]
    %v117 = vld [vmem:[#allocation5 + $0x18] sm:$0xff]
    %v118 = vld [vmem:[#allocation5 + $0x20] sm:$0xff]
    %v119 = vld [vmem:[#allocation5 + $0x28] sm:$0xff]
    %v120 = vld [vmem:[#allocation5 + $0x30] sm:$0xff]
    %v121 = vld [vmem:[#allocation5 + $0x38] sm:$0xff]
    %v122 = vld [vmem:[#allocation5 + $0x40] sm:$0xff]
    %v123 = vld [vmem:[#allocation5 + $0x48] sm:$0xff]
    %v124 = vld [vmem:[#allocation5 + $0x50] sm:$0xff]
    %v125 = vld [vmem:[#allocation5 + $0x58] sm:$0xff]
    %v126 = vld [vmem:[#allocation5 + $0x60] sm:$0xff]
    %v127 = vld [vmem:[#allocation5 + $0x68] sm:$0xff]
    %v128 = vld [vmem:[#allocation5 + $0x70] sm:$0xff]
    %v129 = vld [vmem:[#allocation5 + $0x78] sm:$0xff]
    %v130 = vld [vmem:[#allocation5 + $0x80] sm:$0xff]
    %v131 = vld [vmem:[#allocation5 + $0x88] sm:$0xff]
    %v132 = vld [vmem:[#allocation5 + $0x90] sm:$0xff]
    %v133 = vld [vmem:[#allocation5 + $0x98] sm:$0xff]
    %v134 = vld [vmem:[#allocation5 + $0xa0] sm:$0xff]
    %v135 = vld [vmem:[#allocation5 + $0xa8] sm:$0xff]
    %v136 = vld [vmem:[#allocation5 + $0xb0] sm:$0xff]
    %v137 = vld [vmem:[#allocation5 + $0xb8] sm:$0xff]
    %v138 = vld [vmem:[#allocation5 + $0xc0] sm:$0xff]
    %v139 = vld [vmem:[#allocation5 + $0xc8] sm:$0xff]
    %v140 = vld [vmem:[#allocation5 + $0xd0] sm:$0xff]
    %v141 = vld [vmem:[#allocation5 + $0xd8] sm:$0xff]
    %v142 = vld [vmem:[#allocation5 + $0xe0] sm:$0xff]
    %v143 = vld [vmem:[#allocation5 + $0xe8] sm:$0xff]
    %v144 = vld [vmem:[#allocation5 + $0xf0] sm:$0xff]
    %v145 = vld [vmem:[#allocation5 + $0xf8] sm:$0xff]
    %v146 = vld [vmem:[#allocation5 + $0x100] sm:$0xff]
    %v147 = vld [vmem:[#allocation5 + $0x108] sm:$0xff]
    %v148 = vld [vmem:[#allocation5 + $0x110] sm:$0xff]
    %v149 = vld [vmem:[#allocation5 + $0x118] sm:$0xff]
    %v150 = vld [vmem:[#allocation5 + $0x120] sm:$0xff]
    %v151 = vld [vmem:[#allocation5 + $0x128] sm:$0xff]
    %v152 = vld [vmem:[#allocation5 + $0x130] sm:$0xff]
    %v153 = vld [vmem:[#allocation5 + $0x138] sm:$0xff]
    %v154 = vld [vmem:[#allocation5 + $0x140] sm:$0xff]
    %v155 = vld [vmem:[#allocation5 + $0x148] sm:$0xff]
    %v156 = vld [vmem:[#allocation5 + $0x150] sm:$0xff]
    %v157 = vld [vmem:[#allocation5 + $0x158] sm:$0xff]
    %v158 = vld [vmem:[#allocation5 + $0x160] sm:$0xff]
    %v159 = vld [vmem:[#allocation5 + $0x168] sm:$0xff]
    %v160 = vld [vmem:[#allocation5 + $0x170] sm:$0xff]
    %v161 = vld [vmem:[#allocation5 + $0x178] sm:$0xff]
    %v162 = vld [vmem:[#allocation5 + $0x180] sm:$0xff]
    %v163 = vld [vmem:[#allocation5 + $0x188] sm:$0xff]
    %v164 = vld [vmem:[#allocation5 + $0x190] sm:$0xff]
    %v165 = vld [vmem:[#allocation5 + $0x198] sm:$0xff]
    %v166 = vld [vmem:[#allocation5 + $0x1a0] sm:$0xff]
    %v167 = vld [vmem:[#allocation5 + $0x1a8] sm:$0xff]
    %v168 = vld [vmem:[#allocation5 + $0x1b0] sm:$0xff]
    %v169 = vld [vmem:[#allocation5 + $0x1b8] sm:$0xff]
    %v170 = vld [vmem:[#allocation5 + $0x1c0] sm:$0xff]
    %v171 = vld [vmem:[#allocation5 + $0x1c8] sm:$0xff]
    %v172 = vld [vmem:[#allocation5 + $0x1d0] sm:$0xff]
    %v173 = vld [vmem:[#allocation5 + $0x1d8] sm:$0xff]
    %v174 = vld [vmem:[#allocation5 + $0x1e0] sm:$0xff]
    %v175 = vld [vmem:[#allocation5 + $0x1e8] sm:$0xff]
    %v176 = vld [vmem:[#allocation5 + $0x1f0] sm:$0xff]
    %v177 = vld [vmem:[#allocation5 + $0x1f8] sm:$0xff]
    %v178 = vld [vmem:[#allocation7] sm:$0xff]
    %v179 = vld [vmem:[#allocation7 + $0x8] sm:$0xff]
    %v180 = vld [vmem:[#allocation7 + $0x10] sm:$0xff]
    %v181 = vld [vmem:[#allocation7 + $0x18] sm:$0xff]
    %v182 = vld [vmem:[#allocation7 + $0x20] sm:$0xff]
    %v183 = vld [vmem:[#allocation7 + $0x28] sm:$0xff]
    %v184 = vld [vmem:[#allocation7 + $0x30] sm:$0xff]
    %v185 = vld [vmem:[#allocation7 + $0x38] sm:$0xff]
    %v186 = vld [vmem:[#allocation7 + $0x40] sm:$0xff]
    %v187 = vld [vmem:[#allocation7 + $0x48] sm:$0xff]
    %v188 = vld [vmem:[#allocation7 + $0x50] sm:$0xff]
    %v189 = vld [vmem:[#allocation7 + $0x58] sm:$0xff]
    %v190 = vld [vmem:[#allocation7 + $0x60] sm:$0xff]
    %v191 = vld [vmem:[#allocation7 + $0x68] sm:$0xff]
    %v192 = vld [vmem:[#allocation7 + $0x70] sm:$0xff]
    %v193 = vld [vmem:[#allocation7 + $0x78] sm:$0xff]
    %v194 = vld [vmem:[#allocation7 + $0x80] sm:$0xff]
    %v195 = vld [vmem:[#allocation7 + $0x88] sm:$0xff]
    %v196 = vld [vmem:[#allocation7 + $0x90] sm:$0xff]
    %v197 = vld [vmem:[#allocation7 + $0x98] sm:$0xff]
    %v198 = vld [vmem:[#allocation7 + $0xa0] sm:$0xff]
    %v199 = vld [vmem:[#allocation7 + $0xa8] sm:$0xff]
    %v200 = vld [vmem:[#allocation7 + $0xb0] sm:$0xff]
    %v201 = vld [vmem:[#allocation7 + $0xb8] sm:$0xff]
    %v202 = vld [vmem:[#allocation7 + $0xc0] sm:$0xff]
    %v203 = vld [vmem:[#allocation7 + $0xc8] sm:$0xff]
    %v204 = vld [vmem:[#allocation7 + $0xd0] sm:$0xff]
    %v205 = vld [vmem:[#allocation7 + $0xd8] sm:$0xff]
    %v206 = vld [vmem:[#allocation7 + $0xe0] sm:$0xff]
    %v207 = vld [vmem:[#allocation7 + $0xe8] sm:$0xff]
    %v208 = vld [vmem:[#allocation7 + $0xf0] sm:$0xff]
    %v209 = vld [vmem:[#allocation7 + $0xf8] sm:$0xff]
    %v210 = vld [vmem:[#allocation7 + $0x100] sm:$0xff]
    %v211 = vld [vmem:[#allocation7 + $0x108] sm:$0xff]
    %v212 = vld [vmem:[#allocation7 + $0x110] sm:$0xff]
    %v213 = vld [vmem:[#allocation7 + $0x118] sm:$0xff]
    %v214 = vld [vmem:[#allocation7 + $0x120] sm:$0xff]
    %v215 = vld [vmem:[#allocation7 + $0x128] sm:$0xff]
    %v216 = vld [vmem:[#allocation7 + $0x130] sm:$0xff]
    %v217 = vld [vmem:[#allocation7 + $0x138] sm:$0xff]
    %v218 = vld [vmem:[#allocation7 + $0x140] sm:$0xff]
    %v219 = vld [vmem:[#allocation7 + $0x148] sm:$0xff]
    %v220 = vld [vmem:[#allocation7 + $0x150] sm:$0xff]
    %v221 = vld [vmem:[#allocation7 + $0x158] sm:$0xff]
    %v222 = vld [vmem:[#allocation7 + $0x160] sm:$0xff]
    %v223 = vld [vmem:[#allocation7 + $0x168] sm:$0xff]
    %v224 = vld [vmem:[#allocation7 + $0x170] sm:$0xff]
    %v225 = vld [vmem:[#allocation7 + $0x178] sm:$0xff]
    %v226 = vld [vmem:[#allocation7 + $0x180] sm:$0xff]
    %v227 = vld [vmem:[#allocation7 + $0x188] sm:$0xff]
    %v228 = vld [vmem:[#allocation7 + $0x190] sm:$0xff]
    %v229 = vld [vmem:[#allocation7 + $0x198] sm:$0xff]
    %v230 = vld [vmem:[#allocation7 + $0x1a0] sm:$0xff]
    %v231 = vld [vmem:[#allocation7 + $0x1a8] sm:$0xff]
    %v232 = vld [vmem:[#allocation7 + $0x1b0] sm:$0xff]
    %v233 = vld [vmem:[#allocation7 + $0x1b8] sm:$0xff]
    %v234 = vld [vmem:[#allocation7 + $0x1c0] sm:$0xff]
    %v235 = vld [vmem:[#allocation7 + $0x1c8] sm:$0xff]
    %v236 = vld [vmem:[#allocation7 + $0x1d0] sm:$0xff]
    %v237 = vld [vmem:[#allocation7 + $0x1d8] sm:$0xff]
    %v238 = vld [vmem:[#allocation7 + $0x1e0] sm:$0xff]
    %v239 = vld [vmem:[#allocation7 + $0x1e8] sm:$0xff]
    %v240 = vld [vmem:[#allocation7 + $0x1f0] sm:$0xff]
    %v241 = vld [vmem:[#allocation7 + $0x1f8] sm:$0xff]
    %v242 = vld [vmem:[%s3] sm:$0xf]
    %v243 = vld [vmem:[#allocation8] sm:$0xff]
    %v244 = vld [vmem:[#allocation8 + $0x8] sm:$0xff]
    %v245 = vld [vmem:[#allocation8 + $0x10] sm:$0xff]
    %v246 = vld [vmem:[#allocation8 + $0x18] sm:$0xff]
    %v247 = vld [vmem:[#allocation8 + $0x20] sm:$0xff]
    %v248 = vld [vmem:[#allocation8 + $0x28] sm:$0xff]
    %v249 = vld [vmem:[#allocation8 + $0x30] sm:$0xff]
    %v250 = vld [vmem:[#allocation8 + $0x38] sm:$0xff]
    %v251 = vld [vmem:[#allocation8 + $0x40] sm:$0xff]
    %v252 = vld [vmem:[#allocation8 + $0x48] sm:$0xff]
    %v253 = vld [vmem:[#allocation8 + $0x50] sm:$0xff]
    %v254 = vld [vmem:[#allocation8 + $0x58] sm:$0xff]
    %v255 = vld [vmem:[#allocation8 + $0x60] sm:$0xff]
    %v256 = vld [vmem:[#allocation8 + $0x68] sm:$0xff]
    %v257 = vld [vmem:[#allocation8 + $0x70] sm:$0xff]
    %v258 = vld [vmem:[#allocation8 + $0x78] sm:$0xff]
    %v259 = vld [vmem:[#allocation10] sm:$0xff]
    %v260 = vld [vmem:[#allocation10 + $0x8] sm:$0xff]
    %v261 = vld [vmem:[#allocation10 + $0x10] sm:$0xff]
    %v262 = vld [vmem:[#allocation10 + $0x18] sm:$0xff]
    %v263 = vld [vmem:[#allocation10 + $0x20] sm:$0xff]
    %v264 = vld [vmem:[#allocation10 + $0x28] sm:$0xff]
    %v265 = vld [vmem:[#allocation10 + $0x30] sm:$0xff]
    %v266 = vld [vmem:[#allocation10 + $0x38] sm:$0xff]
    %v267 = vld [vmem:[#allocation10 + $0x40] sm:$0xff]
    %v268 = vld [vmem:[#allocation10 + $0x48] sm:$0xff]
    %v269 = vld [vmem:[#allocation10 + $0x50] sm:$0xff]
    %v270 = vld [vmem:[#allocation10 + $0x58] sm:$0xff]
    %v271 = vld [vmem:[#allocation10 + $0x60] sm:$0xff]
    %v272 = vld [vmem:[#allocation10 + $0x68] sm:$0xff]
    %v273 = vld [vmem:[#allocation10 + $0x70] sm:$0xff]
    %v274 = vld [vmem:[#allocation10 + $0x78] sm:$0xff]
    %v275 = vld [vmem:[%s6] sm:$0x1]
    %v276 = vld [vmem:[%s6 + $0x1] sm:$0x1]
    %v277 = vld [vmem:[%s6 + $0x2] sm:$0x1]
    %v278 = vld [vmem:[#allocation11] sm:$0xff]
    %v279 = vld [vmem:[#allocation11 + $0x8] sm:$0xff]
    %v280 = vld [vmem:[#allocation11 + $0x10] sm:$0xff]
    %v281 = vld [vmem:[#allocation11 + $0x18] sm:$0xff]
    %v282 = vld [vmem:[#allocation11 + $0x20] sm:$0xff]
    %v283 = vld [vmem:[#allocation11 + $0x28] sm:$0xff]
    %v284 = vld [vmem:[#allocation11 + $0x30] sm:$0xff]
    %v285 = vld [vmem:[#allocation11 + $0x38] sm:$0xff]
    %v286 = vld [vmem:[#allocation11 + $0x40] sm:$0xff]
    %v287 = vld [vmem:[#allocation11 + $0x48] sm:$0xff]
    %v288 = vld [vmem:[#allocation11 + $0x50] sm:$0xff]
    %v289 = vld [vmem:[#allocation11 + $0x58] sm:$0xff]
    %v290 = vld [vmem:[#allocation11 + $0x60] sm:$0xff]
    %v291 = vld [vmem:[#allocation11 + $0x68] sm:$0xff]
    %v292 = vld [vmem:[#allocation11 + $0x70] sm:$0xff]
    %v293 = vld [vmem:[#allocation11 + $0x78] sm:$0xff]
    %v294 = vld [vmem:[#allocation11 + $0x80] sm:$0xff]
    %v295 = vld [vmem:[#allocation11 + $0x88] sm:$0xff]
    %v296 = vld [vmem:[#allocation11 + $0x90] sm:$0xff]
    %v297 = vld [vmem:[#allocation11 + $0x98] sm:$0xff]
    %v298 = vld [vmem:[#allocation11 + $0xa0] sm:$0xff]
    %v299 = vld [vmem:[#allocation11 + $0xa8] sm:$0xff]
    %v300 = vld [vmem:[#allocation11 + $0xb0] sm:$0xff]
    %v301 = vld [vmem:[#allocation11 + $0xb8] sm:$0xff]
    %v302 = vld [vmem:[#allocation11 + $0xc0] sm:$0xff]
    %v303 = vld [vmem:[#allocation11 + $0xc8] sm:$0xff]
    %v304 = vld [vmem:[#allocation11 + $0xd0] sm:$0xff]
    %v305 = vld [vmem:[#allocation11 + $0xd8] sm:$0xff]
    %v306 = vld [vmem:[#allocation11 + $0xe0] sm:$0xff]
    %v307 = vld [vmem:[#allocation11 + $0xe8] sm:$0xff]
    %v308 = vld [vmem:[#allocation11 + $0xf0] sm:$0xff]
    %v309 = vld [vmem:[#allocation11 + $0xf8] sm:$0xff]
    %v310 = vld [vmem:[%s8] sm:$0x3]
    %v311 = vlaneseq
    %v312 = vshrl.u32 %v311, 7
    %v313 = vsub.s32 0, %v312
    %v314 = vrot.slane %v275, %v313
    %315 = vmatprep.subr.mxu0 0.0
    %316 = vmatpush1.msra.mxu0 %v259
    %317 = vmatprep.subr.mxu0 0.0
    %318 = vmatpush1.msra.mxu0 %v260
    %319 = vmatprep.subr.mxu0 0.0
    %320 = vmatpush1.msra.mxu0 %v261
    %321 = vmatprep.subr.mxu0 0.0
    %322 = vmatpush1.msra.mxu0 %v262
    %323 = vmatprep.subr.mxu0 0.0
    %324 = vmatpush1.msra.mxu0 %v263
    %325 = vmatprep.subr.mxu0 0.0
    %326 = vmatpush1.msra.mxu0 %v264
    %327 = vmatprep.subr.mxu0 0.0
    %328 = vmatpush1.msra.mxu0 %v265
    %329 = vmatprep.subr.mxu0 0.0
    %330 = vmatpush1.msra.mxu0 %v266
    %331 = vmatprep.subr.mxu0 0.0
    %332 = vmatpush1.msra.mxu0 %v267
    %333 = vmatprep.subr.mxu0 0.0
    %334 = vmatpush1.msra.mxu0 %v268
    %335 = vmatprep.subr.mxu0 0.0
    %336 = vmatpush1.msra.mxu0 %v269
    %337 = vmatprep.subr.mxu0 0.0
    %338 = vmatpush1.msra.mxu0 %v270
    %339 = vmatprep.subr.mxu0 0.0
    %340 = vmatpush1.msra.mxu0 %v271
    %341 = vmatprep.subr.mxu0 0.0
    %342 = vmatpush1.msra.mxu0 %v272
    %343 = vmatprep.subr.mxu0 0.0
    %344 = vmatpush1.msra.mxu0 %v273
    %345 = vmatprep.subr.mxu0 0.0
    %346 = vmatpush1.msra.mxu0 %v274
    %347 = vmatprep.subr.mxu0 0.0
    %348 = vmatpush1.msra.mxu0 0.0
    %349 = vmatprep.subr.mxu0 0.0
    %350 = vmatpush1.msra.mxu0 0.0
    %351 = vmatprep.subr.mxu0 0.0
    %352 = vmatpush1.msra.mxu0 0.0
    %353 = vmatprep.subr.mxu0 0.0
    %354 = vmatpush1.msra.mxu0 0.0
    %355 = vmatprep.subr.mxu0 0.0
    %356 = vmatpush1.msra.mxu0 0.0
    %357 = vmatprep.subr.mxu0 0.0
    %358 = vmatpush1.msra.mxu0 0.0
    %359 = vmatprep.subr.mxu0 0.0
    %360 = vmatpush1.msra.mxu0 0.0
    %361 = vmatprep.subr.mxu0 0.0
    %362 = vmatpush1.msra.mxu0 0.0
    %363 = vmatprep.subr.mxu0 0.0
    %364 = vmatpush1.msra.mxu0 0.0
    %365 = vmatprep.subr.mxu0 0.0
    %366 = vmatpush1.msra.mxu0 0.0
    %367 = vmatprep.subr.mxu0 0.0
    %368 = vmatpush1.msra.mxu0 0.0
    %369 = vmatprep.subr.mxu0 0.0
    %370 = vmatpush1.msra.mxu0 0.0
    %371 = vmatprep.subr.mxu0 0.0
    %372 = vmatpush1.msra.mxu0 0.0
    %373 = vmatprep.subr.mxu0 0.0
    %374 = vmatpush1.msra.mxu0 0.0
    %375 = vmatprep.subr.mxu0 0.0
    %376 = vmatpush1.msra.mxu0 0.0
    %377 = vmatprep.subr.mxu0 0.0
    %378 = vmatpush1.msra.mxu0 0.0
    %379 = vmatprep.mubr.f32.mxu0 0.0
    %380 = vmatmul.mubr.f32.gmra.mrb[0].mxu0 %v113
    %v381 = vpop.f32.mrb[0].mxu0
    %v382 = vadd.f32 %v314, %v381
    %v383 = vpop.f32.mrb[0].mxu0
    %384 = vdwg.mxu0
    %v386 = vlaneseq
    %v387 = vshrl.u32 %v386, 7
    %v388 = vsub.s32 0, %v387
    %v389 = vrot.slane %v242, %v388
    %v390 = vlaneseq
    %v391 = vshrl.u32 %v390, 7
    %v392 = vsub.s32 1, %v391
    %v393 = vrot.slane %v242, %v392
    %v394 = vlaneseq
    %v395 = vshrl.u32 %v394, 7
    %v396 = vsub.s32 2, %v395
    %v397 = vrot.slane %v242, %v396
    %v398 = vlaneseq
    %v399 = vshrl.u32 %v398, 7
    %v400 = vsub.s32 3, %v399
    %v401 = vrot.slane %v242, %v400
    %406 = vmatprep.subr.mxu0 %v179
    %407 = vmatpush1.msra.mxu0 %v178
    %408 = vmatprep.subr.mxu0 %v183
    %409 = vmatpush1.msra.mxu0 %v182
    %410 = vmatprep.subr.mxu0 %v187
    %411 = vmatpush1.msra.mxu0 %v186
    %412 = vmatprep.subr.mxu0 %v191
    %413 = vmatpush1.msra.mxu0 %v190
    %414 = vmatprep.subr.mxu0 %v195
    %415 = vmatpush1.msra.mxu0 %v194
    %416 = vmatprep.subr.mxu0 %v199
    %417 = vmatpush1.msra.mxu0 %v198
    %418 = vmatprep.subr.mxu0 %v203
    %419 = vmatpush1.msra.mxu0 %v202
    %420 = vmatprep.subr.mxu0 %v207
    %421 = vmatpush1.msra.mxu0 %v206
    %422 = vmatprep.subr.mxu0 %v211
    %423 = vmatpush1.msra.mxu0 %v210
    %424 = vmatprep.subr.mxu0 %v215
    %425 = vmatpush1.msra.mxu0 %v214
    %426 = vmatprep.subr.mxu0 %v219
    %427 = vmatpush1.msra.mxu0 %v218
    %428 = vmatprep.subr.mxu0 %v223
    %429 = vmatpush1.msra.mxu0 %v222
    %430 = vmatprep.subr.mxu0 %v227
    %431 = vmatpush1.msra.mxu0 %v226
    %432 = vmatprep.subr.mxu0 %v231
    %433 = vmatpush1.msra.mxu0 %v230
    %434 = vmatprep.subr.mxu0 %v235
    %435 = vmatpush1.msra.mxu0 %v234
    %436 = vmatprep.subr.mxu0 %v239
    %437 = vmatpush1.msra.mxu0 %v238
    %438 = vmatprep.subr.mxu0 0.0
    %439 = vmatpush1.msra.mxu0 0.0
    %440 = vmatprep.subr.mxu0 0.0
    %441 = vmatpush1.msra.mxu0 0.0
    %442 = vmatprep.subr.mxu0 0.0
    %443 = vmatpush1.msra.mxu0 0.0
    %444 = vmatprep.subr.mxu0 0.0
    %445 = vmatpush1.msra.mxu0 0.0
    %446 = vmatprep.subr.mxu0 0.0
    %447 = vmatpush1.msra.mxu0 0.0
    %448 = vmatprep.subr.mxu0 0.0
    %449 = vmatpush1.msra.mxu0 0.0
    %450 = vmatprep.subr.mxu0 0.0
    %451 = vmatpush1.msra.mxu0 0.0
    %452 = vmatprep.subr.mxu0 0.0
    %453 = vmatpush1.msra.mxu0 0.0
    %454 = vmatprep.subr.mxu0 0.0
    %455 = vmatpush1.msra.mxu0 0.0
    %456 = vmatprep.subr.mxu0 0.0
    %457 = vmatpush1.msra.mxu0 0.0
    %458 = vmatprep.subr.mxu0 0.0
    %459 = vmatpush1.msra.mxu0 0.0
    %460 = vmatprep.subr.mxu0 0.0
    %461 = vmatpush1.msra.mxu0 0.0
    %462 = vmatprep.subr.mxu0 0.0
    %463 = vmatpush1.msra.mxu0 0.0
    %464 = vmatprep.subr.mxu0 0.0
    %465 = vmatpush1.msra.mxu0 0.0
    %466 = vmatprep.subr.mxu0 0.0
    %467 = vmatpush1.msra.mxu0 0.0
    %468 = vmatprep.subr.mxu0 0.0
    %469 = vmatpush1.msra.mxu0 0.0
    %470 = vmatprep.mubr.f32.mxu0 0.0
    %471 = vmatmul.mubr.f32.gmra.mrb[0].mxu0 %v113
    %v472 = vpop.f32.mrb[0].mxu0
    %v473 = vadd.f32 %v389, %v472
    %v474 = vpop.f32.mrb[0].mxu0
    %v475 = vadd.f32 %v393, %v474
    %476 = vdwg.mxu0
    %477 = vmatprep.subr.mxu0 %v181
    %478 = vmatpush1.msra.mxu0 %v180
    %479 = vmatprep.subr.mxu0 %v185
    %480 = vmatpush1.msra.mxu0 %v184
    %481 = vmatprep.subr.mxu0 %v189
    %482 = vmatpush1.msra.mxu0 %v188
    %483 = vmatprep.subr.mxu0 %v193
    %484 = vmatpush1.msra.mxu0 %v192
    %485 = vmatprep.subr.mxu0 %v197
    %486 = vmatpush1.msra.mxu0 %v196
    %487 = vmatprep.subr.mxu0 %v201
    %488 = vmatpush1.msra.mxu0 %v200
    %489 = vmatprep.subr.mxu0 %v205
    %490 = vmatpush1.msra.mxu0 %v204
    %491 = vmatprep.subr.mxu0 %v209
    %492 = vmatpush1.msra.mxu0 %v208
    %493 = vmatprep.subr.mxu0 %v213
    %494 = vmatpush1.msra.mxu0 %v212
    %495 = vmatprep.subr.mxu0 %v217
    %496 = vmatpush1.msra.mxu0 %v216
    %497 = vmatprep.subr.mxu0 %v221
    %498 = vmatpush1.msra.mxu0 %v220
    %499 = vmatprep.subr.mxu0 %v225
    %500 = vmatpush1.msra.mxu0 %v224
    %501 = vmatprep.subr.mxu0 %v229
    %502 = vmatpush1.msra.mxu0 %v228
    %503 = vmatprep.subr.mxu0 %v233
    %504 = vmatpush1.msra.mxu0 %v232
    %505 = vmatprep.subr.mxu0 %v237
    %506 = vmatpush1.msra.mxu0 %v236
    %507 = vmatprep.subr.mxu0 %v241
    %508 = vmatpush1.msra.mxu0 %v240
    %509 = vmatprep.subr.mxu0 0.0
    %510 = vmatpush1.msra.mxu0 0.0
    %511 = vmatprep.subr.mxu0 0.0
    %512 = vmatpush1.msra.mxu0 0.0
    %513 = vmatprep.subr.mxu0 0.0
    %514 = vmatpush1.msra.mxu0 0.0
    %515 = vmatprep.subr.mxu0 0.0
    %516 = vmatpush1.msra.mxu0 0.0
    %517 = vmatprep.subr.mxu0 0.0
    %518 = vmatpush1.msra.mxu0 0.0
    %519 = vmatprep.subr.mxu0 0.0
    %520 = vmatpush1.msra.mxu0 0.0
    %521 = vmatprep.subr.mxu0 0.0
    %522 = vmatpush1.msra.mxu0 0.0
    %523 = vmatprep.subr.mxu0 0.0
    %524 = vmatpush1.msra.mxu0 0.0
    %525 = vmatprep.subr.mxu0 0.0
    %526 = vmatpush1.msra.mxu0 0.0
    %527 = vmatprep.subr.mxu0 0.0
    %528 = vmatpush1.msra.mxu0 0.0
    %529 = vmatprep.subr.mxu0 0.0
    %530 = vmatpush1.msra.mxu0 0.0
    %531 = vmatprep.subr.mxu0 0.0
    %532 = vmatpush1.msra.mxu0 0.0
    %533 = vmatprep.subr.mxu0 0.0
    %534 = vmatpush1.msra.mxu0 0.0
    %535 = vmatprep.subr.mxu0 0.0
    %536 = vmatpush1.msra.mxu0 0.0
    %537 = vmatprep.subr.mxu0 0.0
    %538 = vmatpush1.msra.mxu0 0.0
    %539 = vmatprep.subr.mxu0 0.0
    %540 = vmatpush1.msra.mxu0 0.0
    %541 = vmatprep.mubr.f32.mxu0 0.0
    %542 = vmatmul.mubr.f32.gmra.mrb[0].mxu0 %v113
    %v543 = vpop.f32.mrb[0].mxu0
    %v544 = vadd.f32 %v397, %v543
    %v545 = vpop.f32.mrb[0].mxu0
    %v546 = vadd.f32 %v401, %v545
    %547 = vdwg.mxu0
    %v548 = vxor.u32 %v473, 2147483648
    %v549 = vmul.f32 %v548, 1.442695
    %v550 = vpow.pop %v549
    %v551 = vadd.f32 %v550, 1.0
    %v552 = vrcp.pop %v551
    %v553 = vmul.f32 1.0, %v552
    %v554 = vxor.u32 %v475, 2147483648
    %v555 = vmul.f32 %v554, 1.442695
    %v556 = vpow.pop %v555
    %v557 = vadd.f32 %v556, 1.0
    %v558 = vrcp.pop %v557
    %v559 = vmul.f32 1.0, %v558
    %v560 = vtanh.pop %v544
    %v561 = vxor.u32 %v546, 2147483648
    %v562 = vmul.f32 %v561, 1.442695
    %v563 = vpow.pop %v562
    %v564 = vadd.f32 %v563, 1.0
    %v565 = vrcp.pop %v564
    %v566 = vmul.f32 1.0, %v565
    %v567 = vmul.f32 %v559, %v113
    %v568 = vmul.f32 %v553, %v560
    %v569 = vadd.f32 %v567, %v568
    %v570 = vtanh.pop %v569
    %v571 = vmul.f32 %v566, %v570
    %572 = vmatprep.subr.mxu0 0.0
    %573 = vmatpush1.msra.mxu0 %v243
    %574 = vmatprep.subr.mxu0 0.0
    %575 = vmatpush1.msra.mxu0 %v244
    %576 = vmatprep.subr.mxu0 0.0
    %577 = vmatpush1.msra.mxu0 %v245
    %578 = vmatprep.subr.mxu0 0.0
    %579 = vmatpush1.msra.mxu0 %v246
    %580 = vmatprep.subr.mxu0 0.0
    %581 = vmatpush1.msra.mxu0 %v247
    %582 = vmatprep.subr.mxu0 0.0
    %583 = vmatpush1.msra.mxu0 %v248
    %584 = vmatprep.subr.mxu0 0.0
    %585 = vmatpush1.msra.mxu0 %v249
    %586 = vmatprep.subr.mxu0 0.0
    %587 = vmatpush1.msra.mxu0 %v250
    %588 = vmatprep.subr.mxu0 0.0
    %589 = vmatpush1.msra.mxu0 %v251
    %590 = vmatprep.subr.mxu0 0.0
    %591 = vmatpush1.msra.mxu0 %v252
    %592 = vmatprep.subr.mxu0 0.0
    %593 = vmatpush1.msra.mxu0 %v253
    %594 = vmatprep.subr.mxu0 0.0
    %595 = vmatpush1.msra.mxu0 %v254
    %596 = vmatprep.subr.mxu0 0.0
    %597 = vmatpush1.msra.mxu0 %v255
    %598 = vmatprep.subr.mxu0 0.0
    %599 = vmatpush1.msra.mxu0 %v256
    %600 = vmatprep.subr.mxu0 0.0
    %601 = vmatpush1.msra.mxu0 %v257
    %602 = vmatprep.subr.mxu0 0.0
    %603 = vmatpush1.msra.mxu0 %v258
    %604 = vmatprep.subr.mxu0 0.0
    %605 = vmatpush1.msra.mxu0 0.0
    %606 = vmatprep.subr.mxu0 0.0
    %607 = vmatpush1.msra.mxu0 0.0
    %608 = vmatprep.subr.mxu0 0.0
    %609 = vmatpush1.msra.mxu0 0.0
    %610 = vmatprep.subr.mxu0 0.0
    %611 = vmatpush1.msra.mxu0 0.0
    %612 = vmatprep.subr.mxu0 0.0
    %613 = vmatpush1.msra.mxu0 0.0
    %614 = vmatprep.subr.mxu0 0.0
    %615 = vmatpush1.msra.mxu0 0.0
    %616 = vmatprep.subr.mxu0 0.0
    %617 = vmatpush1.msra.mxu0 0.0
    %618 = vmatprep.subr.mxu0 0.0
    %619 = vmatpush1.msra.mxu0 0.0
    %620 = vmatprep.subr.mxu0 0.0
    %621 = vmatpush1.msra.mxu0 0.0
    %622 = vmatprep.subr.mxu0 0.0
    %623 = vmatpush1.msra.mxu0 0.0
    %624 = vmatprep.subr.mxu0 0.0
    %625 = vmatpush1.msra.mxu0 0.0
    %626 = vmatprep.subr.mxu0 0.0
    %627 = vmatpush1.msra.mxu0 0.0
    %628 = vmatprep.subr.mxu0 0.0
    %629 = vmatpush1.msra.mxu0 0.0
    %630 = vmatprep.subr.mxu0 0.0
    %631 = vmatpush1.msra.mxu0 0.0
    %632 = vmatprep.subr.mxu0 0.0
    %633 = vmatpush1.msra.mxu0 0.0
    %634 = vmatprep.subr.mxu0 0.0
    %635 = vmatpush1.msra.mxu0 0.0
    %636 = vmatprep.mubr.f32.mxu0 0.0
    %637 = vmatmul.mubr.f32.gmra.mrb[0].mxu0 %v571
    %v638 = vpop.f32.mrb[0].mxu0
    %v639 = vadd.f32 %v382, %v638
    %v640 = vpop.f32.mrb[0].mxu0
    %641 = vdwg.mxu0
    %642 = vadd.xlane.f32.xlu0 %v639
    %v643 = vpop.xlane.xlu0 %642
    %v644 = vrcp.pop 128.0
    %v645 = vmul.f32 %v643, %v644
    %v646 = vsub.f32 %v639, %v645
    %v647 = vmul.f32 %v646, %v646
    %648 = vadd.xlane.f32.xlu0 %v647
    %v649 = vpop.xlane.xlu0 %648
    %v650 = vmul.f32 %v649, %v644
    %v651 = vadd.f32 %v650, 1e-05
    %v652 = vrsqrt.pop %v651
    %v653 = vmul.f32 %v646, %v652
    %v654 = vlaneseq
    %v655 = vshrl.u32 %v654, 7
    %v656 = vsub.s32 0, %v655
    %v657 = vrot.slane %v276, %v656
    %v658 = vmul.f32 %v653, %v657
    %v659 = vlaneseq
    %v660 = vshrl.u32 %v659, 7
    %v661 = vsub.s32 0, %v660
    %v662 = vrot.slane %v277, %v661
    %v663 = vadd.f32 %v658, %v662
    %v664 = vtanh.pop %v663
    %665 = vmatprep.subr.mxu0 %v179
    %666 = vmatpush1.msra.mxu0 %v178
    %667 = vmatprep.subr.mxu0 %v183
    %668 = vmatpush1.msra.mxu0 %v182
    %669 = vmatprep.subr.mxu0 %v187
    %670 = vmatpush1.msra.mxu0 %v186
    %671 = vmatprep.subr.mxu0 %v191
    %672 = vmatpush1.msra.mxu0 %v190
    %673 = vmatprep.subr.mxu0 %v195
    %674 = vmatpush1.msra.mxu0 %v194
    %675 = vmatprep.subr.mxu0 %v199
    %676 = vmatpush1.msra.mxu0 %v198
    %677 = vmatprep.subr.mxu0 %v203
    %678 = vmatpush1.msra.mxu0 %v202
    %679 = vmatprep.subr.mxu0 %v207
    %680 = vmatpush1.msra.mxu0 %v206
    %681 = vmatprep.subr.mxu0 %v211
    %682 = vmatpush1.msra.mxu0 %v210
    %683 = vmatprep.subr.mxu0 %v215
    %684 = vmatpush1.msra.mxu0 %v214
    %685 = vmatprep.subr.mxu0 %v219
    %686 = vmatpush1.msra.mxu0 %v218
    %687 = vmatprep.subr.mxu0 %v223
    %688 = vmatpush1.msra.mxu0 %v222
    %689 = vmatprep.subr.mxu0 %v227
    %690 = vmatpush1.msra.mxu0 %v226
    %691 = vmatprep.subr.mxu0 %v231
    %692 = vmatpush1.msra.mxu0 %v230
    %693 = vmatprep.subr.mxu0 %v235
    %694 = vmatpush1.msra.mxu0 %v234
    %695 = vmatprep.subr.mxu0 %v239
    %696 = vmatpush1.msra.mxu0 %v238
    %697 = vmatprep.subr.mxu0 0.0
    %698 = vmatpush1.msra.mxu0 0.0
    %699 = vmatprep.subr.mxu0 0.0
    %700 = vmatpush1.msra.mxu0 0.0
    %701 = vmatprep.subr.mxu0 0.0
    %702 = vmatpush1.msra.mxu0 0.0
    %703 = vmatprep.subr.mxu0 0.0
    %704 = vmatpush1.msra.mxu0 0.0
    %705 = vmatprep.subr.mxu0 0.0
    %706 = vmatpush1.msra.mxu0 0.0
    %707 = vmatprep.subr.mxu0 0.0
    %708 = vmatpush1.msra.mxu0 0.0
    %709 = vmatprep.subr.mxu0 0.0
    %710 = vmatpush1.msra.mxu0 0.0
    %711 = vmatprep.subr.mxu0 0.0
    %712 = vmatpush1.msra.mxu0 0.0
    %713 = vmatprep.subr.mxu0 0.0
    %714 = vmatpush1.msra.mxu0 0.0
    %715 = vmatprep.subr.mxu0 0.0
    %716 = vmatpush1.msra.mxu0 0.0
    %717 = vmatprep.subr.mxu0 0.0
    %718 = vmatpush1.msra.mxu0 0.0
    %719 = vmatprep.subr.mxu0 0.0
    %720 = vmatpush1.msra.mxu0 0.0
    %721 = vmatprep.subr.mxu0 0.0
    %722 = vmatpush1.msra.mxu0 0.0
    %723 = vmatprep.subr.mxu0 0.0
    %724 = vmatpush1.msra.mxu0 0.0
    %725 = vmatprep.subr.mxu0 0.0
    %726 = vmatpush1.msra.mxu0 0.0
    %727 = vmatprep.subr.mxu0 0.0
    %728 = vmatpush1.msra.mxu0 0.0
    %729 = vmatprep.mubr.f32.mxu0 0.0
    %730 = vmatmul.mubr.f32.gmra.mrb[0].mxu0 %v571
    %v731 = vpop.f32.mrb[0].mxu0
    %v732 = vadd.f32 %v389, %v731
    %v733 = vpop.f32.mrb[0].mxu0
    %v734 = vadd.f32 %v393, %v733
    %735 = vdwg.mxu0
    %736 = vmatprep.subr.mxu0 %v181
    %737 = vmatpush1.msra.mxu0 %v180
    %738 = vmatprep.subr.mxu0 %v185
    %739 = vmatpush1.msra.mxu0 %v184
    %740 = vmatprep.subr.mxu0 %v189
    %741 = vmatpush1.msra.mxu0 %v188
    %742 = vmatprep.subr.mxu0 %v193
    %743 = vmatpush1.msra.mxu0 %v192
    %744 = vmatprep.subr.mxu0 %v197
    %745 = vmatpush1.msra.mxu0 %v196
    %746 = vmatprep.subr.mxu0 %v201
    %747 = vmatpush1.msra.mxu0 %v200
    %748 = vmatprep.subr.mxu0 %v205
    %749 = vmatpush1.msra.mxu0 %v204
    %750 = vmatprep.subr.mxu0 %v209
    %751 = vmatpush1.msra.mxu0 %v208
    %752 = vmatprep.subr.mxu0 %v213
    %753 = vmatpush1.msra.mxu0 %v212
    %754 = vmatprep.subr.mxu0 %v217
    %755 = vmatpush1.msra.mxu0 %v216
    %756 = vmatprep.subr.mxu0 %v221
    %757 = vmatpush1.msra.mxu0 %v220
    %758 = vmatprep.subr.mxu0 %v225
    %759 = vmatpush1.msra.mxu0 %v224
    %760 = vmatprep.subr.mxu0 %v229
    %761 = vmatpush1.msra.mxu0 %v228
    %762 = vmatprep.subr.mxu0 %v233
    %763 = vmatpush1.msra.mxu0 %v232
    %764 = vmatprep.subr.mxu0 %v237
    %765 = vmatpush1.msra.mxu0 %v236
    %766 = vmatprep.subr.mxu0 %v241
    %767 = vmatpush1.msra.mxu0 %v240
    %768 = vmatprep.subr.mxu0 0.0
    %769 = vmatpush1.msra.mxu0 0.0
    %770 = vmatprep.subr.mxu0 0.0
    %771 = vmatpush1.msra.mxu0 0.0
    %772 = vmatprep.subr.mxu0 0.0
    %773 = vmatpush1.msra.mxu0 0.0
    %774 = vmatprep.subr.mxu0 0.0
    %775 = vmatpush1.msra.mxu0 0.0
    %776 = vmatprep.subr.mxu0 0.0
    %777 = vmatpush1.msra.mxu0 0.0
    %778 = vmatprep.subr.mxu0 0.0
    %779 = vmatpush1.msra.mxu0 0.0
    %780 = vmatprep.subr.mxu0 0.0
    %781 = vmatpush1.msra.mxu0 0.0
    %782 = vmatprep.subr.mxu0 0.0
    %783 = vmatpush1.msra.mxu0 0.0
    %784 = vmatprep.subr.mxu0 0.0
    %785 = vmatpush1.msra.mxu0 0.0
    %786 = vmatprep.subr.mxu0 0.0
    %787 = vmatpush1.msra.mxu0 0.0
    %788 = vmatprep.subr.mxu0 0.0
    %789 = vmatpush1.msra.mxu0 0.0
    %790 = vmatprep.subr.mxu0 0.0
    %791 = vmatpush1.msra.mxu0 0.0
    %792 = vmatprep.subr.mxu0 0.0
    %793 = vmatpush1.msra.mxu0 0.0
    %794 = vmatprep.subr.mxu0 0.0
    %795 = vmatpush1.msra.mxu0 0.0
    %796 = vmatprep.subr.mxu0 0.0
    %797 = vmatpush1.msra.mxu0 0.0
    %798 = vmatprep.subr.mxu0 0.0
    %799 = vmatpush1.msra.mxu0 0.0
    %800 = vmatprep.mubr.f32.mxu0 0.0
    %801 = vmatmul.mubr.f32.gmra.mrb[0].mxu0 %v571
    %v802 = vpop.f32.mrb[0].mxu0
    %v803 = vadd.f32 %v397, %v802
    %v804 = vpop.f32.mrb[0].mxu0
    %v805 = vadd.f32 %v401, %v804
    %806 = vdwg.mxu0
    %807 = vmatprep.subr.mxu0 %v115
    %808 = vmatpush1.msra.mxu0 %v114
    %809 = vmatprep.subr.mxu0 %v119
    %810 = vmatpush1.msra.mxu0 %v118
    %811 = vmatprep.subr.mxu0 %v123
    %812 = vmatpush1.msra.mxu0 %v122
    %813 = vmatprep.subr.mxu0 %v127
    %814 = vmatpush1.msra.mxu0 %v126
    %815 = vmatprep.subr.mxu0 %v131
    %816 = vmatpush1.msra.mxu0 %v130
    %817 = vmatprep.subr.mxu0 %v135
    %818 = vmatpush1.msra.mxu0 %v134
    %819 = vmatprep.subr.mxu0 %v139
    %820 = vmatpush1.msra.mxu0 %v138
    %821 = vmatprep.subr.mxu0 %v143
    %822 = vmatpush1.msra.mxu0 %v142
    %823 = vmatprep.subr.mxu0 %v147
    %824 = vmatpush1.msra.mxu0 %v146
    %825 = vmatprep.subr.mxu0 %v151
    %826 = vmatpush1.msra.mxu0 %v150
    %827 = vmatprep.subr.mxu0 %v155
    %828 = vmatpush1.msra.mxu0 %v154
    %829 = vmatprep.subr.mxu0 %v159
    %830 = vmatpush1.msra.mxu0 %v158
    %831 = vmatprep.subr.mxu0 %v163
    %832 = vmatpush1.msra.mxu0 %v162
    %833 = vmatprep.subr.mxu0 %v167
    %834 = vmatpush1.msra.mxu0 %v166
    %835 = vmatprep.subr.mxu0 %v171
    %836 = vmatpush1.msra.mxu0 %v170
    %837 = vmatprep.subr.mxu0 %v175
    %838 = vmatpush1.msra.mxu0 %v174
    %839 = vmatprep.subr.mxu0 0.0
    %840 = vmatpush1.msra.mxu0 0.0
    %841 = vmatprep.subr.mxu0 0.0
    %842 = vmatpush1.msra.mxu0 0.0
    %843 = vmatprep.subr.mxu0 0.0
    %844 = vmatpush1.msra.mxu0 0.0
    %845 = vmatprep.subr.mxu0 0.0
    %846 = vmatpush1.msra.mxu0 0.0
    %847 = vmatprep.subr.mxu0 0.0
    %848 = vmatpush1.msra.mxu0 0.0
    %849 = vmatprep.subr.mxu0 0.0
    %850 = vmatpush1.msra.mxu0 0.0
    %851 = vmatprep.subr.mxu0 0.0
    %852 = vmatpush1.msra.mxu0 0.0
    %853 = vmatprep.subr.mxu0 0.0
    %854 = vmatpush1.msra.mxu0 0.0
    %855 = vmatprep.subr.mxu0 0.0
    %856 = vmatpush1.msra.mxu0 0.0
    %857 = vmatprep.subr.mxu0 0.0
    %858 = vmatpush1.msra.mxu0 0.0
    %859 = vmatprep.subr.mxu0 0.0
    %860 = vmatpush1.msra.mxu0 0.0
    %861 = vmatprep.subr.mxu0 0.0
    %862 = vmatpush1.msra.mxu0 0.0
    %863 = vmatprep.subr.mxu0 0.0
    %864 = vmatpush1.msra.mxu0 0.0
    %865 = vmatprep.subr.mxu0 0.0
    %866 = vmatpush1.msra.mxu0 0.0
    %867 = vmatprep.subr.mxu0 0.0
    %868 = vmatpush1.msra.mxu0 0.0
    %869 = vmatprep.subr.mxu0 0.0
    %870 = vmatpush1.msra.mxu0 0.0
    %871 = vmatprep.mubr.f32.mxu0 0.0
    %872 = vmatmul.mubr.f32.gmra.mrb[0].mxu0 %v664
    %v873 = vpop.f32.mrb[0].mxu0
    %v874 = vadd.f32 0.0, %v873
    %v875 = vpop.f32.mrb[0].mxu0
    %v876 = vadd.f32 0.0, %v875
    %877 = vdwg.mxu0
    %878 = vmatprep.subr.mxu0 %v117
    %879 = vmatpush1.msra.mxu0 %v116
    %880 = vmatprep.subr.mxu0 %v121
    %881 = vmatpush1.msra.mxu0 %v120
    %882 = vmatprep.subr.mxu0 %v125
    %883 = vmatpush1.msra.mxu0 %v124
    %884 = vmatprep.subr.mxu0 %v129
    %885 = vmatpush1.msra.mxu0 %v128
    %886 = vmatprep.subr.mxu0 %v133
    %887 = vmatpush1.msra.mxu0 %v132
    %888 = vmatprep.subr.mxu0 %v137
    %889 = vmatpush1.msra.mxu0 %v136
    %890 = vmatprep.subr.mxu0 %v141
    %891 = vmatpush1.msra.mxu0 %v140
    %892 = vmatprep.subr.mxu0 %v145
    %893 = vmatpush1.msra.mxu0 %v144
    %894 = vmatprep.subr.mxu0 %v149
    %895 = vmatpush1.msra.mxu0 %v148
    %896 = vmatprep.subr.mxu0 %v153
    %897 = vmatpush1.msra.mxu0 %v152
    %898 = vmatprep.subr.mxu0 %v157
    %899 = vmatpush1.msra.mxu0 %v156
    %900 = vmatprep.subr.mxu0 %v161
    %901 = vmatpush1.msra.mxu0 %v160
    %902 = vmatprep.subr.mxu0 %v165
    %903 = vmatpush1.msra.mxu0 %v164
    %904 = vmatprep.subr.mxu0 %v169
    %905 = vmatpush1.msra.mxu0 %v168
    %906 = vmatprep.subr.mxu0 %v173
    %907 = vmatpush1.msra.mxu0 %v172
    %908 = vmatprep.subr.mxu0 %v177
    %909 = vmatpush1.msra.mxu0 %v176
    %910 = vmatprep.subr.mxu0 0.0
    %911 = vmatpush1.msra.mxu0 0.0
    %912 = vmatprep.subr.mxu0 0.0
    %913 = vmatpush1.msra.mxu0 0.0
    %914 = vmatprep.subr.mxu0 0.0
    %915 = vmatpush1.msra.mxu0 0.0
    %916 = vmatprep.subr.mxu0 0.0
    %917 = vmatpush1.msra.mxu0 0.0
    %918 = vmatprep.subr.mxu0 0.0
    %919 = vmatpush1.msra.mxu0 0.0
    %920 = vmatprep.subr.mxu0 0.0
    %921 = vmatpush1.msra.mxu0 0.0
    %922 = vmatprep.subr.mxu0 0.0
    %923 = vmatpush1.msra.mxu0 0.0
    %924 = vmatprep.subr.mxu0 0.0
    %925 = vmatpush1.msra.mxu0 0.0
    %926 = vmatprep.subr.mxu0 0.0
    %927 = vmatpush1.msra.mxu0 0.0
    %928 = vmatprep.subr.mxu0 0.0
    %929 = vmatpush1.msra.mxu0 0.0
    %930 = vmatprep.subr.mxu0 0.0
    %931 = vmatpush1.msra.mxu0 0.0
    %932 = vmatprep.subr.mxu0 0.0
    %933 = vmatpush1.msra.mxu0 0.0
    %934 = vmatprep.subr.mxu0 0.0
    %935 = vmatpush1.msra.mxu0 0.0
    %936 = vmatprep.subr.mxu0 0.0
    %937 = vmatpush1.msra.mxu0 0.0
    %938 = vmatprep.subr.mxu0 0.0
    %939 = vmatpush1.msra.mxu0 0.0
    %940 = vmatprep.subr.mxu0 0.0
    %941 = vmatpush1.msra.mxu0 0.0
    %942 = vmatprep.mubr.f32.mxu0 0.0
    %943 = vmatmul.mubr.f32.gmra.mrb[0].mxu0 %v664
    %v944 = vpop.f32.mrb[0].mxu0
    %v945 = vadd.f32 0.0, %v944
    %v946 = vpop.f32.mrb[0].mxu0
    %v947 = vadd.f32 0.0, %v946
    %948 = vdwg.mxu0
    %v949 = vadd.f32 %v732, %v874
    %v950 = vadd.f32 %v734, %v876
    %v951 = vadd.f32 %v803, %v945
    %v952 = vadd.f32 %v805, %v947
    %v953 = vxor.u32 %v949, 2147483648
    %v954 = vmul.f32 %v953, 1.442695
    %v955 = vpow.pop %v954
    %v956 = vadd.f32 %v955, 1.0
    %v957 = vrcp.pop %v956
    %v958 = vmul.f32 1.0, %v957
    %v959 = vxor.u32 %v950, 2147483648
    %v960 = vmul.f32 %v959, 1.442695
    %v961 = vpow.pop %v960
    %v962 = vadd.f32 %v961, 1.0
    %v963 = vrcp.pop %v962
    %v964 = vmul.f32 1.0, %v963
    %v965 = vtanh.pop %v951
    %v966 = vxor.u32 %v952, 2147483648
    %v967 = vmul.f32 %v966, 1.442695
    %v968 = vpow.pop %v967
    %v969 = vadd.f32 %v968, 1.0
    %v970 = vrcp.pop %v969
    %v971 = vmul.f32 1.0, %v970
    %v972 = vmul.f32 %v964, %v569
    %v973 = vmul.f32 %v958, %v965
    %v974 = vadd.f32 %v972, %v973
    %v975 = vtanh.pop %v974
    %v976 = vmul.f32 %v971, %v975
    %977 = vmatprep.subr.mxu0 0.0
    %978 = vmatpush1.msra.mxu0 %v243
    %979 = vmatprep.subr.mxu0 0.0
    %980 = vmatpush1.msra.mxu0 %v244
    %981 = vmatprep.subr.mxu0 0.0
    %982 = vmatpush1.msra.mxu0 %v245
    %983 = vmatprep.subr.mxu0 0.0
    %984 = vmatpush1.msra.mxu0 %v246
    %985 = vmatprep.subr.mxu0 0.0
    %986 = vmatpush1.msra.mxu0 %v247
    %987 = vmatprep.subr.mxu0 0.0
    %988 = vmatpush1.msra.mxu0 %v248
    %989 = vmatprep.subr.mxu0 0.0
    %990 = vmatpush1.msra.mxu0 %v249
    %991 = vmatprep.subr.mxu0 0.0
    %992 = vmatpush1.msra.mxu0 %v250
    %993 = vmatprep.subr.mxu0 0.0
    %994 = vmatpush1.msra.mxu0 %v251
    %995 = vmatprep.subr.mxu0 0.0
    %996 = vmatpush1.msra.mxu0 %v252
    %997 = vmatprep.subr.mxu0 0.0
    %998 = vmatpush1.msra.mxu0 %v253
    %999 = vmatprep.subr.mxu0 0.0
    %1000 = vmatpush1.msra.mxu0 %v254
    %1001 = vmatprep.subr.mxu0 0.0
    %1002 = vmatpush1.msra.mxu0 %v255
    %1003 = vmatprep.subr.mxu0 0.0
    %1004 = vmatpush1.msra.mxu0 %v256
    %1005 = vmatprep.subr.mxu0 0.0
    %1006 = vmatpush1.msra.mxu0 %v257
    %1007 = vmatprep.subr.mxu0 0.0
    %1008 = vmatpush1.msra.mxu0 %v258
    %1009 = vmatprep.subr.mxu0 0.0
    %1010 = vmatpush1.msra.mxu0 0.0
    %1011 = vmatprep.subr.mxu0 0.0
    %1012 = vmatpush1.msra.mxu0 0.0
    %1013 = vmatprep.subr.mxu0 0.0
    %1014 = vmatpush1.msra.mxu0 0.0
    %1015 = vmatprep.subr.mxu0 0.0
    %1016 = vmatpush1.msra.mxu0 0.0
    %1017 = vmatprep.subr.mxu0 0.0
    %1018 = vmatpush1.msra.mxu0 0.0
    %1019 = vmatprep.subr.mxu0 0.0
    %1020 = vmatpush1.msra.mxu0 0.0
    %1021 = vmatprep.subr.mxu0 0.0
    %1022 = vmatpush1.msra.mxu0 0.0
    %1023 = vmatprep.subr.mxu0 0.0
    %1024 = vmatpush1.msra.mxu0 0.0
    %1025 = vmatprep.subr.mxu0 0.0
    %1026 = vmatpush1.msra.mxu0 0.0
    %1027 = vmatprep.subr.mxu0 0.0
    %1028 = vmatpush1.msra.mxu0 0.0
    %1029 = vmatprep.subr.mxu0 0.0
    %1030 = vmatpush1.msra.mxu0 0.0
    %1031 = vmatprep.subr.mxu0 0.0
    %1032 = vmatpush1.msra.mxu0 0.0
    %1033 = vmatprep.subr.mxu0 0.0
    %1034 = vmatpush1.msra.mxu0 0.0
    %1035 = vmatprep.subr.mxu0 0.0
    %1036 = vmatpush1.msra.mxu0 0.0
    %1037 = vmatprep.subr.mxu0 0.0
    %1038 = vmatpush1.msra.mxu0 0.0
    %1039 = vmatprep.subr.mxu0 0.0
    %1040 = vmatpush1.msra.mxu0 0.0
    %1041 = vmatprep.mubr.f32.mxu0 0.0
    %1042 = vmatmul.mubr.f32.gmra.mrb[0].mxu0 %v976
    %v1043 = vpop.f32.mrb[0].mxu0
    %v1044 = vadd.f32 %v382, %v1043
    %v1045 = vpop.f32.mrb[0].mxu0
    %1046 = vdwg.mxu0
    %1047 = vadd.xlane.f32.xlu0 %v1044
    %v1048 = vpop.xlane.xlu0 %1047
    %v1049 = vmul.f32 %v1048, %v644
    %v1050 = vsub.f32 %v1044, %v1049
    %v1051 = vmul.f32 %v1050, %v1050
    %1052 = vadd.xlane.f32.xlu0 %v1051
    %v1053 = vpop.xlane.xlu0 %1052
    %v1054 = vmul.f32 %v1053, %v644
    %v1055 = vadd.f32 %v1054, 1e-05
    %v1056 = vrsqrt.pop %v1055
    %v1057 = vmul.f32 %v1050, %v1056
    %v1058 = vmul.f32 %v1057, %v657
    %v1059 = vadd.f32 %v1058, %v662
    %v1060 = vtanh.pop %v1059
    %1061 = vmatprep.subr.mxu0 %v179
    %1062 = vmatpush1.msra.mxu0 %v178
    %1063 = vmatprep.subr.mxu0 %v183
    %1064 = vmatpush1.msra.mxu0 %v182
    %1065 = vmatprep.subr.mxu0 %v187
    %1066 = vmatpush1.msra.mxu0 %v186
    %1067 = vmatprep.subr.mxu0 %v191
    %1068 = vmatpush1.msra.mxu0 %v190
    %1069 = vmatprep.subr.mxu0 %v195
    %1070 = vmatpush1.msra.mxu0 %v194
    %1071 = vmatprep.subr.mxu0 %v199
    %1072 = vmatpush1.msra.mxu0 %v198
    %1073 = vmatprep.subr.mxu0 %v203
    %1074 = vmatpush1.msra.mxu0 %v202
    %1075 = vmatprep.subr.mxu0 %v207
    %1076 = vmatpush1.msra.mxu0 %v206
    %1077 = vmatprep.subr.mxu0 %v211
    %1078 = vmatpush1.msra.mxu0 %v210
    %1079 = vmatprep.subr.mxu0 %v215
    %1080 = vmatpush1.msra.mxu0 %v214
    %1081 = vmatprep.subr.mxu0 %v219
    %1082 = vmatpush1.msra.mxu0 %v218
    %1083 = vmatprep.subr.mxu0 %v223
    %1084 = vmatpush1.msra.mxu0 %v222
    %1085 = vmatprep.subr.mxu0 %v227
    %1086 = vmatpush1.msra.mxu0 %v226
    %1087 = vmatprep.subr.mxu0 %v231
    %1088 = vmatpush1.msra.mxu0 %v230
    %1089 = vmatprep.subr.mxu0 %v235
    %1090 = vmatpush1.msra.mxu0 %v234
    %1091 = vmatprep.subr.mxu0 %v239
    %1092 = vmatpush1.msra.mxu0 %v238
    %1093 = vmatprep.subr.mxu0 0.0
    %1094 = vmatpush1.msra.mxu0 0.0
    %1095 = vmatprep.subr.mxu0 0.0
    %1096 = vmatpush1.msra.mxu0 0.0
    %1097 = vmatprep.subr.mxu0 0.0
    %1098 = vmatpush1.msra.mxu0 0.0
    %1099 = vmatprep.subr.mxu0 0.0
    %1100 = vmatpush1.msra.mxu0 0.0
    %1101 = vmatprep.subr.mxu0 0.0
    %1102 = vmatpush1.msra.mxu0 0.0
    %1103 = vmatprep.subr.mxu0 0.0
    %1104 = vmatpush1.msra.mxu0 0.0
    %1105 = vmatprep.subr.mxu0 0.0
    %1106 = vmatpush1.msra.mxu0 0.0
    %1107 = vmatprep.subr.mxu0 0.0
    %1108 = vmatpush1.msra.mxu0 0.0
    %1109 = vmatprep.subr.mxu0 0.0
    %1110 = vmatpush1.msra.mxu0 0.0
    %1111 = vmatprep.subr.mxu0 0.0
    %1112 = vmatpush1.msra.mxu0 0.0
    %1113 = vmatprep.subr.mxu0 0.0
    %1114 = vmatpush1.msra.mxu0 0.0
    %1115 = vmatprep.subr.mxu0 0.0
    %1116 = vmatpush1.msra.mxu0 0.0
    %1117 = vmatprep.subr.mxu0 0.0
    %1118 = vmatpush1.msra.mxu0 0.0
    %1119 = vmatprep.subr.mxu0 0.0
    %1120 = vmatpush1.msra.mxu0 0.0
    %1121 = vmatprep.subr.mxu0 0.0
    %1122 = vmatpush1.msra.mxu0 0.0
    %1123 = vmatprep.subr.mxu0 0.0
    %1124 = vmatpush1.msra.mxu0 0.0
    %1125 = vmatprep.mubr.f32.mxu0 0.0
    %1126 = vmatmul.mubr.f32.gmra.mrb[0].mxu0 %v976
    %v1127 = vpop.f32.mrb[0].mxu0
    %v1128 = vadd.f32 %v389, %v1127
    %v1129 = vpop.f32.mrb[0].mxu0
    %v1130 = vadd.f32 %v393, %v1129
    %1131 = vdwg.mxu0
    %1132 = vmatprep.subr.mxu0 %v181
    %1133 = vmatpush1.msra.mxu0 %v180
    %1134 = vmatprep.subr.mxu0 %v185
    %1135 = vmatpush1.msra.mxu0 %v184
    %1136 = vmatprep.subr.mxu0 %v189
    %1137 = vmatpush1.msra.mxu0 %v188
    %1138 = vmatprep.subr.mxu0 %v193
    %1139 = vmatpush1.msra.mxu0 %v192
    %1140 = vmatprep.subr.mxu0 %v197
    %1141 = vmatpush1.msra.mxu0 %v196
    %1142 = vmatprep.subr.mxu0 %v201
    %1143 = vmatpush1.msra.mxu0 %v200
    %1144 = vmatprep.subr.mxu0 %v205
    %1145 = vmatpush1.msra.mxu0 %v204
    %1146 = vmatprep.subr.mxu0 %v209
    %1147 = vmatpush1.msra.mxu0 %v208
    %1148 = vmatprep.subr.mxu0 %v213
    %1149 = vmatpush1.msra.mxu0 %v212
    %1150 = vmatprep.subr.mxu0 %v217
    %1151 = vmatpush1.msra.mxu0 %v216
    %1152 = vmatprep.subr.mxu0 %v221
    %1153 = vmatpush1.msra.mxu0 %v220
    %1154 = vmatprep.subr.mxu0 %v225
    %1155 = vmatpush1.msra.mxu0 %v224
    %1156 = vmatprep.subr.mxu0 %v229
    %1157 = vmatpush1.msra.mxu0 %v228
    %1158 = vmatprep.subr.mxu0 %v233
    %1159 = vmatpush1.msra.mxu0 %v232
    %1160 = vmatprep.subr.mxu0 %v237
    %1161 = vmatpush1.msra.mxu0 %v236
    %1162 = vmatprep.subr.mxu0 %v241
    %1163 = vmatpush1.msra.mxu0 %v240
    %1164 = vmatprep.subr.mxu0 0.0
    %1165 = vmatpush1.msra.mxu0 0.0
    %1166 = vmatprep.subr.mxu0 0.0
    %1167 = vmatpush1.msra.mxu0 0.0
    %1168 = vmatprep.subr.mxu0 0.0
    %1169 = vmatpush1.msra.mxu0 0.0
    %1170 = vmatprep.subr.mxu0 0.0
    %1171 = vmatpush1.msra.mxu0 0.0
    %1172 = vmatprep.subr.mxu0 0.0
    %1173 = vmatpush1.msra.mxu0 0.0
    %1174 = vmatprep.subr.mxu0 0.0
    %1175 = vmatpush1.msra.mxu0 0.0
    %1176 = vmatprep.subr.mxu0 0.0
    %1177 = vmatpush1.msra.mxu0 0.0
    %1178 = vmatprep.subr.mxu0 0.0
    %1179 = vmatpush1.msra.mxu0 0.0
    %1180 = vmatprep.subr.mxu0 0.0
    %1181 = vmatpush1.msra.mxu0 0.0
    %1182 = vmatprep.subr.mxu0 0.0
    %1183 = vmatpush1.msra.mxu0 0.0
    %1184 = vmatprep.subr.mxu0 0.0
    %1185 = vmatpush1.msra.mxu0 0.0
    %1186 = vmatprep.subr.mxu0 0.0
    %1187 = vmatpush1.msra.mxu0 0.0
    %1188 = vmatprep.subr.mxu0 0.0
    %1189 = vmatpush1.msra.mxu0 0.0
    %1190 = vmatprep.subr.mxu0 0.0
    %1191 = vmatpush1.msra.mxu0 0.0
    %1192 = vmatprep.subr.mxu0 0.0
    %1193 = vmatpush1.msra.mxu0 0.0
    %1194 = vmatprep.subr.mxu0 0.0
    %1195 = vmatpush1.msra.mxu0 0.0
    %1196 = vmatprep.mubr.f32.mxu0 0.0
    %1197 = vmatmul.mubr.f32.gmra.mrb[0].mxu0 %v976
    %v1198 = vpop.f32.mrb[0].mxu0
    %v1199 = vadd.f32 %v397, %v1198
    %v1200 = vpop.f32.mrb[0].mxu0
    %v1201 = vadd.f32 %v401, %v1200
    %1202 = vdwg.mxu0
    %1203 = vmatprep.subr.mxu0 %v115
    %1204 = vmatpush1.msra.mxu0 %v114
    %1205 = vmatprep.subr.mxu0 %v119
    %1206 = vmatpush1.msra.mxu0 %v118
    %1207 = vmatprep.subr.mxu0 %v123
    %1208 = vmatpush1.msra.mxu0 %v122
    %1209 = vmatprep.subr.mxu0 %v127
    %1210 = vmatpush1.msra.mxu0 %v126
    %1211 = vmatprep.subr.mxu0 %v131
    %1212 = vmatpush1.msra.mxu0 %v130
    %1213 = vmatprep.subr.mxu0 %v135
    %1214 = vmatpush1.msra.mxu0 %v134
    %1215 = vmatprep.subr.mxu0 %v139
    %1216 = vmatpush1.msra.mxu0 %v138
    %1217 = vmatprep.subr.mxu0 %v143
    %1218 = vmatpush1.msra.mxu0 %v142
    %1219 = vmatprep.subr.mxu0 %v147
    %1220 = vmatpush1.msra.mxu0 %v146
    %1221 = vmatprep.subr.mxu0 %v151
    %1222 = vmatpush1.msra.mxu0 %v150
    %1223 = vmatprep.subr.mxu0 %v155
    %1224 = vmatpush1.msra.mxu0 %v154
    %1225 = vmatprep.subr.mxu0 %v159
    %1226 = vmatpush1.msra.mxu0 %v158
    %1227 = vmatprep.subr.mxu0 %v163
    %1228 = vmatpush1.msra.mxu0 %v162
    %1229 = vmatprep.subr.mxu0 %v167
    %1230 = vmatpush1.msra.mxu0 %v166
    %1231 = vmatprep.subr.mxu0 %v171
    %1232 = vmatpush1.msra.mxu0 %v170
    %1233 = vmatprep.subr.mxu0 %v175
    %1234 = vmatpush1.msra.mxu0 %v174
    %1235 = vmatprep.subr.mxu0 0.0
    %1236 = vmatpush1.msra.mxu0 0.0
    %1237 = vmatprep.subr.mxu0 0.0
    %1238 = vmatpush1.msra.mxu0 0.0
    %1239 = vmatprep.subr.mxu0 0.0
    %1240 = vmatpush1.msra.mxu0 0.0
    %1241 = vmatprep.subr.mxu0 0.0
    %1242 = vmatpush1.msra.mxu0 0.0
    %1243 = vmatprep.subr.mxu0 0.0
    %1244 = vmatpush1.msra.mxu0 0.0
    %1245 = vmatprep.subr.mxu0 0.0
    %1246 = vmatpush1.msra.mxu0 0.0
    %1247 = vmatprep.subr.mxu0 0.0
    %1248 = vmatpush1.msra.mxu0 0.0
    %1249 = vmatprep.subr.mxu0 0.0
    %1250 = vmatpush1.msra.mxu0 0.0
    %1251 = vmatprep.subr.mxu0 0.0
    %1252 = vmatpush1.msra.mxu0 0.0
    %1253 = vmatprep.subr.mxu0 0.0
    %1254 = vmatpush1.msra.mxu0 0.0
    %1255 = vmatprep.subr.mxu0 0.0
    %1256 = vmatpush1.msra.mxu0 0.0
    %1257 = vmatprep.subr.mxu0 0.0
    %1258 = vmatpush1.msra.mxu0 0.0
    %1259 = vmatprep.subr.mxu0 0.0
    %1260 = vmatpush1.msra.mxu0 0.0
    %1261 = vmatprep.subr.mxu0 0.0
    %1262 = vmatpush1.msra.mxu0 0.0
    %1263 = vmatprep.subr.mxu0 0.0
    %1264 = vmatpush1.msra.mxu0 0.0
    %1265 = vmatprep.subr.mxu0 0.0
    %1266 = vmatpush1.msra.mxu0 0.0
    %1267 = vmatprep.mubr.f32.mxu0 0.0
    %1268 = vmatmul.mubr.f32.gmra.mrb[0].mxu0 %v1060
    %v1269 = vpop.f32.mrb[0].mxu0
    %v1270 = vadd.f32 0.0, %v1269
    %v1271 = vpop.f32.mrb[0].mxu0
    %v1272 = vadd.f32 0.0, %v1271
    %1273 = vdwg.mxu0
    %1274 = vmatprep.subr.mxu0 %v117
    %1275 = vmatpush1.msra.mxu0 %v116
    %1276 = vmatprep.subr.mxu0 %v121
    %1277 = vmatpush1.msra.mxu0 %v120
    %1278 = vmatprep.subr.mxu0 %v125
    %1279 = vmatpush1.msra.mxu0 %v124
    %1280 = vmatprep.subr.mxu0 %v129
    %1281 = vmatpush1.msra.mxu0 %v128
    %1282 = vmatprep.subr.mxu0 %v133
    %1283 = vmatpush1.msra.mxu0 %v132
    %1284 = vmatprep.subr.mxu0 %v137
    %1285 = vmatpush1.msra.mxu0 %v136
    %1286 = vmatprep.subr.mxu0 %v141
    %1287 = vmatpush1.msra.mxu0 %v140
    %1288 = vmatprep.subr.mxu0 %v145
    %1289 = vmatpush1.msra.mxu0 %v144
    %1290 = vmatprep.subr.mxu0 %v149
    %1291 = vmatpush1.msra.mxu0 %v148
    %1292 = vmatprep.subr.mxu0 %v153
    %1293 = vmatpush1.msra.mxu0 %v152
    %1294 = vmatprep.subr.mxu0 %v157
    %1295 = vmatpush1.msra.mxu0 %v156
    %1296 = vmatprep.subr.mxu0 %v161
    %1297 = vmatpush1.msra.mxu0 %v160
    %1298 = vmatprep.subr.mxu0 %v165
    %1299 = vmatpush1.msra.mxu0 %v164
    %1300 = vmatprep.subr.mxu0 %v169
    %1301 = vmatpush1.msra.mxu0 %v168
    %1302 = vmatprep.subr.mxu0 %v173
    %1303 = vmatpush1.msra.mxu0 %v172
    %1304 = vmatprep.subr.mxu0 %v177
    %1305 = vmatpush1.msra.mxu0 %v176
    %1306 = vmatprep.subr.mxu0 0.0
    %1307 = vmatpush1.msra.mxu0 0.0
    %1308 = vmatprep.subr.mxu0 0.0
    %1309 = vmatpush1.msra.mxu0 0.0
    %1310 = vmatprep.subr.mxu0 0.0
    %1311 = vmatpush1.msra.mxu0 0.0
    %1312 = vmatprep.subr.mxu0 0.0
    %1313 = vmatpush1.msra.mxu0 0.0
    %1314 = vmatprep.subr.mxu0 0.0
    %1315 = vmatpush1.msra.mxu0 0.0
    %1316 = vmatprep.subr.mxu0 0.0
    %1317 = vmatpush1.msra.mxu0 0.0
    %1318 = vmatprep.subr.mxu0 0.0
    %1319 = vmatpush1.msra.mxu0 0.0
    %1320 = vmatprep.subr.mxu0 0.0
    %1321 = vmatpush1.msra.mxu0 0.0
    %1322 = vmatprep.subr.mxu0 0.0
    %1323 = vmatpush1.msra.mxu0 0.0
    %1324 = vmatprep.subr.mxu0 0.0
    %1325 = vmatpush1.msra.mxu0 0.0
    %1326 = vmatprep.subr.mxu0 0.0
    %1327 = vmatpush1.msra.mxu0 0.0
    %1328 = vmatprep.subr.mxu0 0.0
    %1329 = vmatpush1.msra.mxu0 0.0
    %1330 = vmatprep.subr.mxu0 0.0
    %1331 = vmatpush1.msra.mxu0 0.0
    %1332 = vmatprep.subr.mxu0 0.0
    %1333 = vmatpush1.msra.mxu0 0.0
    %1334 = vmatprep.subr.mxu0 0.0
    %1335 = vmatpush1.msra.mxu0 0.0
    %1336 = vmatprep.subr.mxu0 0.0
    %1337 = vmatpush1.msra.mxu0 0.0
    %1338 = vmatprep.mubr.f32.mxu0 0.0
    %1339 = vmatmul.mubr.f32.gmra.mrb[0].mxu0 %v1060
    %v1340 = vpop.f32.mrb[0].mxu0
    %v1341 = vadd.f32 0.0, %v1340
    %v1342 = vpop.f32.mrb[0].mxu0
    %v1343 = vadd.f32 0.0, %v1342
    %1344 = vdwg.mxu0
    %v1345 = vadd.f32 %v1128, %v1270
    %v1346 = vadd.f32 %v1130, %v1272
    %v1347 = vadd.f32 %v1199, %v1341
    %v1348 = vadd.f32 %v1201, %v1343
    %v1349 = vxor.u32 %v1345, 2147483648
    %v1350 = vmul.f32 %v1349, 1.442695
    %v1351 = vpow.pop %v1350
    %v1352 = vadd.f32 %v1351, 1.0
    %v1353 = vrcp.pop %v1352
    %v1354 = vmul.f32 1.0, %v1353
    %v1355 = vxor.u32 %v1346, 2147483648
    %v1356 = vmul.f32 %v1355, 1.442695
    %v1357 = vpow.pop %v1356
    %v1358 = vadd.f32 %v1357, 1.0
    %v1359 = vrcp.pop %v1358
    %v1360 = vmul.f32 1.0, %v1359
    %v1361 = vtanh.pop %v1347
    %v1362 = vxor.u32 %v1348, 2147483648
    %v1363 = vmul.f32 %v1362, 1.442695
    %v1364 = vpow.pop %v1363
    %v1365 = vadd.f32 %v1364, 1.0
    %v1366 = vrcp.pop %v1365
    %v1367 = vmul.f32 1.0, %v1366
    %v1368 = vmul.f32 %v1360, %v974
    %v1369 = vmul.f32 %v1354, %v1361
    %v1370 = vadd.f32 %v1368, %v1369
    %v1371 = vtanh.pop %v1370
    %v1372 = vmul.f32 %v1367, %v1371
    %1373 = vmatprep.subr.mxu0 0.0
    %1374 = vmatpush1.msra.mxu0 %v243
    %1375 = vmatprep.subr.mxu0 0.0
    %1376 = vmatpush1.msra.mxu0 %v244
    %1377 = vmatprep.subr.mxu0 0.0
    %1378 = vmatpush1.msra.mxu0 %v245
    %1379 = vmatprep.subr.mxu0 0.0
    %1380 = vmatpush1.msra.mxu0 %v246
    %1381 = vmatprep.subr.mxu0 0.0
    %1382 = vmatpush1.msra.mxu0 %v247
    %1383 = vmatprep.subr.mxu0 0.0
    %1384 = vmatpush1.msra.mxu0 %v248
    %1385 = vmatprep.subr.mxu0 0.0
    %1386 = vmatpush1.msra.mxu0 %v249
    %1387 = vmatprep.subr.mxu0 0.0
    %1388 = vmatpush1.msra.mxu0 %v250
    %1389 = vmatprep.subr.mxu0 0.0
    %1390 = vmatpush1.msra.mxu0 %v251
    %1391 = vmatprep.subr.mxu0 0.0
    %1392 = vmatpush1.msra.mxu0 %v252
    %1393 = vmatprep.subr.mxu0 0.0
    %1394 = vmatpush1.msra.mxu0 %v253
    %1395 = vmatprep.subr.mxu0 0.0
    %1396 = vmatpush1.msra.mxu0 %v254
    %1397 = vmatprep.subr.mxu0 0.0
    %1398 = vmatpush1.msra.mxu0 %v255
    %1399 = vmatprep.subr.mxu0 0.0
    %1400 = vmatpush1.msra.mxu0 %v256
    %1401 = vmatprep.subr.mxu0 0.0
    %1402 = vmatpush1.msra.mxu0 %v257
    %1403 = vmatprep.subr.mxu0 0.0
    %1404 = vmatpush1.msra.mxu0 %v258
    %1405 = vmatprep.subr.mxu0 0.0
    %1406 = vmatpush1.msra.mxu0 0.0
    %1407 = vmatprep.subr.mxu0 0.0
    %1408 = vmatpush1.msra.mxu0 0.0
    %1409 = vmatprep.subr.mxu0 0.0
    %1410 = vmatpush1.msra.mxu0 0.0
    %1411 = vmatprep.subr.mxu0 0.0
    %1412 = vmatpush1.msra.mxu0 0.0
    %1413 = vmatprep.subr.mxu0 0.0
    %1414 = vmatpush1.msra.mxu0 0.0
    %1415 = vmatprep.subr.mxu0 0.0
    %1416 = vmatpush1.msra.mxu0 0.0
    %1417 = vmatprep.subr.mxu0 0.0
    %1418 = vmatpush1.msra.mxu0 0.0
    %1419 = vmatprep.subr.mxu0 0.0
    %1420 = vmatpush1.msra.mxu0 0.0
    %1421 = vmatprep.subr.mxu0 0.0
    %1422 = vmatpush1.msra.mxu0 0.0
    %1423 = vmatprep.subr.mxu0 0.0
    %1424 = vmatpush1.msra.mxu0 0.0
    %1425 = vmatprep.subr.mxu0 0.0
    %1426 = vmatpush1.msra.mxu0 0.0
    %1427 = vmatprep.subr.mxu0 0.0
    %1428 = vmatpush1.msra.mxu0 0.0
    %1429 = vmatprep.subr.mxu0 0.0
    %1430 = vmatpush1.msra.mxu0 0.0
    %1431 = vmatprep.subr.mxu0 0.0
    %1432 = vmatpush1.msra.mxu0 0.0
    %1433 = vmatprep.subr.mxu0 0.0
    %1434 = vmatpush1.msra.mxu0 0.0
    %1435 = vmatprep.subr.mxu0 0.0
    %1436 = vmatpush1.msra.mxu0 0.0
    %1437 = vmatprep.mubr.f32.mxu0 0.0
    %1438 = vmatmul.mubr.f32.gmra.mrb[0].mxu0 %v1372
    %v1439 = vpop.f32.mrb[0].mxu0
    %v1440 = vadd.f32 %v382, %v1439
    %v1441 = vpop.f32.mrb[0].mxu0
    %1442 = vdwg.mxu0
    %1443 = vadd.xlane.f32.xlu0 %v1440
    %v1444 = vpop.xlane.xlu0 %1443
    %v1445 = vmul.f32 %v1444, %v644
    %v1446 = vsub.f32 %v1440, %v1445
    %v1447 = vmul.f32 %v1446, %v1446
    %1448 = vadd.xlane.f32.xlu0 %v1447
    %v1449 = vpop.xlane.xlu0 %1448
    %v1450 = vmul.f32 %v1449, %v644
    %v1451 = vadd.f32 %v1450, 1e-05
    %v1452 = vrsqrt.pop %v1451
    %v1453 = vmul.f32 %v1446, %v1452
    %v1454 = vmul.f32 %v1453, %v657
    %v1455 = vadd.f32 %v1454, %v662
    %v1456 = vtanh.pop %v1455
    %1457 = vmatprep.subr.mxu0 %v179
    %1458 = vmatpush1.msra.mxu0 %v178
    %1459 = vmatprep.subr.mxu0 %v183
    %1460 = vmatpush1.msra.mxu0 %v182
    %1461 = vmatprep.subr.mxu0 %v187
    %1462 = vmatpush1.msra.mxu0 %v186
    %1463 = vmatprep.subr.mxu0 %v191
    %1464 = vmatpush1.msra.mxu0 %v190
    %1465 = vmatprep.subr.mxu0 %v195
    %1466 = vmatpush1.msra.mxu0 %v194
    %1467 = vmatprep.subr.mxu0 %v199
    %1468 = vmatpush1.msra.mxu0 %v198
    %1469 = vmatprep.subr.mxu0 %v203
    %1470 = vmatpush1.msra.mxu0 %v202
    %1471 = vmatprep.subr.mxu0 %v207
    %1472 = vmatpush1.msra.mxu0 %v206
    %1473 = vmatprep.subr.mxu0 %v211
    %1474 = vmatpush1.msra.mxu0 %v210
    %1475 = vmatprep.subr.mxu0 %v215
    %1476 = vmatpush1.msra.mxu0 %v214
    %1477 = vmatprep.subr.mxu0 %v219
    %1478 = vmatpush1.msra.mxu0 %v218
    %1479 = vmatprep.subr.mxu0 %v223
    %1480 = vmatpush1.msra.mxu0 %v222
    %1481 = vmatprep.subr.mxu0 %v227
    %1482 = vmatpush1.msra.mxu0 %v226
    %1483 = vmatprep.subr.mxu0 %v231
    %1484 = vmatpush1.msra.mxu0 %v230
    %1485 = vmatprep.subr.mxu0 %v235
    %1486 = vmatpush1.msra.mxu0 %v234
    %1487 = vmatprep.subr.mxu0 %v239
    %1488 = vmatpush1.msra.mxu0 %v238
    %1489 = vmatprep.subr.mxu0 0.0
    %1490 = vmatpush1.msra.mxu0 0.0
    %1491 = vmatprep.subr.mxu0 0.0
    %1492 = vmatpush1.msra.mxu0 0.0
    %1493 = vmatprep.subr.mxu0 0.0
    %1494 = vmatpush1.msra.mxu0 0.0
    %1495 = vmatprep.subr.mxu0 0.0
    %1496 = vmatpush1.msra.mxu0 0.0
    %1497 = vmatprep.subr.mxu0 0.0
    %1498 = vmatpush1.msra.mxu0 0.0
    %1499 = vmatprep.subr.mxu0 0.0
    %1500 = vmatpush1.msra.mxu0 0.0
    %1501 = vmatprep.subr.mxu0 0.0
    %1502 = vmatpush1.msra.mxu0 0.0
    %1503 = vmatprep.subr.mxu0 0.0
    %1504 = vmatpush1.msra.mxu0 0.0
    %1505 = vmatprep.subr.mxu0 0.0
    %1506 = vmatpush1.msra.mxu0 0.0
    %1507 = vmatprep.subr.mxu0 0.0
    %1508 = vmatpush1.msra.mxu0 0.0
    %1509 = vmatprep.subr.mxu0 0.0
    %1510 = vmatpush1.msra.mxu0 0.0
    %1511 = vmatprep.subr.mxu0 0.0
    %1512 = vmatpush1.msra.mxu0 0.0
    %1513 = vmatprep.subr.mxu0 0.0
    %1514 = vmatpush1.msra.mxu0 0.0
    %1515 = vmatprep.subr.mxu0 0.0
    %1516 = vmatpush1.msra.mxu0 0.0
    %1517 = vmatprep.subr.mxu0 0.0
    %1518 = vmatpush1.msra.mxu0 0.0
    %1519 = vmatprep.subr.mxu0 0.0
    %1520 = vmatpush1.msra.mxu0 0.0
    %1521 = vmatprep.mubr.f32.mxu0 0.0
    %1522 = vmatmul.mubr.f32.gmra.mrb[0].mxu0 %v1372
    %v1523 = vpop.f32.mrb[0].mxu0
    %v1524 = vadd.f32 %v389, %v1523
    %v1525 = vpop.f32.mrb[0].mxu0
    %v1526 = vadd.f32 %v393, %v1525
    %1527 = vdwg.mxu0
    %1528 = vmatprep.subr.mxu0 %v181
    %1529 = vmatpush1.msra.mxu0 %v180
    %1530 = vmatprep.subr.mxu0 %v185
    %1531 = vmatpush1.msra.mxu0 %v184
    %1532 = vmatprep.subr.mxu0 %v189
    %1533 = vmatpush1.msra.mxu0 %v188
    %1534 = vmatprep.subr.mxu0 %v193
    %1535 = vmatpush1.msra.mxu0 %v192
    %1536 = vmatprep.subr.mxu0 %v197
    %1537 = vmatpush1.msra.mxu0 %v196
    %1538 = vmatprep.subr.mxu0 %v201
    %1539 = vmatpush1.msra.mxu0 %v200
    %1540 = vmatprep.subr.mxu0 %v205
    %1541 = vmatpush1.msra.mxu0 %v204
    %1542 = vmatprep.subr.mxu0 %v209
    %1543 = vmatpush1.msra.mxu0 %v208
    %1544 = vmatprep.subr.mxu0 %v213
    %1545 = vmatpush1.msra.mxu0 %v212
    %1546 = vmatprep.subr.mxu0 %v217
    %1547 = vmatpush1.msra.mxu0 %v216
    %1548 = vmatprep.subr.mxu0 %v221
    %1549 = vmatpush1.msra.mxu0 %v220
    %1550 = vmatprep.subr.mxu0 %v225
    %1551 = vmatpush1.msra.mxu0 %v224
    %1552 = vmatprep.subr.mxu0 %v229
    %1553 = vmatpush1.msra.mxu0 %v228
    %1554 = vmatprep.subr.mxu0 %v233
    %1555 = vmatpush1.msra.mxu0 %v232
    %1556 = vmatprep.subr.mxu0 %v237
    %1557 = vmatpush1.msra.mxu0 %v236
    %1558 = vmatprep.subr.mxu0 %v241
    %1559 = vmatpush1.msra.mxu0 %v240
    %1560 = vmatprep.subr.mxu0 0.0
    %1561 = vmatpush1.msra.mxu0 0.0
    %1562 = vmatprep.subr.mxu0 0.0
    %1563 = vmatpush1.msra.mxu0 0.0
    %1564 = vmatprep.subr.mxu0 0.0
    %1565 = vmatpush1.msra.mxu0 0.0
    %1566 = vmatprep.subr.mxu0 0.0
    %1567 = vmatpush1.msra.mxu0 0.0
    %1568 = vmatprep.subr.mxu0 0.0
    %1569 = vmatpush1.msra.mxu0 0.0
    %1570 = vmatprep.subr.mxu0 0.0
    %1571 = vmatpush1.msra.mxu0 0.0
    %1572 = vmatprep.subr.mxu0 0.0
    %1573 = vmatpush1.msra.mxu0 0.0
    %1574 = vmatprep.subr.mxu0 0.0
    %1575 = vmatpush1.msra.mxu0 0.0
    %1576 = vmatprep.subr.mxu0 0.0
    %1577 = vmatpush1.msra.mxu0 0.0
    %1578 = vmatprep.subr.mxu0 0.0
    %1579 = vmatpush1.msra.mxu0 0.0
    %1580 = vmatprep.subr.mxu0 0.0
    %1581 = vmatpush1.msra.mxu0 0.0
    %1582 = vmatprep.subr.mxu0 0.0
    %1583 = vmatpush1.msra.mxu0 0.0
    %1584 = vmatprep.subr.mxu0 0.0
    %1585 = vmatpush1.msra.mxu0 0.0
    %1586 = vmatprep.subr.mxu0 0.0
    %1587 = vmatpush1.msra.mxu0 0.0
    %1588 = vmatprep.subr.mxu0 0.0
    %1589 = vmatpush1.msra.mxu0 0.0
    %1590 = vmatprep.subr.mxu0 0.0
    %1591 = vmatpush1.msra.mxu0 0.0
    %1592 = vmatprep.mubr.f32.mxu0 0.0
    %1593 = vmatmul.mubr.f32.gmra.mrb[0].mxu0 %v1372
    %v1594 = vpop.f32.mrb[0].mxu0
    %v1595 = vadd.f32 %v397, %v1594
    %v1596 = vpop.f32.mrb[0].mxu0
    %v1597 = vadd.f32 %v401, %v1596
    %1598 = vdwg.mxu0
    %1599 = vmatprep.subr.mxu0 %v115
    %1600 = vmatpush1.msra.mxu0 %v114
    %1601 = vmatprep.subr.mxu0 %v119
    %1602 = vmatpush1.msra.mxu0 %v118
    %1603 = vmatprep.subr.mxu0 %v123
    %1604 = vmatpush1.msra.mxu0 %v122
    %1605 = vmatprep.subr.mxu0 %v127
    %1606 = vmatpush1.msra.mxu0 %v126
    %1607 = vmatprep.subr.mxu0 %v131
    %1608 = vmatpush1.msra.mxu0 %v130
    %1609 = vmatprep.subr.mxu0 %v135
    %1610 = vmatpush1.msra.mxu0 %v134
    %1611 = vmatprep.subr.mxu0 %v139
    %1612 = vmatpush1.msra.mxu0 %v138
    %1613 = vmatprep.subr.mxu0 %v143
    %1614 = vmatpush1.msra.mxu0 %v142
    %1615 = vmatprep.subr.mxu0 %v147
    %1616 = vmatpush1.msra.mxu0 %v146
    %1617 = vmatprep.subr.mxu0 %v151
    %1618 = vmatpush1.msra.mxu0 %v150
    %1619 = vmatprep.subr.mxu0 %v155
    %1620 = vmatpush1.msra.mxu0 %v154
    %1621 = vmatprep.subr.mxu0 %v159
    %1622 = vmatpush1.msra.mxu0 %v158
    %1623 = vmatprep.subr.mxu0 %v163
    %1624 = vmatpush1.msra.mxu0 %v162
    %1625 = vmatprep.subr.mxu0 %v167
    %1626 = vmatpush1.msra.mxu0 %v166
    %1627 = vmatprep.subr.mxu0 %v171
    %1628 = vmatpush1.msra.mxu0 %v170
    %1629 = vmatprep.subr.mxu0 %v175
    %1630 = vmatpush1.msra.mxu0 %v174
    %1631 = vmatprep.subr.mxu0 0.0
    %1632 = vmatpush1.msra.mxu0 0.0
    %1633 = vmatprep.subr.mxu0 0.0
    %1634 = vmatpush1.msra.mxu0 0.0
    %1635 = vmatprep.subr.mxu0 0.0
    %1636 = vmatpush1.msra.mxu0 0.0
    %1637 = vmatprep.subr.mxu0 0.0
    %1638 = vmatpush1.msra.mxu0 0.0
    %1639 = vmatprep.subr.mxu0 0.0
    %1640 = vmatpush1.msra.mxu0 0.0
    %1641 = vmatprep.subr.mxu0 0.0
    %1642 = vmatpush1.msra.mxu0 0.0
    %1643 = vmatprep.subr.mxu0 0.0
    %1644 = vmatpush1.msra.mxu0 0.0
    %1645 = vmatprep.subr.mxu0 0.0
    %1646 = vmatpush1.msra.mxu0 0.0
    %1647 = vmatprep.subr.mxu0 0.0
    %1648 = vmatpush1.msra.mxu0 0.0
    %1649 = vmatprep.subr.mxu0 0.0
    %1650 = vmatpush1.msra.mxu0 0.0
    %1651 = vmatprep.subr.mxu0 0.0
    %1652 = vmatpush1.msra.mxu0 0.0
    %1653 = vmatprep.subr.mxu0 0.0
    %1654 = vmatpush1.msra.mxu0 0.0
    %1655 = vmatprep.subr.mxu0 0.0
    %1656 = vmatpush1.msra.mxu0 0.0
    %1657 = vmatprep.subr.mxu0 0.0
    %1658 = vmatpush1.msra.mxu0 0.0
    %1659 = vmatprep.subr.mxu0 0.0
    %1660 = vmatpush1.msra.mxu0 0.0
    %1661 = vmatprep.subr.mxu0 0.0
    %1662 = vmatpush1.msra.mxu0 0.0
    %1663 = vmatprep.mubr.f32.mxu0 0.0
    %1664 = vmatmul.mubr.f32.gmra.mrb[0].mxu0 %v1456
    %v1665 = vpop.f32.mrb[0].mxu0
    %v1666 = vadd.f32 0.0, %v1665
    %v1667 = vpop.f32.mrb[0].mxu0
    %v1668 = vadd.f32 0.0, %v1667
    %1669 = vdwg.mxu0
    %1670 = vmatprep.subr.mxu0 %v117
    %1671 = vmatpush1.msra.mxu0 %v116
    %1672 = vmatprep.subr.mxu0 %v121
    %1673 = vmatpush1.msra.mxu0 %v120
    %1674 = vmatprep.subr.mxu0 %v125
    %1675 = vmatpush1.msra.mxu0 %v124
    %1676 = vmatprep.subr.mxu0 %v129
    %1677 = vmatpush1.msra.mxu0 %v128
    %1678 = vmatprep.subr.mxu0 %v133
    %1679 = vmatpush1.msra.mxu0 %v132
    %1680 = vmatprep.subr.mxu0 %v137
    %1681 = vmatpush1.msra.mxu0 %v136
    %1682 = vmatprep.subr.mxu0 %v141
    %1683 = vmatpush1.msra.mxu0 %v140
    %1684 = vmatprep.subr.mxu0 %v145
    %1685 = vmatpush1.msra.mxu0 %v144
    %1686 = vmatprep.subr.mxu0 %v149
    %1687 = vmatpush1.msra.mxu0 %v148
    %1688 = vmatprep.subr.mxu0 %v153
    %1689 = vmatpush1.msra.mxu0 %v152
    %1690 = vmatprep.subr.mxu0 %v157
    %1691 = vmatpush1.msra.mxu0 %v156
    %1692 = vmatprep.subr.mxu0 %v161
    %1693 = vmatpush1.msra.mxu0 %v160
    %1694 = vmatprep.subr.mxu0 %v165
    %1695 = vmatpush1.msra.mxu0 %v164
    %1696 = vmatprep.subr.mxu0 %v169
    %1697 = vmatpush1.msra.mxu0 %v168
    %1698 = vmatprep.subr.mxu0 %v173
    %1699 = vmatpush1.msra.mxu0 %v172
    %1700 = vmatprep.subr.mxu0 %v177
    %1701 = vmatpush1.msra.mxu0 %v176
    %1702 = vmatprep.subr.mxu0 0.0
    %1703 = vmatpush1.msra.mxu0 0.0
    %1704 = vmatprep.subr.mxu0 0.0
    %1705 = vmatpush1.msra.mxu0 0.0
    %1706 = vmatprep.subr.mxu0 0.0
    %1707 = vmatpush1.msra.mxu0 0.0
    %1708 = vmatprep.subr.mxu0 0.0
    %1709 = vmatpush1.msra.mxu0 0.0
    %1710 = vmatprep.subr.mxu0 0.0
    %1711 = vmatpush1.msra.mxu0 0.0
    %1712 = vmatprep.subr.mxu0 0.0
    %1713 = vmatpush1.msra.mxu0 0.0
    %1714 = vmatprep.subr.mxu0 0.0
    %1715 = vmatpush1.msra.mxu0 0.0
    %1716 = vmatprep.subr.mxu0 0.0
    %1717 = vmatpush1.msra.mxu0 0.0
    %1718 = vmatprep.subr.mxu0 0.0
    %1719 = vmatpush1.msra.mxu0 0.0
    %1720 = vmatprep.subr.mxu0 0.0
    %1721 = vmatpush1.msra.mxu0 0.0
    %1722 = vmatprep.subr.mxu0 0.0
    %1723 = vmatpush1.msra.mxu0 0.0
    %1724 = vmatprep.subr.mxu0 0.0
    %1725 = vmatpush1.msra.mxu0 0.0
    %1726 = vmatprep.subr.mxu0 0.0
    %1727 = vmatpush1.msra.mxu0 0.0
    %1728 = vmatprep.subr.mxu0 0.0
    %1729 = vmatpush1.msra.mxu0 0.0
    %1730 = vmatprep.subr.mxu0 0.0
    %1731 = vmatpush1.msra.mxu0 0.0
    %1732 = vmatprep.subr.mxu0 0.0
    %1733 = vmatpush1.msra.mxu0 0.0
    %1734 = vmatprep.mubr.f32.mxu0 0.0
    %1735 = vmatmul.mubr.f32.gmra.mrb[0].mxu0 %v1456
    %v1736 = vpop.f32.mrb[0].mxu0
    %v1737 = vadd.f32 0.0, %v1736
    %v1738 = vpop.f32.mrb[0].mxu0
    %v1739 = vadd.f32 0.0, %v1738
    %1740 = vdwg.mxu0
    %v1741 = vadd.f32 %v1524, %v1666
    %v1742 = vadd.f32 %v1526, %v1668
    %v1743 = vadd.f32 %v1595, %v1737
    %v1744 = vadd.f32 %v1597, %v1739
    %v1745 = vxor.u32 %v1741, 2147483648
    %v1746 = vmul.f32 %v1745, 1.442695
    %v1747 = vpow.pop %v1746
    %v1748 = vadd.f32 %v1747, 1.0
    %v1749 = vrcp.pop %v1748
    %v1750 = vmul.f32 1.0, %v1749
    %v1751 = vxor.u32 %v1742, 2147483648
    %v1752 = vmul.f32 %v1751, 1.442695
    %v1753 = vpow.pop %v1752
    %v1754 = vadd.f32 %v1753, 1.0
    %v1755 = vrcp.pop %v1754
    %v1756 = vmul.f32 1.0, %v1755
    %v1757 = vtanh.pop %v1743
    %v1758 = vxor.u32 %v1744, 2147483648
    %v1759 = vmul.f32 %v1758, 1.442695
    %v1760 = vpow.pop %v1759
    %v1761 = vadd.f32 %v1760, 1.0
    %v1762 = vrcp.pop %v1761
    %v1763 = vmul.f32 1.0, %v1762
    %v1764 = vmul.f32 %v1756, %v1370
    %v1765 = vmul.f32 %v1750, %v1757
    %v1766 = vadd.f32 %v1764, %v1765
    %v1767 = vtanh.pop %v1766
    %v1768 = vmul.f32 %v1763, %v1767
    %1769 = vmatprep.subr.mxu0 0.0
    %1770 = vmatpush1.msra.mxu0 %v243
    %1771 = vmatprep.subr.mxu0 0.0
    %1772 = vmatpush1.msra.mxu0 %v244
    %1773 = vmatprep.subr.mxu0 0.0
    %1774 = vmatpush1.msra.mxu0 %v245
    %1775 = vmatprep.subr.mxu0 0.0
    %1776 = vmatpush1.msra.mxu0 %v246
    %1777 = vmatprep.subr.mxu0 0.0
    %1778 = vmatpush1.msra.mxu0 %v247
    %1779 = vmatprep.subr.mxu0 0.0
    %1780 = vmatpush1.msra.mxu0 %v248
    %1781 = vmatprep.subr.mxu0 0.0
    %1782 = vmatpush1.msra.mxu0 %v249
    %1783 = vmatprep.subr.mxu0 0.0
    %1784 = vmatpush1.msra.mxu0 %v250
    %1785 = vmatprep.subr.mxu0 0.0
    %1786 = vmatpush1.msra.mxu0 %v251
    %1787 = vmatprep.subr.mxu0 0.0
    %1788 = vmatpush1.msra.mxu0 %v252
    %1789 = vmatprep.subr.mxu0 0.0
    %1790 = vmatpush1.msra.mxu0 %v253
    %1791 = vmatprep.subr.mxu0 0.0
    %1792 = vmatpush1.msra.mxu0 %v254
    %1793 = vmatprep.subr.mxu0 0.0
    %1794 = vmatpush1.msra.mxu0 %v255
    %1795 = vmatprep.subr.mxu0 0.0
    %1796 = vmatpush1.msra.mxu0 %v256
    %1797 = vmatprep.subr.mxu0 0.0
    %1798 = vmatpush1.msra.mxu0 %v257
    %1799 = vmatprep.subr.mxu0 0.0
    %1800 = vmatpush1.msra.mxu0 %v258
    %1801 = vmatprep.subr.mxu0 0.0
    %1802 = vmatpush1.msra.mxu0 0.0
    %1803 = vmatprep.subr.mxu0 0.0
    %1804 = vmatpush1.msra.mxu0 0.0
    %1805 = vmatprep.subr.mxu0 0.0
    %1806 = vmatpush1.msra.mxu0 0.0
    %1807 = vmatprep.subr.mxu0 0.0
    %1808 = vmatpush1.msra.mxu0 0.0
    %1809 = vmatprep.subr.mxu0 0.0
    %1810 = vmatpush1.msra.mxu0 0.0
    %1811 = vmatprep.subr.mxu0 0.0
    %1812 = vmatpush1.msra.mxu0 0.0
    %1813 = vmatprep.subr.mxu0 0.0
    %1814 = vmatpush1.msra.mxu0 0.0
    %1815 = vmatprep.subr.mxu0 0.0
    %1816 = vmatpush1.msra.mxu0 0.0
    %1817 = vmatprep.subr.mxu0 0.0
    %1818 = vmatpush1.msra.mxu0 0.0
    %1819 = vmatprep.subr.mxu0 0.0
    %1820 = vmatpush1.msra.mxu0 0.0
    %1821 = vmatprep.subr.mxu0 0.0
    %1822 = vmatpush1.msra.mxu0 0.0
    %1823 = vmatprep.subr.mxu0 0.0
    %1824 = vmatpush1.msra.mxu0 0.0
    %1825 = vmatprep.subr.mxu0 0.0
    %1826 = vmatpush1.msra.mxu0 0.0
    %1827 = vmatprep.subr.mxu0 0.0
    %1828 = vmatpush1.msra.mxu0 0.0
    %1829 = vmatprep.subr.mxu0 0.0
    %1830 = vmatpush1.msra.mxu0 0.0
    %1831 = vmatprep.subr.mxu0 0.0
    %1832 = vmatpush1.msra.mxu0 0.0
    %1833 = vmatprep.mubr.f32.mxu0 0.0
    %1834 = vmatmul.mubr.f32.gmra.mrb[0].mxu0 %v1768
    %v1835 = vpop.f32.mrb[0].mxu0
    %v1836 = vadd.f32 %v382, %v1835
    %v1837 = vpop.f32.mrb[0].mxu0
    %1838 = vdwg.mxu0
    %1839 = vadd.xlane.f32.xlu0 %v1836
    %v1840 = vpop.xlane.xlu0 %1839
    %v1841 = vmul.f32 %v1840, %v644
    %v1842 = vsub.f32 %v1836, %v1841
    %v1843 = vmul.f32 %v1842, %v1842
    %1844 = vadd.xlane.f32.xlu0 %v1843
    %v1845 = vpop.xlane.xlu0 %1844
    %v1846 = vmul.f32 %v1845, %v644
    %v1847 = vadd.f32 %v1846, 1e-05
    %v1848 = vrsqrt.pop %v1847
    %v1849 = vmul.f32 %v1842, %v1848
    %v1850 = vmul.f32 %v1849, %v657
    %v1851 = vadd.f32 %v1850, %v662
    %v1852 = vtanh.pop %v1851
    %1853 = vmatprep.subr.mxu0 %v179
    %1854 = vmatpush1.msra.mxu0 %v178
    %1855 = vmatprep.subr.mxu0 %v183
    %1856 = vmatpush1.msra.mxu0 %v182
    %1857 = vmatprep.subr.mxu0 %v187
    %1858 = vmatpush1.msra.mxu0 %v186
    %1859 = vmatprep.subr.mxu0 %v191
    %1860 = vmatpush1.msra.mxu0 %v190
    %1861 = vmatprep.subr.mxu0 %v195
    %1862 = vmatpush1.msra.mxu0 %v194
    %1863 = vmatprep.subr.mxu0 %v199
    %1864 = vmatpush1.msra.mxu0 %v198
    %1865 = vmatprep.subr.mxu0 %v203
    %1866 = vmatpush1.msra.mxu0 %v202
    %1867 = vmatprep.subr.mxu0 %v207
    %1868 = vmatpush1.msra.mxu0 %v206
    %1869 = vmatprep.subr.mxu0 %v211
    %1870 = vmatpush1.msra.mxu0 %v210
    %1871 = vmatprep.subr.mxu0 %v215
    %1872 = vmatpush1.msra.mxu0 %v214
    %1873 = vmatprep.subr.mxu0 %v219
    %1874 = vmatpush1.msra.mxu0 %v218
    %1875 = vmatprep.subr.mxu0 %v223
    %1876 = vmatpush1.msra.mxu0 %v222
    %1877 = vmatprep.subr.mxu0 %v227
    %1878 = vmatpush1.msra.mxu0 %v226
    %1879 = vmatprep.subr.mxu0 %v231
    %1880 = vmatpush1.msra.mxu0 %v230
    %1881 = vmatprep.subr.mxu0 %v235
    %1882 = vmatpush1.msra.mxu0 %v234
    %1883 = vmatprep.subr.mxu0 %v239
    %1884 = vmatpush1.msra.mxu0 %v238
    %1885 = vmatprep.subr.mxu0 0.0
    %1886 = vmatpush1.msra.mxu0 0.0
    %1887 = vmatprep.subr.mxu0 0.0
    %1888 = vmatpush1.msra.mxu0 0.0
    %1889 = vmatprep.subr.mxu0 0.0
    %1890 = vmatpush1.msra.mxu0 0.0
    %1891 = vmatprep.subr.mxu0 0.0
    %1892 = vmatpush1.msra.mxu0 0.0
    %1893 = vmatprep.subr.mxu0 0.0
    %1894 = vmatpush1.msra.mxu0 0.0
    %1895 = vmatprep.subr.mxu0 0.0
    %1896 = vmatpush1.msra.mxu0 0.0
    %1897 = vmatprep.subr.mxu0 0.0
    %1898 = vmatpush1.msra.mxu0 0.0
    %1899 = vmatprep.subr.mxu0 0.0
    %1900 = vmatpush1.msra.mxu0 0.0
    %1901 = vmatprep.subr.mxu0 0.0
    %1902 = vmatpush1.msra.mxu0 0.0
    %1903 = vmatprep.subr.mxu0 0.0
    %1904 = vmatpush1.msra.mxu0 0.0
    %1905 = vmatprep.subr.mxu0 0.0
    %1906 = vmatpush1.msra.mxu0 0.0
    %1907 = vmatprep.subr.mxu0 0.0
    %1908 = vmatpush1.msra.mxu0 0.0
    %1909 = vmatprep.subr.mxu0 0.0
    %1910 = vmatpush1.msra.mxu0 0.0
    %1911 = vmatprep.subr.mxu0 0.0
    %1912 = vmatpush1.msra.mxu0 0.0
    %1913 = vmatprep.subr.mxu0 0.0
    %1914 = vmatpush1.msra.mxu0 0.0
    %1915 = vmatprep.subr.mxu0 0.0
    %1916 = vmatpush1.msra.mxu0 0.0
    %1917 = vmatprep.mubr.f32.mxu0 0.0
    %1918 = vmatmul.mubr.f32.gmra.mrb[0].mxu0 %v1768
    %v1919 = vpop.f32.mrb[0].mxu0
    %v1920 = vadd.f32 %v389, %v1919
    %v1921 = vpop.f32.mrb[0].mxu0
    %v1922 = vadd.f32 %v393, %v1921
    %1923 = vdwg.mxu0
    %1924 = vmatprep.subr.mxu0 %v181
    %1925 = vmatpush1.msra.mxu0 %v180
    %1926 = vmatprep.subr.mxu0 %v185
    %1927 = vmatpush1.msra.mxu0 %v184
    %1928 = vmatprep.subr.mxu0 %v189
    %1929 = vmatpush1.msra.mxu0 %v188
    %1930 = vmatprep.subr.mxu0 %v193
    %1931 = vmatpush1.msra.mxu0 %v192
    %1932 = vmatprep.subr.mxu0 %v197
    %1933 = vmatpush1.msra.mxu0 %v196
    %1934 = vmatprep.subr.mxu0 %v201
    %1935 = vmatpush1.msra.mxu0 %v200
    %1936 = vmatprep.subr.mxu0 %v205
    %1937 = vmatpush1.msra.mxu0 %v204
    %1938 = vmatprep.subr.mxu0 %v209
    %1939 = vmatpush1.msra.mxu0 %v208
    %1940 = vmatprep.subr.mxu0 %v213
    %1941 = vmatpush1.msra.mxu0 %v212
    %1942 = vmatprep.subr.mxu0 %v217
    %1943 = vmatpush1.msra.mxu0 %v216
    %1944 = vmatprep.subr.mxu0 %v221
    %1945 = vmatpush1.msra.mxu0 %v220
    %1946 = vmatprep.subr.mxu0 %v225
    %1947 = vmatpush1.msra.mxu0 %v224
    %1948 = vmatprep.subr.mxu0 %v229
    %1949 = vmatpush1.msra.mxu0 %v228
    %1950 = vmatprep.subr.mxu0 %v233
    %1951 = vmatpush1.msra.mxu0 %v232
    %1952 = vmatprep.subr.mxu0 %v237
    %1953 = vmatpush1.msra.mxu0 %v236
    %1954 = vmatprep.subr.mxu0 %v241
    %1955 = vmatpush1.msra.mxu0 %v240
    %1956 = vmatprep.subr.mxu0 0.0
    %1957 = vmatpush1.msra.mxu0 0.0
    %1958 = vmatprep.subr.mxu0 0.0
    %1959 = vmatpush1.msra.mxu0 0.0
    %1960 = vmatprep.subr.mxu0 0.0
    %1961 = vmatpush1.msra.mxu0 0.0
    %1962 = vmatprep.subr.mxu0 0.0
    %1963 = vmatpush1.msra.mxu0 0.0
    %1964 = vmatprep.subr.mxu0 0.0
    %1965 = vmatpush1.msra.mxu0 0.0
    %1966 = vmatprep.subr.mxu0 0.0
    %1967 = vmatpush1.msra.mxu0 0.0
    %1968 = vmatprep.subr.mxu0 0.0
    %1969 = vmatpush1.msra.mxu0 0.0
    %1970 = vmatprep.subr.mxu0 0.0
    %1971 = vmatpush1.msra.mxu0 0.0
    %1972 = vmatprep.subr.mxu0 0.0
    %1973 = vmatpush1.msra.mxu0 0.0
    %1974 = vmatprep.subr.mxu0 0.0
    %1975 = vmatpush1.msra.mxu0 0.0
    %1976 = vmatprep.subr.mxu0 0.0
    %1977 = vmatpush1.msra.mxu0 0.0
    %1978 = vmatprep.subr.mxu0 0.0
    %1979 = vmatpush1.msra.mxu0 0.0
    %1980 = vmatprep.subr.mxu0 0.0
    %1981 = vmatpush1.msra.mxu0 0.0
    %1982 = vmatprep.subr.mxu0 0.0
    %1983 = vmatpush1.msra.mxu0 0.0
    %1984 = vmatprep.subr.mxu0 0.0
    %1985 = vmatpush1.msra.mxu0 0.0
    %1986 = vmatprep.subr.mxu0 0.0
    %1987 = vmatpush1.msra.mxu0 0.0
    %1988 = vmatprep.mubr.f32.mxu0 0.0
    %1989 = vmatmul.mubr.f32.gmra.mrb[0].mxu0 %v1768
    %v1990 = vpop.f32.mrb[0].mxu0
    %v1991 = vadd.f32 %v397, %v1990
    %v1992 = vpop.f32.mrb[0].mxu0
    %v1993 = vadd.f32 %v401, %v1992
    %1994 = vdwg.mxu0
    %1995 = vmatprep.subr.mxu0 %v115
    %1996 = vmatpush1.msra.mxu0 %v114
    %1997 = vmatprep.subr.mxu0 %v119
    %1998 = vmatpush1.msra.mxu0 %v118
    %1999 = vmatprep.subr.mxu0 %v123
    %2000 = vmatpush1.msra.mxu0 %v122
    %2001 = vmatprep.subr.mxu0 %v127
    %2002 = vmatpush1.msra.mxu0 %v126
    %2003 = vmatprep.subr.mxu0 %v131
    %2004 = vmatpush1.msra.mxu0 %v130
    %2005 = vmatprep.subr.mxu0 %v135
    %2006 = vmatpush1.msra.mxu0 %v134
    %2007 = vmatprep.subr.mxu0 %v139
    %2008 = vmatpush1.msra.mxu0 %v138
    %2009 = vmatprep.subr.mxu0 %v143
    %2010 = vmatpush1.msra.mxu0 %v142
    %2011 = vmatprep.subr.mxu0 %v147
    %2012 = vmatpush1.msra.mxu0 %v146
    %2013 = vmatprep.subr.mxu0 %v151
    %2014 = vmatpush1.msra.mxu0 %v150
    %2015 = vmatprep.subr.mxu0 %v155
    %2016 = vmatpush1.msra.mxu0 %v154
    %2017 = vmatprep.subr.mxu0 %v159
    %2018 = vmatpush1.msra.mxu0 %v158
    %2019 = vmatprep.subr.mxu0 %v163
    %2020 = vmatpush1.msra.mxu0 %v162
    %2021 = vmatprep.subr.mxu0 %v167
    %2022 = vmatpush1.msra.mxu0 %v166
    %2023 = vmatprep.subr.mxu0 %v171
    %2024 = vmatpush1.msra.mxu0 %v170
    %2025 = vmatprep.subr.mxu0 %v175
    %2026 = vmatpush1.msra.mxu0 %v174
    %2027 = vmatprep.subr.mxu0 0.0
    %2028 = vmatpush1.msra.mxu0 0.0
    %2029 = vmatprep.subr.mxu0 0.0
    %2030 = vmatpush1.msra.mxu0 0.0
    %2031 = vmatprep.subr.mxu0 0.0
    %2032 = vmatpush1.msra.mxu0 0.0
    %2033 = vmatprep.subr.mxu0 0.0
    %2034 = vmatpush1.msra.mxu0 0.0
    %2035 = vmatprep.subr.mxu0 0.0
    %2036 = vmatpush1.msra.mxu0 0.0
    %2037 = vmatprep.subr.mxu0 0.0
    %2038 = vmatpush1.msra.mxu0 0.0
    %2039 = vmatprep.subr.mxu0 0.0
    %2040 = vmatpush1.msra.mxu0 0.0
    %2041 = vmatprep.subr.mxu0 0.0
    %2042 = vmatpush1.msra.mxu0 0.0
    %2043 = vmatprep.subr.mxu0 0.0
    %2044 = vmatpush1.msra.mxu0 0.0
    %2045 = vmatprep.subr.mxu0 0.0
    %2046 = vmatpush1.msra.mxu0 0.0
    %2047 = vmatprep.subr.mxu0 0.0
    %2048 = vmatpush1.msra.mxu0 0.0
    %2049 = vmatprep.subr.mxu0 0.0
    %2050 = vmatpush1.msra.mxu0 0.0
    %2051 = vmatprep.subr.mxu0 0.0
    %2052 = vmatpush1.msra.mxu0 0.0
    %2053 = vmatprep.subr.mxu0 0.0
    %2054 = vmatpush1.msra.mxu0 0.0
    %2055 = vmatprep.subr.mxu0 0.0
    %2056 = vmatpush1.msra.mxu0 0.0
    %2057 = vmatprep.subr.mxu0 0.0
    %2058 = vmatpush1.msra.mxu0 0.0
    %2059 = vmatprep.mubr.f32.mxu0 0.0
    %2060 = vmatmul.mubr.f32.gmra.mrb[0].mxu0 %v1852
    %v2061 = vpop.f32.mrb[0].mxu0
    %v2062 = vadd.f32 0.0, %v2061
    %v2063 = vpop.f32.mrb[0].mxu0
    %v2064 = vadd.f32 0.0, %v2063
    %2065 = vdwg.mxu0
    %2066 = vmatprep.subr.mxu0 %v117
    %2067 = vmatpush1.msra.mxu0 %v116
    %2068 = vmatprep.subr.mxu0 %v121
    %2069 = vmatpush1.msra.mxu0 %v120
    %2070 = vmatprep.subr.mxu0 %v125
    %2071 = vmatpush1.msra.mxu0 %v124
    %2072 = vmatprep.subr.mxu0 %v129
    %2073 = vmatpush1.msra.mxu0 %v128
    %2074 = vmatprep.subr.mxu0 %v133
    %2075 = vmatpush1.msra.mxu0 %v132
    %2076 = vmatprep.subr.mxu0 %v137
    %2077 = vmatpush1.msra.mxu0 %v136
    %2078 = vmatprep.subr.mxu0 %v141
    %2079 = vmatpush1.msra.mxu0 %v140
    %2080 = vmatprep.subr.mxu0 %v145
    %2081 = vmatpush1.msra.mxu0 %v144
    %2082 = vmatprep.subr.mxu0 %v149
    %2083 = vmatpush1.msra.mxu0 %v148
    %2084 = vmatprep.subr.mxu0 %v153
    %2085 = vmatpush1.msra.mxu0 %v152
    %2086 = vmatprep.subr.mxu0 %v157
    %2087 = vmatpush1.msra.mxu0 %v156
    %2088 = vmatprep.subr.mxu0 %v161
    %2089 = vmatpush1.msra.mxu0 %v160
    %2090 = vmatprep.subr.mxu0 %v165
    %2091 = vmatpush1.msra.mxu0 %v164
    %2092 = vmatprep.subr.mxu0 %v169
    %2093 = vmatpush1.msra.mxu0 %v168
    %2094 = vmatprep.subr.mxu0 %v173
    %2095 = vmatpush1.msra.mxu0 %v172
    %2096 = vmatprep.subr.mxu0 %v177
    %2097 = vmatpush1.msra.mxu0 %v176
    %2098 = vmatprep.subr.mxu0 0.0
    %2099 = vmatpush1.msra.mxu0 0.0
    %2100 = vmatprep.subr.mxu0 0.0
    %2101 = vmatpush1.msra.mxu0 0.0
    %2102 = vmatprep.subr.mxu0 0.0
    %2103 = vmatpush1.msra.mxu0 0.0
    %2104 = vmatprep.subr.mxu0 0.0
    %2105 = vmatpush1.msra.mxu0 0.0
    %2106 = vmatprep.subr.mxu0 0.0
    %2107 = vmatpush1.msra.mxu0 0.0
    %2108 = vmatprep.subr.mxu0 0.0
    %2109 = vmatpush1.msra.mxu0 0.0
    %2110 = vmatprep.subr.mxu0 0.0
    %2111 = vmatpush1.msra.mxu0 0.0
    %2112 = vmatprep.subr.mxu0 0.0
    %2113 = vmatpush1.msra.mxu0 0.0
    %2114 = vmatprep.subr.mxu0 0.0
    %2115 = vmatpush1.msra.mxu0 0.0
    %2116 = vmatprep.subr.mxu0 0.0
    %2117 = vmatpush1.msra.mxu0 0.0
    %2118 = vmatprep.subr.mxu0 0.0
    %2119 = vmatpush1.msra.mxu0 0.0
    %2120 = vmatprep.subr.mxu0 0.0
    %2121 = vmatpush1.msra.mxu0 0.0
    %2122 = vmatprep.subr.mxu0 0.0
    %2123 = vmatpush1.msra.mxu0 0.0
    %2124 = vmatprep.subr.mxu0 0.0
    %2125 = vmatpush1.msra.mxu0 0.0
    %2126 = vmatprep.subr.mxu0 0.0
    %2127 = vmatpush1.msra.mxu0 0.0
    %2128 = vmatprep.subr.mxu0 0.0
    %2129 = vmatpush1.msra.mxu0 0.0
    %2130 = vmatprep.mubr.f32.mxu0 0.0
    %2131 = vmatmul.mubr.f32.gmra.mrb[0].mxu0 %v1852
    %v2132 = vpop.f32.mrb[0].mxu0
    %v2133 = vadd.f32 0.0, %v2132
    %v2134 = vpop.f32.mrb[0].mxu0
    %v2135 = vadd.f32 0.0, %v2134
    %2136 = vdwg.mxu0
    %v2137 = vadd.f32 %v1920, %v2062
    %v2138 = vadd.f32 %v1922, %v2064
    %v2139 = vadd.f32 %v1991, %v2133
    %v2140 = vadd.f32 %v1993, %v2135
    %v2141 = vxor.u32 %v2137, 2147483648
    %v2142 = vmul.f32 %v2141, 1.442695
    %v2143 = vpow.pop %v2142
    %v2144 = vadd.f32 %v2143, 1.0
    %v2145 = vrcp.pop %v2144
    %v2146 = vmul.f32 1.0, %v2145
    %v2147 = vxor.u32 %v2138, 2147483648
    %v2148 = vmul.f32 %v2147, 1.442695
    %v2149 = vpow.pop %v2148
    %v2150 = vadd.f32 %v2149, 1.0
    %v2151 = vrcp.pop %v2150
    %v2152 = vmul.f32 1.0, %v2151
    %v2153 = vtanh.pop %v2139
    %v2154 = vxor.u32 %v2140, 2147483648
    %v2155 = vmul.f32 %v2154, 1.442695
    %v2156 = vpow.pop %v2155
    %v2157 = vadd.f32 %v2156, 1.0
    %v2158 = vrcp.pop %v2157
    %v2159 = vmul.f32 1.0, %v2158
    %v2160 = vmul.f32 %v2152, %v1766
    %v2161 = vmul.f32 %v2146, %v2153
    %v2162 = vadd.f32 %v2160, %v2161
    %v2163 = vtanh.pop %v2162
    %v2164 = vmul.f32 %v2159, %v2163
    %2165 = vmatprep.subr.mxu0 0.0
    %2166 = vmatpush1.msra.mxu0 %v243
    %2167 = vmatprep.subr.mxu0 0.0
    %2168 = vmatpush1.msra.mxu0 %v244
    %2169 = vmatprep.subr.mxu0 0.0
    %2170 = vmatpush1.msra.mxu0 %v245
    %2171 = vmatprep.subr.mxu0 0.0
    %2172 = vmatpush1.msra.mxu0 %v246
    %2173 = vmatprep.subr.mxu0 0.0
    %2174 = vmatpush1.msra.mxu0 %v247
    %2175 = vmatprep.subr.mxu0 0.0
    %2176 = vmatpush1.msra.mxu0 %v248
    %2177 = vmatprep.subr.mxu0 0.0
    %2178 = vmatpush1.msra.mxu0 %v249
    %2179 = vmatprep.subr.mxu0 0.0
    %2180 = vmatpush1.msra.mxu0 %v250
    %2181 = vmatprep.subr.mxu0 0.0
    %2182 = vmatpush1.msra.mxu0 %v251
    %2183 = vmatprep.subr.mxu0 0.0
    %2184 = vmatpush1.msra.mxu0 %v252
    %2185 = vmatprep.subr.mxu0 0.0
    %2186 = vmatpush1.msra.mxu0 %v253
    %2187 = vmatprep.subr.mxu0 0.0
    %2188 = vmatpush1.msra.mxu0 %v254
    %2189 = vmatprep.subr.mxu0 0.0
    %2190 = vmatpush1.msra.mxu0 %v255
    %2191 = vmatprep.subr.mxu0 0.0
    %2192 = vmatpush1.msra.mxu0 %v256
    %2193 = vmatprep.subr.mxu0 0.0
    %2194 = vmatpush1.msra.mxu0 %v257
    %2195 = vmatprep.subr.mxu0 0.0
    %2196 = vmatpush1.msra.mxu0 %v258
    %2197 = vmatprep.subr.mxu0 0.0
    %2198 = vmatpush1.msra.mxu0 0.0
    %2199 = vmatprep.subr.mxu0 0.0
    %2200 = vmatpush1.msra.mxu0 0.0
    %2201 = vmatprep.subr.mxu0 0.0
    %2202 = vmatpush1.msra.mxu0 0.0
    %2203 = vmatprep.subr.mxu0 0.0
    %2204 = vmatpush1.msra.mxu0 0.0
    %2205 = vmatprep.subr.mxu0 0.0
    %2206 = vmatpush1.msra.mxu0 0.0
    %2207 = vmatprep.subr.mxu0 0.0
    %2208 = vmatpush1.msra.mxu0 0.0
    %2209 = vmatprep.subr.mxu0 0.0
    %2210 = vmatpush1.msra.mxu0 0.0
    %2211 = vmatprep.subr.mxu0 0.0
    %2212 = vmatpush1.msra.mxu0 0.0
    %2213 = vmatprep.subr.mxu0 0.0
    %2214 = vmatpush1.msra.mxu0 0.0
    %2215 = vmatprep.subr.mxu0 0.0
    %2216 = vmatpush1.msra.mxu0 0.0
    %2217 = vmatprep.subr.mxu0 0.0
    %2218 = vmatpush1.msra.mxu0 0.0
    %2219 = vmatprep.subr.mxu0 0.0
    %2220 = vmatpush1.msra.mxu0 0.0
    %2221 = vmatprep.subr.mxu0 0.0
    %2222 = vmatpush1.msra.mxu0 0.0
    %2223 = vmatprep.subr.mxu0 0.0
    %2224 = vmatpush1.msra.mxu0 0.0
    %2225 = vmatprep.subr.mxu0 0.0
    %2226 = vmatpush1.msra.mxu0 0.0
    %2227 = vmatprep.subr.mxu0 0.0
    %2228 = vmatpush1.msra.mxu0 0.0
    %2229 = vmatprep.mubr.f32.mxu0 0.0
    %2230 = vmatmul.mubr.f32.gmra.mrb[0].mxu0 %v2164
    %v2231 = vpop.f32.mrb[0].mxu0
    %v2232 = vadd.f32 %v382, %v2231
    %v2233 = vpop.f32.mrb[0].mxu0
    %2234 = vdwg.mxu0
    %2235 = vadd.xlane.f32.xlu0 %v2232
    %v2236 = vpop.xlane.xlu0 %2235
    %v2237 = vmul.f32 %v2236, %v644
    %v2238 = vsub.f32 %v2232, %v2237
    %v2239 = vmul.f32 %v2238, %v2238
    %2240 = vadd.xlane.f32.xlu0 %v2239
    %v2241 = vpop.xlane.xlu0 %2240
    %v2242 = vmul.f32 %v2241, %v644
    %v2243 = vadd.f32 %v2242, 1e-05
    %v2244 = vrsqrt.pop %v2243
    %v2245 = vmul.f32 %v2238, %v2244
    %v2246 = vmul.f32 %v2245, %v657
    %v2247 = vadd.f32 %v2246, %v662
    %v2248 = vtanh.pop %v2247
    %2249 = vmatprep.subr.mxu0 %v179
    %2250 = vmatpush1.msra.mxu0 %v178
    %2251 = vmatprep.subr.mxu0 %v183
    %2252 = vmatpush1.msra.mxu0 %v182
    %2253 = vmatprep.subr.mxu0 %v187
    %2254 = vmatpush1.msra.mxu0 %v186
    %2255 = vmatprep.subr.mxu0 %v191
    %2256 = vmatpush1.msra.mxu0 %v190
    %2257 = vmatprep.subr.mxu0 %v195
    %2258 = vmatpush1.msra.mxu0 %v194
    %2259 = vmatprep.subr.mxu0 %v199
    %2260 = vmatpush1.msra.mxu0 %v198
    %2261 = vmatprep.subr.mxu0 %v203
    %2262 = vmatpush1.msra.mxu0 %v202
    %2263 = vmatprep.subr.mxu0 %v207
    %2264 = vmatpush1.msra.mxu0 %v206
    %2265 = vmatprep.subr.mxu0 %v211
    %2266 = vmatpush1.msra.mxu0 %v210
    %2267 = vmatprep.subr.mxu0 %v215
    %2268 = vmatpush1.msra.mxu0 %v214
    %2269 = vmatprep.subr.mxu0 %v219
    %2270 = vmatpush1.msra.mxu0 %v218
    %2271 = vmatprep.subr.mxu0 %v223
    %2272 = vmatpush1.msra.mxu0 %v222
    %2273 = vmatprep.subr.mxu0 %v227
    %2274 = vmatpush1.msra.mxu0 %v226
    %2275 = vmatprep.subr.mxu0 %v231
    %2276 = vmatpush1.msra.mxu0 %v230
    %2277 = vmatprep.subr.mxu0 %v235
    %2278 = vmatpush1.msra.mxu0 %v234
    %2279 = vmatprep.subr.mxu0 %v239
    %2280 = vmatpush1.msra.mxu0 %v238
    %2281 = vmatprep.subr.mxu0 0.0
    %2282 = vmatpush1.msra.mxu0 0.0
    %2283 = vmatprep.subr.mxu0 0.0
    %2284 = vmatpush1.msra.mxu0 0.0
    %2285 = vmatprep.subr.mxu0 0.0
    %2286 = vmatpush1.msra.mxu0 0.0
    %2287 = vmatprep.subr.mxu0 0.0
    %2288 = vmatpush1.msra.mxu0 0.0
    %2289 = vmatprep.subr.mxu0 0.0
    %2290 = vmatpush1.msra.mxu0 0.0
    %2291 = vmatprep.subr.mxu0 0.0
    %2292 = vmatpush1.msra.mxu0 0.0
    %2293 = vmatprep.subr.mxu0 0.0
    %2294 = vmatpush1.msra.mxu0 0.0
    %2295 = vmatprep.subr.mxu0 0.0
    %2296 = vmatpush1.msra.mxu0 0.0
    %2297 = vmatprep.subr.mxu0 0.0
    %2298 = vmatpush1.msra.mxu0 0.0
    %2299 = vmatprep.subr.mxu0 0.0
    %2300 = vmatpush1.msra.mxu0 0.0
    %2301 = vmatprep.subr.mxu0 0.0
    %2302 = vmatpush1.msra.mxu0 0.0
    %2303 = vmatprep.subr.mxu0 0.0
    %2304 = vmatpush1.msra.mxu0 0.0
    %2305 = vmatprep.subr.mxu0 0.0
    %2306 = vmatpush1.msra.mxu0 0.0
    %2307 = vmatprep.subr.mxu0 0.0
    %2308 = vmatpush1.msra.mxu0 0.0
    %2309 = vmatprep.subr.mxu0 0.0
    %2310 = vmatpush1.msra.mxu0 0.0
    %2311 = vmatprep.subr.mxu0 0.0
    %2312 = vmatpush1.msra.mxu0 0.0
    %2313 = vmatprep.mubr.f32.mxu0 0.0
    %2314 = vmatmul.mubr.f32.gmra.mrb[0].mxu0 %v2164
    %v2315 = vpop.f32.mrb[0].mxu0
    %v2316 = vadd.f32 %v389, %v2315
    %v2317 = vpop.f32.mrb[0].mxu0
    %v2318 = vadd.f32 %v393, %v2317
    %2319 = vdwg.mxu0
    %2320 = vmatprep.subr.mxu0 %v181
    %2321 = vmatpush1.msra.mxu0 %v180
    %2322 = vmatprep.subr.mxu0 %v185
    %2323 = vmatpush1.msra.mxu0 %v184
    %2324 = vmatprep.subr.mxu0 %v189
    %2325 = vmatpush1.msra.mxu0 %v188
    %2326 = vmatprep.subr.mxu0 %v193
    %2327 = vmatpush1.msra.mxu0 %v192
    %2328 = vmatprep.subr.mxu0 %v197
    %2329 = vmatpush1.msra.mxu0 %v196
    %2330 = vmatprep.subr.mxu0 %v201
    %2331 = vmatpush1.msra.mxu0 %v200
    %2332 = vmatprep.subr.mxu0 %v205
    %2333 = vmatpush1.msra.mxu0 %v204
    %2334 = vmatprep.subr.mxu0 %v209
    %2335 = vmatpush1.msra.mxu0 %v208
    %2336 = vmatprep.subr.mxu0 %v213
    %2337 = vmatpush1.msra.mxu0 %v212
    %2338 = vmatprep.subr.mxu0 %v217
    %2339 = vmatpush1.msra.mxu0 %v216
    %2340 = vmatprep.subr.mxu0 %v221
    %2341 = vmatpush1.msra.mxu0 %v220
    %2342 = vmatprep.subr.mxu0 %v225
    %2343 = vmatpush1.msra.mxu0 %v224
    %2344 = vmatprep.subr.mxu0 %v229
    %2345 = vmatpush1.msra.mxu0 %v228
    %2346 = vmatprep.subr.mxu0 %v233
    %2347 = vmatpush1.msra.mxu0 %v232
    %2348 = vmatprep.subr.mxu0 %v237
    %2349 = vmatpush1.msra.mxu0 %v236
    %2350 = vmatprep.subr.mxu0 %v241
    %2351 = vmatpush1.msra.mxu0 %v240
    %2352 = vmatprep.subr.mxu0 0.0
    %2353 = vmatpush1.msra.mxu0 0.0
    %2354 = vmatprep.subr.mxu0 0.0
    %2355 = vmatpush1.msra.mxu0 0.0
    %2356 = vmatprep.subr.mxu0 0.0
    %2357 = vmatpush1.msra.mxu0 0.0
    %2358 = vmatprep.subr.mxu0 0.0
    %2359 = vmatpush1.msra.mxu0 0.0
    %2360 = vmatprep.subr.mxu0 0.0
    %2361 = vmatpush1.msra.mxu0 0.0
    %2362 = vmatprep.subr.mxu0 0.0
    %2363 = vmatpush1.msra.mxu0 0.0
    %2364 = vmatprep.subr.mxu0 0.0
    %2365 = vmatpush1.msra.mxu0 0.0
    %2366 = vmatprep.subr.mxu0 0.0
    %2367 = vmatpush1.msra.mxu0 0.0
    %2368 = vmatprep.subr.mxu0 0.0
    %2369 = vmatpush1.msra.mxu0 0.0
    %2370 = vmatprep.subr.mxu0 0.0
    %2371 = vmatpush1.msra.mxu0 0.0
    %2372 = vmatprep.subr.mxu0 0.0
    %2373 = vmatpush1.msra.mxu0 0.0
    %2374 = vmatprep.subr.mxu0 0.0
    %2375 = vmatpush1.msra.mxu0 0.0
    %2376 = vmatprep.subr.mxu0 0.0
    %2377 = vmatpush1.msra.mxu0 0.0
    %2378 = vmatprep.subr.mxu0 0.0
    %2379 = vmatpush1.msra.mxu0 0.0
    %2380 = vmatprep.subr.mxu0 0.0
    %2381 = vmatpush1.msra.mxu0 0.0
    %2382 = vmatprep.subr.mxu0 0.0
    %2383 = vmatpush1.msra.mxu0 0.0
    %2384 = vmatprep.mubr.f32.mxu0 0.0
    %2385 = vmatmul.mubr.f32.gmra.mrb[0].mxu0 %v2164
    %v2386 = vpop.f32.mrb[0].mxu0
    %v2387 = vadd.f32 %v397, %v2386
    %v2388 = vpop.f32.mrb[0].mxu0
    %v2389 = vadd.f32 %v401, %v2388
    %2390 = vdwg.mxu0
    %2391 = vmatprep.subr.mxu0 %v115
    %2392 = vmatpush1.msra.mxu0 %v114
    %2393 = vmatprep.subr.mxu0 %v119
    %2394 = vmatpush1.msra.mxu0 %v118
    %2395 = vmatprep.subr.mxu0 %v123
    %2396 = vmatpush1.msra.mxu0 %v122
    %2397 = vmatprep.subr.mxu0 %v127
    %2398 = vmatpush1.msra.mxu0 %v126
    %2399 = vmatprep.subr.mxu0 %v131
    %2400 = vmatpush1.msra.mxu0 %v130
    %2401 = vmatprep.subr.mxu0 %v135
    %2402 = vmatpush1.msra.mxu0 %v134
    %2403 = vmatprep.subr.mxu0 %v139
    %2404 = vmatpush1.msra.mxu0 %v138
    %2405 = vmatprep.subr.mxu0 %v143
    %2406 = vmatpush1.msra.mxu0 %v142
    %2407 = vmatprep.subr.mxu0 %v147
    %2408 = vmatpush1.msra.mxu0 %v146
    %2409 = vmatprep.subr.mxu0 %v151
    %2410 = vmatpush1.msra.mxu0 %v150
    %2411 = vmatprep.subr.mxu0 %v155
    %2412 = vmatpush1.msra.mxu0 %v154
    %2413 = vmatprep.subr.mxu0 %v159
    %2414 = vmatpush1.msra.mxu0 %v158
    %2415 = vmatprep.subr.mxu0 %v163
    %2416 = vmatpush1.msra.mxu0 %v162
    %2417 = vmatprep.subr.mxu0 %v167
    %2418 = vmatpush1.msra.mxu0 %v166
    %2419 = vmatprep.subr.mxu0 %v171
    %2420 = vmatpush1.msra.mxu0 %v170
    %2421 = vmatprep.subr.mxu0 %v175
    %2422 = vmatpush1.msra.mxu0 %v174
    %2423 = vmatprep.subr.mxu0 0.0
    %2424 = vmatpush1.msra.mxu0 0.0
    %2425 = vmatprep.subr.mxu0 0.0
    %2426 = vmatpush1.msra.mxu0 0.0
    %2427 = vmatprep.subr.mxu0 0.0
    %2428 = vmatpush1.msra.mxu0 0.0
    %2429 = vmatprep.subr.mxu0 0.0
    %2430 = vmatpush1.msra.mxu0 0.0
    %2431 = vmatprep.subr.mxu0 0.0
    %2432 = vmatpush1.msra.mxu0 0.0
    %2433 = vmatprep.subr.mxu0 0.0
    %2434 = vmatpush1.msra.mxu0 0.0
    %2435 = vmatprep.subr.mxu0 0.0
    %2436 = vmatpush1.msra.mxu0 0.0
    %2437 = vmatprep.subr.mxu0 0.0
    %2438 = vmatpush1.msra.mxu0 0.0
    %2439 = vmatprep.subr.mxu0 0.0
    %2440 = vmatpush1.msra.mxu0 0.0
    %2441 = vmatprep.subr.mxu0 0.0
    %2442 = vmatpush1.msra.mxu0 0.0
    %2443 = vmatprep.subr.mxu0 0.0
    %2444 = vmatpush1.msra.mxu0 0.0
    %2445 = vmatprep.subr.mxu0 0.0
    %2446 = vmatpush1.msra.mxu0 0.0
    %2447 = vmatprep.subr.mxu0 0.0
    %2448 = vmatpush1.msra.mxu0 0.0
    %2449 = vmatprep.subr.mxu0 0.0
    %2450 = vmatpush1.msra.mxu0 0.0
    %2451 = vmatprep.subr.mxu0 0.0
    %2452 = vmatpush1.msra.mxu0 0.0
    %2453 = vmatprep.subr.mxu0 0.0
    %2454 = vmatpush1.msra.mxu0 0.0
    %2455 = vmatprep.mubr.f32.mxu0 0.0
    %2456 = vmatmul.mubr.f32.gmra.mrb[0].mxu0 %v2248
    %v2457 = vpop.f32.mrb[0].mxu0
    %v2458 = vadd.f32 0.0, %v2457
    %v2459 = vpop.f32.mrb[0].mxu0
    %v2460 = vadd.f32 0.0, %v2459
    %2461 = vdwg.mxu0
    %2462 = vmatprep.subr.mxu0 %v117
    %2463 = vmatpush1.msra.mxu0 %v116
    %2464 = vmatprep.subr.mxu0 %v121
    %2465 = vmatpush1.msra.mxu0 %v120
    %2466 = vmatprep.subr.mxu0 %v125
    %2467 = vmatpush1.msra.mxu0 %v124
    %2468 = vmatprep.subr.mxu0 %v129
    %2469 = vmatpush1.msra.mxu0 %v128
    %2470 = vmatprep.subr.mxu0 %v133
    %2471 = vmatpush1.msra.mxu0 %v132
    %2472 = vmatprep.subr.mxu0 %v137
    %2473 = vmatpush1.msra.mxu0 %v136
    %2474 = vmatprep.subr.mxu0 %v141
    %2475 = vmatpush1.msra.mxu0 %v140
    %2476 = vmatprep.subr.mxu0 %v145
    %2477 = vmatpush1.msra.mxu0 %v144
    %2478 = vmatprep.subr.mxu0 %v149
    %2479 = vmatpush1.msra.mxu0 %v148
    %2480 = vmatprep.subr.mxu0 %v153
    %2481 = vmatpush1.msra.mxu0 %v152
    %2482 = vmatprep.subr.mxu0 %v157
    %2483 = vmatpush1.msra.mxu0 %v156
    %2484 = vmatprep.subr.mxu0 %v161
    %2485 = vmatpush1.msra.mxu0 %v160
    %2486 = vmatprep.subr.mxu0 %v165
    %2487 = vmatpush1.msra.mxu0 %v164
    %2488 = vmatprep.subr.mxu0 %v169
    %2489 = vmatpush1.msra.mxu0 %v168
    %2490 = vmatprep.subr.mxu0 %v173
    %2491 = vmatpush1.msra.mxu0 %v172
    %2492 = vmatprep.subr.mxu0 %v177
    %2493 = vmatpush1.msra.mxu0 %v176
    %2494 = vmatprep.subr.mxu0 0.0
    %2495 = vmatpush1.msra.mxu0 0.0
    %2496 = vmatprep.subr.mxu0 0.0
    %2497 = vmatpush1.msra.mxu0 0.0
    %2498 = vmatprep.subr.mxu0 0.0
    %2499 = vmatpush1.msra.mxu0 0.0
    %2500 = vmatprep.subr.mxu0 0.0
    %2501 = vmatpush1.msra.mxu0 0.0
    %2502 = vmatprep.subr.mxu0 0.0
    %2503 = vmatpush1.msra.mxu0 0.0
    %2504 = vmatprep.subr.mxu0 0.0
    %2505 = vmatpush1.msra.mxu0 0.0
    %2506 = vmatprep.subr.mxu0 0.0
    %2507 = vmatpush1.msra.mxu0 0.0
    %2508 = vmatprep.subr.mxu0 0.0
    %2509 = vmatpush1.msra.mxu0 0.0
    %2510 = vmatprep.subr.mxu0 0.0
    %2511 = vmatpush1.msra.mxu0 0.0
    %2512 = vmatprep.subr.mxu0 0.0
    %2513 = vmatpush1.msra.mxu0 0.0
    %2514 = vmatprep.subr.mxu0 0.0
    %2515 = vmatpush1.msra.mxu0 0.0
    %2516 = vmatprep.subr.mxu0 0.0
    %2517 = vmatpush1.msra.mxu0 0.0
    %2518 = vmatprep.subr.mxu0 0.0
    %2519 = vmatpush1.msra.mxu0 0.0
    %2520 = vmatprep.subr.mxu0 0.0
    %2521 = vmatpush1.msra.mxu0 0.0
    %2522 = vmatprep.subr.mxu0 0.0
    %2523 = vmatpush1.msra.mxu0 0.0
    %2524 = vmatprep.subr.mxu0 0.0
    %2525 = vmatpush1.msra.mxu0 0.0
    %2526 = vmatprep.mubr.f32.mxu0 0.0
    %2527 = vmatmul.mubr.f32.gmra.mrb[0].mxu0 %v2248
    %v2528 = vpop.f32.mrb[0].mxu0
    %v2529 = vadd.f32 0.0, %v2528
    %v2530 = vpop.f32.mrb[0].mxu0
    %v2531 = vadd.f32 0.0, %v2530
    %2532 = vdwg.mxu0
    %v2533 = vadd.f32 %v2316, %v2458
    %v2534 = vadd.f32 %v2318, %v2460
    %v2535 = vadd.f32 %v2387, %v2529
    %v2536 = vadd.f32 %v2389, %v2531
    %v2537 = vxor.u32 %v2533, 2147483648
    %v2538 = vmul.f32 %v2537, 1.442695
    %v2539 = vpow.pop %v2538
    %v2540 = vadd.f32 %v2539, 1.0
    %v2541 = vrcp.pop %v2540
    %v2542 = vmul.f32 1.0, %v2541
    %v2543 = vxor.u32 %v2534, 2147483648
    %v2544 = vmul.f32 %v2543, 1.442695
    %v2545 = vpow.pop %v2544
    %v2546 = vadd.f32 %v2545, 1.0
    %v2547 = vrcp.pop %v2546
    %v2548 = vmul.f32 1.0, %v2547
    %v2549 = vtanh.pop %v2535
    %v2550 = vxor.u32 %v2536, 2147483648
    %v2551 = vmul.f32 %v2550, 1.442695
    %v2552 = vpow.pop %v2551
    %v2553 = vadd.f32 %v2552, 1.0
    %v2554 = vrcp.pop %v2553
    %v2555 = vmul.f32 1.0, %v2554
    %v2556 = vmul.f32 %v2548, %v2162
    %v2557 = vmul.f32 %v2542, %v2549
    %v2558 = vadd.f32 %v2556, %v2557
    %v2559 = vtanh.pop %v2558
    %v2560 = vmul.f32 %v2555, %v2559
    %2561 = vmatprep.subr.mxu0 0.0
    %2562 = vmatpush1.msra.mxu0 %v243
    %2563 = vmatprep.subr.mxu0 0.0
    %2564 = vmatpush1.msra.mxu0 %v244
    %2565 = vmatprep.subr.mxu0 0.0
    %2566 = vmatpush1.msra.mxu0 %v245
    %2567 = vmatprep.subr.mxu0 0.0
    %2568 = vmatpush1.msra.mxu0 %v246
    %2569 = vmatprep.subr.mxu0 0.0
    %2570 = vmatpush1.msra.mxu0 %v247
    %2571 = vmatprep.subr.mxu0 0.0
    %2572 = vmatpush1.msra.mxu0 %v248
    %2573 = vmatprep.subr.mxu0 0.0
    %2574 = vmatpush1.msra.mxu0 %v249
    %2575 = vmatprep.subr.mxu0 0.0
    %2576 = vmatpush1.msra.mxu0 %v250
    %2577 = vmatprep.subr.mxu0 0.0
    %2578 = vmatpush1.msra.mxu0 %v251
    %2579 = vmatprep.subr.mxu0 0.0
    %2580 = vmatpush1.msra.mxu0 %v252
    %2581 = vmatprep.subr.mxu0 0.0
    %2582 = vmatpush1.msra.mxu0 %v253
    %2583 = vmatprep.subr.mxu0 0.0
    %2584 = vmatpush1.msra.mxu0 %v254
    %2585 = vmatprep.subr.mxu0 0.0
    %2586 = vmatpush1.msra.mxu0 %v255
    %2587 = vmatprep.subr.mxu0 0.0
    %2588 = vmatpush1.msra.mxu0 %v256
    %2589 = vmatprep.subr.mxu0 0.0
    %2590 = vmatpush1.msra.mxu0 %v257
    %2591 = vmatprep.subr.mxu0 0.0
    %2592 = vmatpush1.msra.mxu0 %v258
    %2593 = vmatprep.subr.mxu0 0.0
    %2594 = vmatpush1.msra.mxu0 0.0
    %2595 = vmatprep.subr.mxu0 0.0
    %2596 = vmatpush1.msra.mxu0 0.0
    %2597 = vmatprep.subr.mxu0 0.0
    %2598 = vmatpush1.msra.mxu0 0.0
    %2599 = vmatprep.subr.mxu0 0.0
    %2600 = vmatpush1.msra.mxu0 0.0
    %2601 = vmatprep.subr.mxu0 0.0
    %2602 = vmatpush1.msra.mxu0 0.0
    %2603 = vmatprep.subr.mxu0 0.0
    %2604 = vmatpush1.msra.mxu0 0.0
    %2605 = vmatprep.subr.mxu0 0.0
    %2606 = vmatpush1.msra.mxu0 0.0
    %2607 = vmatprep.subr.mxu0 0.0
    %2608 = vmatpush1.msra.mxu0 0.0
    %2609 = vmatprep.subr.mxu0 0.0
    %2610 = vmatpush1.msra.mxu0 0.0
    %2611 = vmatprep.subr.mxu0 0.0
    %2612 = vmatpush1.msra.mxu0 0.0
    %2613 = vmatprep.subr.mxu0 0.0
    %2614 = vmatpush1.msra.mxu0 0.0
    %2615 = vmatprep.subr.mxu0 0.0
    %2616 = vmatpush1.msra.mxu0 0.0
    %2617 = vmatprep.subr.mxu0 0.0
    %2618 = vmatpush1.msra.mxu0 0.0
    %2619 = vmatprep.subr.mxu0 0.0
    %2620 = vmatpush1.msra.mxu0 0.0
    %2621 = vmatprep.subr.mxu0 0.0
    %2622 = vmatpush1.msra.mxu0 0.0
    %2623 = vmatprep.subr.mxu0 0.0
    %2624 = vmatpush1.msra.mxu0 0.0
    %2625 = vmatprep.mubr.f32.mxu0 0.0
    %2626 = vmatmul.mubr.f32.gmra.mrb[0].mxu0 %v2560
    %v2627 = vpop.f32.mrb[0].mxu0
    %v2628 = vadd.f32 %v382, %v2627
    %v2629 = vpop.f32.mrb[0].mxu0
    %2630 = vdwg.mxu0
    %2631 = vadd.xlane.f32.xlu0 %v2628
    %v2632 = vpop.xlane.xlu0 %2631
    %v2633 = vmul.f32 %v2632, %v644
    %v2634 = vsub.f32 %v2628, %v2633
    %v2635 = vmul.f32 %v2634, %v2634
    %2636 = vadd.xlane.f32.xlu0 %v2635
    %v2637 = vpop.xlane.xlu0 %2636
    %v2638 = vmul.f32 %v2637, %v644
    %v2639 = vadd.f32 %v2638, 1e-05
    %v2640 = vrsqrt.pop %v2639
    %v2641 = vmul.f32 %v2634, %v2640
    %v2642 = vmul.f32 %v2641, %v657
    %v2643 = vadd.f32 %v2642, %v662
    %v2644 = vtanh.pop %v2643
    %2645 = vmatprep.subr.mxu0 %v179
    %2646 = vmatpush1.msra.mxu0 %v178
    %2647 = vmatprep.subr.mxu0 %v183
    %2648 = vmatpush1.msra.mxu0 %v182
    %2649 = vmatprep.subr.mxu0 %v187
    %2650 = vmatpush1.msra.mxu0 %v186
    %2651 = vmatprep.subr.mxu0 %v191
    %2652 = vmatpush1.msra.mxu0 %v190
    %2653 = vmatprep.subr.mxu0 %v195
    %2654 = vmatpush1.msra.mxu0 %v194
    %2655 = vmatprep.subr.mxu0 %v199
    %2656 = vmatpush1.msra.mxu0 %v198
    %2657 = vmatprep.subr.mxu0 %v203
    %2658 = vmatpush1.msra.mxu0 %v202
    %2659 = vmatprep.subr.mxu0 %v207
    %2660 = vmatpush1.msra.mxu0 %v206
    %2661 = vmatprep.subr.mxu0 %v211
    %2662 = vmatpush1.msra.mxu0 %v210
    %2663 = vmatprep.subr.mxu0 %v215
    %2664 = vmatpush1.msra.mxu0 %v214
    %2665 = vmatprep.subr.mxu0 %v219
    %2666 = vmatpush1.msra.mxu0 %v218
    %2667 = vmatprep.subr.mxu0 %v223
    %2668 = vmatpush1.msra.mxu0 %v222
    %2669 = vmatprep.subr.mxu0 %v227
    %2670 = vmatpush1.msra.mxu0 %v226
    %2671 = vmatprep.subr.mxu0 %v231
    %2672 = vmatpush1.msra.mxu0 %v230
    %2673 = vmatprep.subr.mxu0 %v235
    %2674 = vmatpush1.msra.mxu0 %v234
    %2675 = vmatprep.subr.mxu0 %v239
    %2676 = vmatpush1.msra.mxu0 %v238
    %2677 = vmatprep.subr.mxu0 0.0
    %2678 = vmatpush1.msra.mxu0 0.0
    %2679 = vmatprep.subr.mxu0 0.0
    %2680 = vmatpush1.msra.mxu0 0.0
    %2681 = vmatprep.subr.mxu0 0.0
    %2682 = vmatpush1.msra.mxu0 0.0
    %2683 = vmatprep.subr.mxu0 0.0
    %2684 = vmatpush1.msra.mxu0 0.0
    %2685 = vmatprep.subr.mxu0 0.0
    %2686 = vmatpush1.msra.mxu0 0.0
    %2687 = vmatprep.subr.mxu0 0.0
    %2688 = vmatpush1.msra.mxu0 0.0
    %2689 = vmatprep.subr.mxu0 0.0
    %2690 = vmatpush1.msra.mxu0 0.0
    %2691 = vmatprep.subr.mxu0 0.0
    %2692 = vmatpush1.msra.mxu0 0.0
    %2693 = vmatprep.subr.mxu0 0.0
    %2694 = vmatpush1.msra.mxu0 0.0
    %2695 = vmatprep.subr.mxu0 0.0
    %2696 = vmatpush1.msra.mxu0 0.0
    %2697 = vmatprep.subr.mxu0 0.0
    %2698 = vmatpush1.msra.mxu0 0.0
    %2699 = vmatprep.subr.mxu0 0.0
    %2700 = vmatpush1.msra.mxu0 0.0
    %2701 = vmatprep.subr.mxu0 0.0
    %2702 = vmatpush1.msra.mxu0 0.0
    %2703 = vmatprep.subr.mxu0 0.0
    %2704 = vmatpush1.msra.mxu0 0.0
    %2705 = vmatprep.subr.mxu0 0.0
    %2706 = vmatpush1.msra.mxu0 0.0
    %2707 = vmatprep.subr.mxu0 0.0
    %2708 = vmatpush1.msra.mxu0 0.0
    %2709 = vmatprep.mubr.f32.mxu0 0.0
    %2710 = vmatmul.mubr.f32.gmra.mrb[0].mxu0 %v2560
    %v2711 = vpop.f32.mrb[0].mxu0
    %v2712 = vadd.f32 %v389, %v2711
    %v2713 = vpop.f32.mrb[0].mxu0
    %v2714 = vadd.f32 %v393, %v2713
    %2715 = vdwg.mxu0
    %2716 = vmatprep.subr.mxu0 %v181
    %2717 = vmatpush1.msra.mxu0 %v180
    %2718 = vmatprep.subr.mxu0 %v185
    %2719 = vmatpush1.msra.mxu0 %v184
    %2720 = vmatprep.subr.mxu0 %v189
    %2721 = vmatpush1.msra.mxu0 %v188
    %2722 = vmatprep.subr.mxu0 %v193
    %2723 = vmatpush1.msra.mxu0 %v192
    %2724 = vmatprep.subr.mxu0 %v197
    %2725 = vmatpush1.msra.mxu0 %v196
    %2726 = vmatprep.subr.mxu0 %v201
    %2727 = vmatpush1.msra.mxu0 %v200
    %2728 = vmatprep.subr.mxu0 %v205
    %2729 = vmatpush1.msra.mxu0 %v204
    %2730 = vmatprep.subr.mxu0 %v209
    %2731 = vmatpush1.msra.mxu0 %v208
    %2732 = vmatprep.subr.mxu0 %v213
    %2733 = vmatpush1.msra.mxu0 %v212
    %2734 = vmatprep.subr.mxu0 %v217
    %2735 = vmatpush1.msra.mxu0 %v216
    %2736 = vmatprep.subr.mxu0 %v221
    %2737 = vmatpush1.msra.mxu0 %v220
    %2738 = vmatprep.subr.mxu0 %v225
    %2739 = vmatpush1.msra.mxu0 %v224
    %2740 = vmatprep.subr.mxu0 %v229
    %2741 = vmatpush1.msra.mxu0 %v228
    %2742 = vmatprep.subr.mxu0 %v233
    %2743 = vmatpush1.msra.mxu0 %v232
    %2744 = vmatprep.subr.mxu0 %v237
    %2745 = vmatpush1.msra.mxu0 %v236
    %2746 = vmatprep.subr.mxu0 %v241
    %2747 = vmatpush1.msra.mxu0 %v240
    %2748 = vmatprep.subr.mxu0 0.0
    %2749 = vmatpush1.msra.mxu0 0.0
    %2750 = vmatprep.subr.mxu0 0.0
    %2751 = vmatpush1.msra.mxu0 0.0
    %2752 = vmatprep.subr.mxu0 0.0
    %2753 = vmatpush1.msra.mxu0 0.0
    %2754 = vmatprep.subr.mxu0 0.0
    %2755 = vmatpush1.msra.mxu0 0.0
    %2756 = vmatprep.subr.mxu0 0.0
    %2757 = vmatpush1.msra.mxu0 0.0
    %2758 = vmatprep.subr.mxu0 0.0
    %2759 = vmatpush1.msra.mxu0 0.0
    %2760 = vmatprep.subr.mxu0 0.0
    %2761 = vmatpush1.msra.mxu0 0.0
    %2762 = vmatprep.subr.mxu0 0.0
    %2763 = vmatpush1.msra.mxu0 0.0
    %2764 = vmatprep.subr.mxu0 0.0
    %2765 = vmatpush1.msra.mxu0 0.0
    %2766 = vmatprep.subr.mxu0 0.0
    %2767 = vmatpush1.msra.mxu0 0.0
    %2768 = vmatprep.subr.mxu0 0.0
    %2769 = vmatpush1.msra.mxu0 0.0
    %2770 = vmatprep.subr.mxu0 0.0
    %2771 = vmatpush1.msra.mxu0 0.0
    %2772 = vmatprep.subr.mxu0 0.0
    %2773 = vmatpush1.msra.mxu0 0.0
    %2774 = vmatprep.subr.mxu0 0.0
    %2775 = vmatpush1.msra.mxu0 0.0
    %2776 = vmatprep.subr.mxu0 0.0
    %2777 = vmatpush1.msra.mxu0 0.0
    %2778 = vmatprep.subr.mxu0 0.0
    %2779 = vmatpush1.msra.mxu0 0.0
    %2780 = vmatprep.mubr.f32.mxu0 0.0
    %2781 = vmatmul.mubr.f32.gmra.mrb[0].mxu0 %v2560
    %v2782 = vpop.f32.mrb[0].mxu0
    %v2783 = vadd.f32 %v397, %v2782
    %v2784 = vpop.f32.mrb[0].mxu0
    %v2785 = vadd.f32 %v401, %v2784
    %2786 = vdwg.mxu0
    %2787 = vmatprep.subr.mxu0 %v115
    %2788 = vmatpush1.msra.mxu0 %v114
    %2789 = vmatprep.subr.mxu0 %v119
    %2790 = vmatpush1.msra.mxu0 %v118
    %2791 = vmatprep.subr.mxu0 %v123
    %2792 = vmatpush1.msra.mxu0 %v122
    %2793 = vmatprep.subr.mxu0 %v127
    %2794 = vmatpush1.msra.mxu0 %v126
    %2795 = vmatprep.subr.mxu0 %v131
    %2796 = vmatpush1.msra.mxu0 %v130
    %2797 = vmatprep.subr.mxu0 %v135
    %2798 = vmatpush1.msra.mxu0 %v134
    %2799 = vmatprep.subr.mxu0 %v139
    %2800 = vmatpush1.msra.mxu0 %v138
    %2801 = vmatprep.subr.mxu0 %v143
    %2802 = vmatpush1.msra.mxu0 %v142
    %2803 = vmatprep.subr.mxu0 %v147
    %2804 = vmatpush1.msra.mxu0 %v146
    %2805 = vmatprep.subr.mxu0 %v151
    %2806 = vmatpush1.msra.mxu0 %v150
    %2807 = vmatprep.subr.mxu0 %v155
    %2808 = vmatpush1.msra.mxu0 %v154
    %2809 = vmatprep.subr.mxu0 %v159
    %2810 = vmatpush1.msra.mxu0 %v158
    %2811 = vmatprep.subr.mxu0 %v163
    %2812 = vmatpush1.msra.mxu0 %v162
    %2813 = vmatprep.subr.mxu0 %v167
    %2814 = vmatpush1.msra.mxu0 %v166
    %2815 = vmatprep.subr.mxu0 %v171
    %2816 = vmatpush1.msra.mxu0 %v170
    %2817 = vmatprep.subr.mxu0 %v175
    %2818 = vmatpush1.msra.mxu0 %v174
    %2819 = vmatprep.subr.mxu0 0.0
    %2820 = vmatpush1.msra.mxu0 0.0
    %2821 = vmatprep.subr.mxu0 0.0
    %2822 = vmatpush1.msra.mxu0 0.0
    %2823 = vmatprep.subr.mxu0 0.0
    %2824 = vmatpush1.msra.mxu0 0.0
    %2825 = vmatprep.subr.mxu0 0.0
    %2826 = vmatpush1.msra.mxu0 0.0
    %2827 = vmatprep.subr.mxu0 0.0
    %2828 = vmatpush1.msra.mxu0 0.0
    %2829 = vmatprep.subr.mxu0 0.0
    %2830 = vmatpush1.msra.mxu0 0.0
    %2831 = vmatprep.subr.mxu0 0.0
    %2832 = vmatpush1.msra.mxu0 0.0
    %2833 = vmatprep.subr.mxu0 0.0
    %2834 = vmatpush1.msra.mxu0 0.0
    %2835 = vmatprep.subr.mxu0 0.0
    %2836 = vmatpush1.msra.mxu0 0.0
    %2837 = vmatprep.subr.mxu0 0.0
    %2838 = vmatpush1.msra.mxu0 0.0
    %2839 = vmatprep.subr.mxu0 0.0
    %2840 = vmatpush1.msra.mxu0 0.0
    %2841 = vmatprep.subr.mxu0 0.0
    %2842 = vmatpush1.msra.mxu0 0.0
    %2843 = vmatprep.subr.mxu0 0.0
    %2844 = vmatpush1.msra.mxu0 0.0
    %2845 = vmatprep.subr.mxu0 0.0
    %2846 = vmatpush1.msra.mxu0 0.0
    %2847 = vmatprep.subr.mxu0 0.0
    %2848 = vmatpush1.msra.mxu0 0.0
    %2849 = vmatprep.subr.mxu0 0.0
    %2850 = vmatpush1.msra.mxu0 0.0
    %2851 = vmatprep.mubr.f32.mxu0 0.0
    %2852 = vmatmul.mubr.f32.gmra.mrb[0].mxu0 %v2644
    %v2853 = vpop.f32.mrb[0].mxu0
    %v2854 = vadd.f32 0.0, %v2853
    %v2855 = vpop.f32.mrb[0].mxu0
    %v2856 = vadd.f32 0.0, %v2855
    %2857 = vdwg.mxu0
    %2858 = vmatprep.subr.mxu0 %v117
    %2859 = vmatpush1.msra.mxu0 %v116
    %2860 = vmatprep.subr.mxu0 %v121
    %2861 = vmatpush1.msra.mxu0 %v120
    %2862 = vmatprep.subr.mxu0 %v125
    %2863 = vmatpush1.msra.mxu0 %v124
    %2864 = vmatprep.subr.mxu0 %v129
    %2865 = vmatpush1.msra.mxu0 %v128
    %2866 = vmatprep.subr.mxu0 %v133
    %2867 = vmatpush1.msra.mxu0 %v132
    %2868 = vmatprep.subr.mxu0 %v137
    %2869 = vmatpush1.msra.mxu0 %v136
    %2870 = vmatprep.subr.mxu0 %v141
    %2871 = vmatpush1.msra.mxu0 %v140
    %2872 = vmatprep.subr.mxu0 %v145
    %2873 = vmatpush1.msra.mxu0 %v144
    %2874 = vmatprep.subr.mxu0 %v149
    %2875 = vmatpush1.msra.mxu0 %v148
    %2876 = vmatprep.subr.mxu0 %v153
    %2877 = vmatpush1.msra.mxu0 %v152
    %2878 = vmatprep.subr.mxu0 %v157
    %2879 = vmatpush1.msra.mxu0 %v156
    %2880 = vmatprep.subr.mxu0 %v161
    %2881 = vmatpush1.msra.mxu0 %v160
    %2882 = vmatprep.subr.mxu0 %v165
    %2883 = vmatpush1.msra.mxu0 %v164
    %2884 = vmatprep.subr.mxu0 %v169
    %2885 = vmatpush1.msra.mxu0 %v168
    %2886 = vmatprep.subr.mxu0 %v173
    %2887 = vmatpush1.msra.mxu0 %v172
    %2888 = vmatprep.subr.mxu0 %v177
    %2889 = vmatpush1.msra.mxu0 %v176
    %2890 = vmatprep.subr.mxu0 0.0
    %2891 = vmatpush1.msra.mxu0 0.0
    %2892 = vmatprep.subr.mxu0 0.0
    %2893 = vmatpush1.msra.mxu0 0.0
    %2894 = vmatprep.subr.mxu0 0.0
    %2895 = vmatpush1.msra.mxu0 0.0
    %2896 = vmatprep.subr.mxu0 0.0
    %2897 = vmatpush1.msra.mxu0 0.0
    %2898 = vmatprep.subr.mxu0 0.0
    %2899 = vmatpush1.msra.mxu0 0.0
    %2900 = vmatprep.subr.mxu0 0.0
    %2901 = vmatpush1.msra.mxu0 0.0
    %2902 = vmatprep.subr.mxu0 0.0
    %2903 = vmatpush1.msra.mxu0 0.0
    %2904 = vmatprep.subr.mxu0 0.0
    %2905 = vmatpush1.msra.mxu0 0.0
    %2906 = vmatprep.subr.mxu0 0.0
    %2907 = vmatpush1.msra.mxu0 0.0
    %2908 = vmatprep.subr.mxu0 0.0
    %2909 = vmatpush1.msra.mxu0 0.0
    %2910 = vmatprep.subr.mxu0 0.0
    %2911 = vmatpush1.msra.mxu0 0.0
    %2912 = vmatprep.subr.mxu0 0.0
    %2913 = vmatpush1.msra.mxu0 0.0
    %2914 = vmatprep.subr.mxu0 0.0
    %2915 = vmatpush1.msra.mxu0 0.0
    %2916 = vmatprep.subr.mxu0 0.0
    %2917 = vmatpush1.msra.mxu0 0.0
    %2918 = vmatprep.subr.mxu0 0.0
    %2919 = vmatpush1.msra.mxu0 0.0
    %2920 = vmatprep.subr.mxu0 0.0
    %2921 = vmatpush1.msra.mxu0 0.0
    %2922 = vmatprep.mubr.f32.mxu0 0.0
    %2923 = vmatmul.mubr.f32.gmra.mrb[0].mxu0 %v2644
    %v2924 = vpop.f32.mrb[0].mxu0
    %v2925 = vadd.f32 0.0, %v2924
    %v2926 = vpop.f32.mrb[0].mxu0
    %v2927 = vadd.f32 0.0, %v2926
    %2928 = vdwg.mxu0
    %v2929 = vadd.f32 %v2712, %v2854
    %v2930 = vadd.f32 %v2714, %v2856
    %v2931 = vadd.f32 %v2783, %v2925
    %v2932 = vadd.f32 %v2785, %v2927
    %v2933 = vxor.u32 %v2929, 2147483648
    %v2934 = vmul.f32 %v2933, 1.442695
    %v2935 = vpow.pop %v2934
    %v2936 = vadd.f32 %v2935, 1.0
    %v2937 = vrcp.pop %v2936
    %v2938 = vmul.f32 1.0, %v2937
    %v2939 = vxor.u32 %v2930, 2147483648
    %v2940 = vmul.f32 %v2939, 1.442695
    %v2941 = vpow.pop %v2940
    %v2942 = vadd.f32 %v2941, 1.0
    %v2943 = vrcp.pop %v2942
    %v2944 = vmul.f32 1.0, %v2943
    %v2945 = vtanh.pop %v2931
    %v2946 = vxor.u32 %v2932, 2147483648
    %v2947 = vmul.f32 %v2946, 1.442695
    %v2948 = vpow.pop %v2947
    %v2949 = vadd.f32 %v2948, 1.0
    %v2950 = vrcp.pop %v2949
    %v2951 = vmul.f32 1.0, %v2950
    %v2952 = vmul.f32 %v2944, %v2558
    %v2953 = vmul.f32 %v2938, %v2945
    %v2954 = vadd.f32 %v2952, %v2953
    %v2955 = vtanh.pop %v2954
    %v2956 = vmul.f32 %v2951, %v2955
    %2957 = vmatprep.subr.mxu0 0.0
    %2958 = vmatpush1.msra.mxu0 %v243
    %2959 = vmatprep.subr.mxu0 0.0
    %2960 = vmatpush1.msra.mxu0 %v244
    %2961 = vmatprep.subr.mxu0 0.0
    %2962 = vmatpush1.msra.mxu0 %v245
    %2963 = vmatprep.subr.mxu0 0.0
    %2964 = vmatpush1.msra.mxu0 %v246
    %2965 = vmatprep.subr.mxu0 0.0
    %2966 = vmatpush1.msra.mxu0 %v247
    %2967 = vmatprep.subr.mxu0 0.0
    %2968 = vmatpush1.msra.mxu0 %v248
    %2969 = vmatprep.subr.mxu0 0.0
    %2970 = vmatpush1.msra.mxu0 %v249
    %2971 = vmatprep.subr.mxu0 0.0
    %2972 = vmatpush1.msra.mxu0 %v250
    %2973 = vmatprep.subr.mxu0 0.0
    %2974 = vmatpush1.msra.mxu0 %v251
    %2975 = vmatprep.subr.mxu0 0.0
    %2976 = vmatpush1.msra.mxu0 %v252
    %2977 = vmatprep.subr.mxu0 0.0
    %2978 = vmatpush1.msra.mxu0 %v253
    %2979 = vmatprep.subr.mxu0 0.0
    %2980 = vmatpush1.msra.mxu0 %v254
    %2981 = vmatprep.subr.mxu0 0.0
    %2982 = vmatpush1.msra.mxu0 %v255
    %2983 = vmatprep.subr.mxu0 0.0
    %2984 = vmatpush1.msra.mxu0 %v256
    %2985 = vmatprep.subr.mxu0 0.0
    %2986 = vmatpush1.msra.mxu0 %v257
    %2987 = vmatprep.subr.mxu0 0.0
    %2988 = vmatpush1.msra.mxu0 %v258
    %2989 = vmatprep.subr.mxu0 0.0
    %2990 = vmatpush1.msra.mxu0 0.0
    %2991 = vmatprep.subr.mxu0 0.0
    %2992 = vmatpush1.msra.mxu0 0.0
    %2993 = vmatprep.subr.mxu0 0.0
    %2994 = vmatpush1.msra.mxu0 0.0
    %2995 = vmatprep.subr.mxu0 0.0
    %2996 = vmatpush1.msra.mxu0 0.0
    %2997 = vmatprep.subr.mxu0 0.0
    %2998 = vmatpush1.msra.mxu0 0.0
    %2999 = vmatprep.subr.mxu0 0.0
    %3000 = vmatpush1.msra.mxu0 0.0
    %3001 = vmatprep.subr.mxu0 0.0
    %3002 = vmatpush1.msra.mxu0 0.0
    %3003 = vmatprep.subr.mxu0 0.0
    %3004 = vmatpush1.msra.mxu0 0.0
    %3005 = vmatprep.subr.mxu0 0.0
    %3006 = vmatpush1.msra.mxu0 0.0
    %3007 = vmatprep.subr.mxu0 0.0
    %3008 = vmatpush1.msra.mxu0 0.0
    %3009 = vmatprep.subr.mxu0 0.0
    %3010 = vmatpush1.msra.mxu0 0.0
    %3011 = vmatprep.subr.mxu0 0.0
    %3012 = vmatpush1.msra.mxu0 0.0
    %3013 = vmatprep.subr.mxu0 0.0
    %3014 = vmatpush1.msra.mxu0 0.0
    %3015 = vmatprep.subr.mxu0 0.0
    %3016 = vmatpush1.msra.mxu0 0.0
    %3017 = vmatprep.subr.mxu0 0.0
    %3018 = vmatpush1.msra.mxu0 0.0
    %3019 = vmatprep.subr.mxu0 0.0
    %3020 = vmatpush1.msra.mxu0 0.0
    %3021 = vmatprep.mubr.f32.mxu0 0.0
    %3022 = vmatmul.mubr.f32.gmra.mrb[0].mxu0 %v2956
    %v3023 = vpop.f32.mrb[0].mxu0
    %v3024 = vadd.f32 %v382, %v3023
    %v3025 = vpop.f32.mrb[0].mxu0
    %3026 = vdwg.mxu0
    %3027 = vadd.xlane.f32.xlu0 %v3024
    %v3028 = vpop.xlane.xlu0 %3027
    %v3029 = vmul.f32 %v3028, %v644
    %v3030 = vsub.f32 %v3024, %v3029
    %v3031 = vmul.f32 %v3030, %v3030
    %3032 = vadd.xlane.f32.xlu0 %v3031
    %v3033 = vpop.xlane.xlu0 %3032
    %v3034 = vmul.f32 %v3033, %v644
    %v3035 = vadd.f32 %v3034, 1e-05
    %v3036 = vrsqrt.pop %v3035
    %v3037 = vmul.f32 %v3030, %v3036
    %v3038 = vmul.f32 %v3037, %v657
    %v3039 = vadd.f32 %v3038, %v662
    %v3040 = vtanh.pop %v3039
    %3041 = vmatprep.subr.mxu0 %v179
    %3042 = vmatpush1.msra.mxu0 %v178
    %3043 = vmatprep.subr.mxu0 %v183
    %3044 = vmatpush1.msra.mxu0 %v182
    %3045 = vmatprep.subr.mxu0 %v187
    %3046 = vmatpush1.msra.mxu0 %v186
    %3047 = vmatprep.subr.mxu0 %v191
    %3048 = vmatpush1.msra.mxu0 %v190
    %3049 = vmatprep.subr.mxu0 %v195
    %3050 = vmatpush1.msra.mxu0 %v194
    %3051 = vmatprep.subr.mxu0 %v199
    %3052 = vmatpush1.msra.mxu0 %v198
    %3053 = vmatprep.subr.mxu0 %v203
    %3054 = vmatpush1.msra.mxu0 %v202
    %3055 = vmatprep.subr.mxu0 %v207
    %3056 = vmatpush1.msra.mxu0 %v206
    %3057 = vmatprep.subr.mxu0 %v211
    %3058 = vmatpush1.msra.mxu0 %v210
    %3059 = vmatprep.subr.mxu0 %v215
    %3060 = vmatpush1.msra.mxu0 %v214
    %3061 = vmatprep.subr.mxu0 %v219
    %3062 = vmatpush1.msra.mxu0 %v218
    %3063 = vmatprep.subr.mxu0 %v223
    %3064 = vmatpush1.msra.mxu0 %v222
    %3065 = vmatprep.subr.mxu0 %v227
    %3066 = vmatpush1.msra.mxu0 %v226
    %3067 = vmatprep.subr.mxu0 %v231
    %3068 = vmatpush1.msra.mxu0 %v230
    %3069 = vmatprep.subr.mxu0 %v235
    %3070 = vmatpush1.msra.mxu0 %v234
    %3071 = vmatprep.subr.mxu0 %v239
    %3072 = vmatpush1.msra.mxu0 %v238
    %3073 = vmatprep.subr.mxu0 0.0
    %3074 = vmatpush1.msra.mxu0 0.0
    %3075 = vmatprep.subr.mxu0 0.0
    %3076 = vmatpush1.msra.mxu0 0.0
    %3077 = vmatprep.subr.mxu0 0.0
    %3078 = vmatpush1.msra.mxu0 0.0
    %3079 = vmatprep.subr.mxu0 0.0
    %3080 = vmatpush1.msra.mxu0 0.0
    %3081 = vmatprep.subr.mxu0 0.0
    %3082 = vmatpush1.msra.mxu0 0.0
    %3083 = vmatprep.subr.mxu0 0.0
    %3084 = vmatpush1.msra.mxu0 0.0
    %3085 = vmatprep.subr.mxu0 0.0
    %3086 = vmatpush1.msra.mxu0 0.0
    %3087 = vmatprep.subr.mxu0 0.0
    %3088 = vmatpush1.msra.mxu0 0.0
    %3089 = vmatprep.subr.mxu0 0.0
    %3090 = vmatpush1.msra.mxu0 0.0
    %3091 = vmatprep.subr.mxu0 0.0
    %3092 = vmatpush1.msra.mxu0 0.0
    %3093 = vmatprep.subr.mxu0 0.0
    %3094 = vmatpush1.msra.mxu0 0.0
    %3095 = vmatprep.subr.mxu0 0.0
    %3096 = vmatpush1.msra.mxu0 0.0
    %3097 = vmatprep.subr.mxu0 0.0
    %3098 = vmatpush1.msra.mxu0 0.0
    %3099 = vmatprep.subr.mxu0 0.0
    %3100 = vmatpush1.msra.mxu0 0.0
    %3101 = vmatprep.subr.mxu0 0.0
    %3102 = vmatpush1.msra.mxu0 0.0
    %3103 = vmatprep.subr.mxu0 0.0
    %3104 = vmatpush1.msra.mxu0 0.0
    %3105 = vmatprep.mubr.f32.mxu0 0.0
    %3106 = vmatmul.mubr.f32.gmra.mrb[0].mxu0 %v2956
    %v3107 = vpop.f32.mrb[0].mxu0
    %v3108 = vadd.f32 %v389, %v3107
    %v3109 = vpop.f32.mrb[0].mxu0
    %v3110 = vadd.f32 %v393, %v3109
    %3111 = vdwg.mxu0
    %3112 = vmatprep.subr.mxu0 %v181
    %3113 = vmatpush1.msra.mxu0 %v180
    %3114 = vmatprep.subr.mxu0 %v185
    %3115 = vmatpush1.msra.mxu0 %v184
    %3116 = vmatprep.subr.mxu0 %v189
    %3117 = vmatpush1.msra.mxu0 %v188
    %3118 = vmatprep.subr.mxu0 %v193
    %3119 = vmatpush1.msra.mxu0 %v192
    %3120 = vmatprep.subr.mxu0 %v197
    %3121 = vmatpush1.msra.mxu0 %v196
    %3122 = vmatprep.subr.mxu0 %v201
    %3123 = vmatpush1.msra.mxu0 %v200
    %3124 = vmatprep.subr.mxu0 %v205
    %3125 = vmatpush1.msra.mxu0 %v204
    %3126 = vmatprep.subr.mxu0 %v209
    %3127 = vmatpush1.msra.mxu0 %v208
    %3128 = vmatprep.subr.mxu0 %v213
    %3129 = vmatpush1.msra.mxu0 %v212
    %3130 = vmatprep.subr.mxu0 %v217
    %3131 = vmatpush1.msra.mxu0 %v216
    %3132 = vmatprep.subr.mxu0 %v221
    %3133 = vmatpush1.msra.mxu0 %v220
    %3134 = vmatprep.subr.mxu0 %v225
    %3135 = vmatpush1.msra.mxu0 %v224
    %3136 = vmatprep.subr.mxu0 %v229
    %3137 = vmatpush1.msra.mxu0 %v228
    %3138 = vmatprep.subr.mxu0 %v233
    %3139 = vmatpush1.msra.mxu0 %v232
    %3140 = vmatprep.subr.mxu0 %v237
    %3141 = vmatpush1.msra.mxu0 %v236
    %3142 = vmatprep.subr.mxu0 %v241
    %3143 = vmatpush1.msra.mxu0 %v240
    %3144 = vmatprep.subr.mxu0 0.0
    %3145 = vmatpush1.msra.mxu0 0.0
    %3146 = vmatprep.subr.mxu0 0.0
    %3147 = vmatpush1.msra.mxu0 0.0
    %3148 = vmatprep.subr.mxu0 0.0
    %3149 = vmatpush1.msra.mxu0 0.0
    %3150 = vmatprep.subr.mxu0 0.0
    %3151 = vmatpush1.msra.mxu0 0.0
    %3152 = vmatprep.subr.mxu0 0.0
    %3153 = vmatpush1.msra.mxu0 0.0
    %3154 = vmatprep.subr.mxu0 0.0
    %3155 = vmatpush1.msra.mxu0 0.0
    %3156 = vmatprep.subr.mxu0 0.0
    %3157 = vmatpush1.msra.mxu0 0.0
    %3158 = vmatprep.subr.mxu0 0.0
    %3159 = vmatpush1.msra.mxu0 0.0
    %3160 = vmatprep.subr.mxu0 0.0
    %3161 = vmatpush1.msra.mxu0 0.0
    %3162 = vmatprep.subr.mxu0 0.0
    %3163 = vmatpush1.msra.mxu0 0.0
    %3164 = vmatprep.subr.mxu0 0.0
    %3165 = vmatpush1.msra.mxu0 0.0
    %3166 = vmatprep.subr.mxu0 0.0
    %3167 = vmatpush1.msra.mxu0 0.0
    %3168 = vmatprep.subr.mxu0 0.0
    %3169 = vmatpush1.msra.mxu0 0.0
    %3170 = vmatprep.subr.mxu0 0.0
    %3171 = vmatpush1.msra.mxu0 0.0
    %3172 = vmatprep.subr.mxu0 0.0
    %3173 = vmatpush1.msra.mxu0 0.0
    %3174 = vmatprep.subr.mxu0 0.0
    %3175 = vmatpush1.msra.mxu0 0.0
    %3176 = vmatprep.mubr.f32.mxu0 0.0
    %3177 = vmatmul.mubr.f32.gmra.mrb[0].mxu0 %v2956
    %v3178 = vpop.f32.mrb[0].mxu0
    %v3179 = vadd.f32 %v397, %v3178
    %v3180 = vpop.f32.mrb[0].mxu0
    %v3181 = vadd.f32 %v401, %v3180
    %3182 = vdwg.mxu0
    %3183 = vmatprep.subr.mxu0 %v115
    %3184 = vmatpush1.msra.mxu0 %v114
    %3185 = vmatprep.subr.mxu0 %v119
    %3186 = vmatpush1.msra.mxu0 %v118
    %3187 = vmatprep.subr.mxu0 %v123
    %3188 = vmatpush1.msra.mxu0 %v122
    %3189 = vmatprep.subr.mxu0 %v127
    %3190 = vmatpush1.msra.mxu0 %v126
    %3191 = vmatprep.subr.mxu0 %v131
    %3192 = vmatpush1.msra.mxu0 %v130
    %3193 = vmatprep.subr.mxu0 %v135
    %3194 = vmatpush1.msra.mxu0 %v134
    %3195 = vmatprep.subr.mxu0 %v139
    %3196 = vmatpush1.msra.mxu0 %v138
    %3197 = vmatprep.subr.mxu0 %v143
    %3198 = vmatpush1.msra.mxu0 %v142
    %3199 = vmatprep.subr.mxu0 %v147
    %3200 = vmatpush1.msra.mxu0 %v146
    %3201 = vmatprep.subr.mxu0 %v151
    %3202 = vmatpush1.msra.mxu0 %v150
    %3203 = vmatprep.subr.mxu0 %v155
    %3204 = vmatpush1.msra.mxu0 %v154
    %3205 = vmatprep.subr.mxu0 %v159
    %3206 = vmatpush1.msra.mxu0 %v158
    %3207 = vmatprep.subr.mxu0 %v163
    %3208 = vmatpush1.msra.mxu0 %v162
    %3209 = vmatprep.subr.mxu0 %v167
    %3210 = vmatpush1.msra.mxu0 %v166
    %3211 = vmatprep.subr.mxu0 %v171
    %3212 = vmatpush1.msra.mxu0 %v170
    %3213 = vmatprep.subr.mxu0 %v175
    %3214 = vmatpush1.msra.mxu0 %v174
    %3215 = vmatprep.subr.mxu0 0.0
    %3216 = vmatpush1.msra.mxu0 0.0
    %3217 = vmatprep.subr.mxu0 0.0
    %3218 = vmatpush1.msra.mxu0 0.0
    %3219 = vmatprep.subr.mxu0 0.0
    %3220 = vmatpush1.msra.mxu0 0.0
    %3221 = vmatprep.subr.mxu0 0.0
    %3222 = vmatpush1.msra.mxu0 0.0
    %3223 = vmatprep.subr.mxu0 0.0
    %3224 = vmatpush1.msra.mxu0 0.0
    %3225 = vmatprep.subr.mxu0 0.0
    %3226 = vmatpush1.msra.mxu0 0.0
    %3227 = vmatprep.subr.mxu0 0.0
    %3228 = vmatpush1.msra.mxu0 0.0
    %3229 = vmatprep.subr.mxu0 0.0
    %3230 = vmatpush1.msra.mxu0 0.0
    %3231 = vmatprep.subr.mxu0 0.0
    %3232 = vmatpush1.msra.mxu0 0.0
    %3233 = vmatprep.subr.mxu0 0.0
    %3234 = vmatpush1.msra.mxu0 0.0
    %3235 = vmatprep.subr.mxu0 0.0
    %3236 = vmatpush1.msra.mxu0 0.0
    %3237 = vmatprep.subr.mxu0 0.0
    %3238 = vmatpush1.msra.mxu0 0.0
    %3239 = vmatprep.subr.mxu0 0.0
    %3240 = vmatpush1.msra.mxu0 0.0
    %3241 = vmatprep.subr.mxu0 0.0
    %3242 = vmatpush1.msra.mxu0 0.0
    %3243 = vmatprep.subr.mxu0 0.0
    %3244 = vmatpush1.msra.mxu0 0.0
    %3245 = vmatprep.subr.mxu0 0.0
    %3246 = vmatpush1.msra.mxu0 0.0
    %3247 = vmatprep.mubr.f32.mxu0 0.0
    %3248 = vmatmul.mubr.f32.gmra.mrb[0].mxu0 %v3040
    %v3249 = vpop.f32.mrb[0].mxu0
    %v3250 = vadd.f32 0.0, %v3249
    %v3251 = vpop.f32.mrb[0].mxu0
    %v3252 = vadd.f32 0.0, %v3251
    %3253 = vdwg.mxu0
    %3254 = vmatprep.subr.mxu0 %v117
    %3255 = vmatpush1.msra.mxu0 %v116
    %3256 = vmatprep.subr.mxu0 %v121
    %3257 = vmatpush1.msra.mxu0 %v120
    %3258 = vmatprep.subr.mxu0 %v125
    %3259 = vmatpush1.msra.mxu0 %v124
    %3260 = vmatprep.subr.mxu0 %v129
    %3261 = vmatpush1.msra.mxu0 %v128
    %3262 = vmatprep.subr.mxu0 %v133
    %3263 = vmatpush1.msra.mxu0 %v132
    %3264 = vmatprep.subr.mxu0 %v137
    %3265 = vmatpush1.msra.mxu0 %v136
    %3266 = vmatprep.subr.mxu0 %v141
    %3267 = vmatpush1.msra.mxu0 %v140
    %3268 = vmatprep.subr.mxu0 %v145
    %3269 = vmatpush1.msra.mxu0 %v144
    %3270 = vmatprep.subr.mxu0 %v149
    %3271 = vmatpush1.msra.mxu0 %v148
    %3272 = vmatprep.subr.mxu0 %v153
    %3273 = vmatpush1.msra.mxu0 %v152
    %3274 = vmatprep.subr.mxu0 %v157
    %3275 = vmatpush1.msra.mxu0 %v156
    %3276 = vmatprep.subr.mxu0 %v161
    %3277 = vmatpush1.msra.mxu0 %v160
    %3278 = vmatprep.subr.mxu0 %v165
    %3279 = vmatpush1.msra.mxu0 %v164
    %3280 = vmatprep.subr.mxu0 %v169
    %3281 = vmatpush1.msra.mxu0 %v168
    %3282 = vmatprep.subr.mxu0 %v173
    %3283 = vmatpush1.msra.mxu0 %v172
    %3284 = vmatprep.subr.mxu0 %v177
    %3285 = vmatpush1.msra.mxu0 %v176
    %3286 = vmatprep.subr.mxu0 0.0
    %3287 = vmatpush1.msra.mxu0 0.0
    %3288 = vmatprep.subr.mxu0 0.0
    %3289 = vmatpush1.msra.mxu0 0.0
    %3290 = vmatprep.subr.mxu0 0.0
    %3291 = vmatpush1.msra.mxu0 0.0
    %3292 = vmatprep.subr.mxu0 0.0
    %3293 = vmatpush1.msra.mxu0 0.0
    %3294 = vmatprep.subr.mxu0 0.0
    %3295 = vmatpush1.msra.mxu0 0.0
    %3296 = vmatprep.subr.mxu0 0.0
    %3297 = vmatpush1.msra.mxu0 0.0
    %3298 = vmatprep.subr.mxu0 0.0
    %3299 = vmatpush1.msra.mxu0 0.0
    %3300 = vmatprep.subr.mxu0 0.0
    %3301 = vmatpush1.msra.mxu0 0.0
    %3302 = vmatprep.subr.mxu0 0.0
    %3303 = vmatpush1.msra.mxu0 0.0
    %3304 = vmatprep.subr.mxu0 0.0
    %3305 = vmatpush1.msra.mxu0 0.0
    %3306 = vmatprep.subr.mxu0 0.0
    %3307 = vmatpush1.msra.mxu0 0.0
    %3308 = vmatprep.subr.mxu0 0.0
    %3309 = vmatpush1.msra.mxu0 0.0
    %3310 = vmatprep.subr.mxu0 0.0
    %3311 = vmatpush1.msra.mxu0 0.0
    %3312 = vmatprep.subr.mxu0 0.0
    %3313 = vmatpush1.msra.mxu0 0.0
    %3314 = vmatprep.subr.mxu0 0.0
    %3315 = vmatpush1.msra.mxu0 0.0
    %3316 = vmatprep.subr.mxu0 0.0
    %3317 = vmatpush1.msra.mxu0 0.0
    %3318 = vmatprep.mubr.f32.mxu0 0.0
    %3319 = vmatmul.mubr.f32.gmra.mrb[0].mxu0 %v3040
    %v3320 = vpop.f32.mrb[0].mxu0
    %v3321 = vadd.f32 0.0, %v3320
    %v3322 = vpop.f32.mrb[0].mxu0
    %v3323 = vadd.f32 0.0, %v3322
    %3324 = vdwg.mxu0
    %v3325 = vadd.f32 %v3108, %v3250
    %v3326 = vadd.f32 %v3110, %v3252
    %v3327 = vadd.f32 %v3179, %v3321
    %v3328 = vadd.f32 %v3181, %v3323
    %v3329 = vxor.u32 %v3325, 2147483648
    %v3330 = vmul.f32 %v3329, 1.442695
    %v3331 = vpow.pop %v3330
    %v3332 = vadd.f32 %v3331, 1.0
    %v3333 = vrcp.pop %v3332
    %v3334 = vmul.f32 1.0, %v3333
    %v3335 = vxor.u32 %v3326, 2147483648
    %v3336 = vmul.f32 %v3335, 1.442695
    %v3337 = vpow.pop %v3336
    %v3338 = vadd.f32 %v3337, 1.0
    %v3339 = vrcp.pop %v3338
    %v3340 = vmul.f32 1.0, %v3339
    %v3341 = vtanh.pop %v3327
    %v3342 = vxor.u32 %v3328, 2147483648
    %v3343 = vmul.f32 %v3342, 1.442695
    %v3344 = vpow.pop %v3343
    %v3345 = vadd.f32 %v3344, 1.0
    %v3346 = vrcp.pop %v3345
    %v3347 = vmul.f32 1.0, %v3346
    %v3348 = vmul.f32 %v3340, %v2954
    %v3349 = vmul.f32 %v3334, %v3341
    %v3350 = vadd.f32 %v3348, %v3349
    %v3351 = vtanh.pop %v3350
    %v3352 = vmul.f32 %v3347, %v3351
    %3353 = vmatprep.subr.mxu0 0.0
    %3354 = vmatpush1.msra.mxu0 %v243
    %3355 = vmatprep.subr.mxu0 0.0
    %3356 = vmatpush1.msra.mxu0 %v244
    %3357 = vmatprep.subr.mxu0 0.0
    %3358 = vmatpush1.msra.mxu0 %v245
    %3359 = vmatprep.subr.mxu0 0.0
    %3360 = vmatpush1.msra.mxu0 %v246
    %3361 = vmatprep.subr.mxu0 0.0
    %3362 = vmatpush1.msra.mxu0 %v247
    %3363 = vmatprep.subr.mxu0 0.0
    %3364 = vmatpush1.msra.mxu0 %v248
    %3365 = vmatprep.subr.mxu0 0.0
    %3366 = vmatpush1.msra.mxu0 %v249
    %3367 = vmatprep.subr.mxu0 0.0
    %3368 = vmatpush1.msra.mxu0 %v250
    %3369 = vmatprep.subr.mxu0 0.0
    %3370 = vmatpush1.msra.mxu0 %v251
    %3371 = vmatprep.subr.mxu0 0.0
    %3372 = vmatpush1.msra.mxu0 %v252
    %3373 = vmatprep.subr.mxu0 0.0
    %3374 = vmatpush1.msra.mxu0 %v253
    %3375 = vmatprep.subr.mxu0 0.0
    %3376 = vmatpush1.msra.mxu0 %v254
    %3377 = vmatprep.subr.mxu0 0.0
    %3378 = vmatpush1.msra.mxu0 %v255
    %3379 = vmatprep.subr.mxu0 0.0
    %3380 = vmatpush1.msra.mxu0 %v256
    %3381 = vmatprep.subr.mxu0 0.0
    %3382 = vmatpush1.msra.mxu0 %v257
    %3383 = vmatprep.subr.mxu0 0.0
    %3384 = vmatpush1.msra.mxu0 %v258
    %3385 = vmatprep.subr.mxu0 0.0
    %3386 = vmatpush1.msra.mxu0 0.0
    %3387 = vmatprep.subr.mxu0 0.0
    %3388 = vmatpush1.msra.mxu0 0.0
    %3389 = vmatprep.subr.mxu0 0.0
    %3390 = vmatpush1.msra.mxu0 0.0
    %3391 = vmatprep.subr.mxu0 0.0
    %3392 = vmatpush1.msra.mxu0 0.0
    %3393 = vmatprep.subr.mxu0 0.0
    %3394 = vmatpush1.msra.mxu0 0.0
    %3395 = vmatprep.subr.mxu0 0.0
    %3396 = vmatpush1.msra.mxu0 0.0
    %3397 = vmatprep.subr.mxu0 0.0
    %3398 = vmatpush1.msra.mxu0 0.0
    %3399 = vmatprep.subr.mxu0 0.0
    %3400 = vmatpush1.msra.mxu0 0.0
    %3401 = vmatprep.subr.mxu0 0.0
    %3402 = vmatpush1.msra.mxu0 0.0
    %3403 = vmatprep.subr.mxu0 0.0
    %3404 = vmatpush1.msra.mxu0 0.0
    %3405 = vmatprep.subr.mxu0 0.0
    %3406 = vmatpush1.msra.mxu0 0.0
    %3407 = vmatprep.subr.mxu0 0.0
    %3408 = vmatpush1.msra.mxu0 0.0
    %3409 = vmatprep.subr.mxu0 0.0
    %3410 = vmatpush1.msra.mxu0 0.0
    %3411 = vmatprep.subr.mxu0 0.0
    %3412 = vmatpush1.msra.mxu0 0.0
    %3413 = vmatprep.subr.mxu0 0.0
    %3414 = vmatpush1.msra.mxu0 0.0
    %3415 = vmatprep.subr.mxu0 0.0
    %3416 = vmatpush1.msra.mxu0 0.0
    %3417 = vmatprep.mubr.f32.mxu0 0.0
    %3418 = vmatmul.mubr.f32.gmra.mrb[0].mxu0 %v3352
    %v3419 = vpop.f32.mrb[0].mxu0
    %v3420 = vadd.f32 %v382, %v3419
    %v3421 = vpop.f32.mrb[0].mxu0
    %3422 = vdwg.mxu0
    %3423 = vadd.xlane.f32.xlu0 %v3420
    %v3424 = vpop.xlane.xlu0 %3423
    %v3425 = vmul.f32 %v3424, %v644
    %v3426 = vsub.f32 %v3420, %v3425
    %v3427 = vmul.f32 %v3426, %v3426
    %3428 = vadd.xlane.f32.xlu0 %v3427
    %v3429 = vpop.xlane.xlu0 %3428
    %v3430 = vmul.f32 %v3429, %v644
    %v3431 = vadd.f32 %v3430, 1e-05
    %v3432 = vrsqrt.pop %v3431
    %v3433 = vmul.f32 %v3426, %v3432
    %v3434 = vmul.f32 %v3433, %v657
    %v3435 = vadd.f32 %v3434, %v662
    %v3436 = vtanh.pop %v3435
    %v3438 = vlaneseq
    %v3439 = vshrl.u32 %v3438, 7
    %v3440 = vsub.s32 0, %v3439
    %v3441 = vrot.slane %v310, %v3440
    %v3442 = vlaneseq
    %v3443 = vshrl.u32 %v3442, 7
    %v3444 = vsub.s32 1, %v3443
    %v3445 = vrot.slane %v310, %v3444
    %3448 = vmatprep.subr.mxu0 %v279
    %3449 = vmatpush1.msra.mxu0 %v278
    %3450 = vmatprep.subr.mxu0 %v281
    %3451 = vmatpush1.msra.mxu0 %v280
    %3452 = vmatprep.subr.mxu0 %v283
    %3453 = vmatpush1.msra.mxu0 %v282
    %3454 = vmatprep.subr.mxu0 %v285
    %3455 = vmatpush1.msra.mxu0 %v284
    %3456 = vmatprep.subr.mxu0 %v287
    %3457 = vmatpush1.msra.mxu0 %v286
    %3458 = vmatprep.subr.mxu0 %v289
    %3459 = vmatpush1.msra.mxu0 %v288
    %3460 = vmatprep.subr.mxu0 %v291
    %3461 = vmatpush1.msra.mxu0 %v290
    %3462 = vmatprep.subr.mxu0 %v293
    %3463 = vmatpush1.msra.mxu0 %v292
    %3464 = vmatprep.subr.mxu0 %v295
    %3465 = vmatpush1.msra.mxu0 %v294
    %3466 = vmatprep.subr.mxu0 %v297
    %3467 = vmatpush1.msra.mxu0 %v296
    %3468 = vmatprep.subr.mxu0 %v299
    %3469 = vmatpush1.msra.mxu0 %v298
    %3470 = vmatprep.subr.mxu0 %v301
    %3471 = vmatpush1.msra.mxu0 %v300
    %3472 = vmatprep.subr.mxu0 %v303
    %3473 = vmatpush1.msra.mxu0 %v302
    %3474 = vmatprep.subr.mxu0 %v305
    %3475 = vmatpush1.msra.mxu0 %v304
    %3476 = vmatprep.subr.mxu0 %v307
    %3477 = vmatpush1.msra.mxu0 %v306
    %3478 = vmatprep.subr.mxu0 %v309
    %3479 = vmatpush1.msra.mxu0 %v308
    %3480 = vmatprep.subr.mxu0 0.0
    %3481 = vmatpush1.msra.mxu0 0.0
    %3482 = vmatprep.subr.mxu0 0.0
    %3483 = vmatpush1.msra.mxu0 0.0
    %3484 = vmatprep.subr.mxu0 0.0
    %3485 = vmatpush1.msra.mxu0 0.0
    %3486 = vmatprep.subr.mxu0 0.0
    %3487 = vmatpush1.msra.mxu0 0.0
    %3488 = vmatprep.subr.mxu0 0.0
    %3489 = vmatpush1.msra.mxu0 0.0
    %3490 = vmatprep.subr.mxu0 0.0
    %3491 = vmatpush1.msra.mxu0 0.0
    %3492 = vmatprep.subr.mxu0 0.0
    %3493 = vmatpush1.msra.mxu0 0.0
    %3494 = vmatprep.subr.mxu0 0.0
    %3495 = vmatpush1.msra.mxu0 0.0
    %3496 = vmatprep.subr.mxu0 0.0
    %3497 = vmatpush1.msra.mxu0 0.0
    %3498 = vmatprep.subr.mxu0 0.0
    %3499 = vmatpush1.msra.mxu0 0.0
    %3500 = vmatprep.subr.mxu0 0.0
    %3501 = vmatpush1.msra.mxu0 0.0
    %3502 = vmatprep.subr.mxu0 0.0
    %3503 = vmatpush1.msra.mxu0 0.0
    %3504 = vmatprep.subr.mxu0 0.0
    %3505 = vmatpush1.msra.mxu0 0.0
    %3506 = vmatprep.subr.mxu0 0.0
    %3507 = vmatpush1.msra.mxu0 0.0
    %3508 = vmatprep.subr.mxu0 0.0
    %3509 = vmatpush1.msra.mxu0 0.0
    %3510 = vmatprep.subr.mxu0 0.0
    %3511 = vmatpush1.msra.mxu0 0.0
    %3512 = vmatprep.mubr.f32.mxu0 0.0
    %3513 = vmatmul.mubr.f32.gmra.mrb[0].mxu0 %v664
    %v3514 = vpop.f32.mrb[0].mxu0
    %v3515 = vadd.f32 %v3441, %v3514
    %v3516 = vpop.f32.mrb[0].mxu0
    %v3517 = vadd.f32 %v3445, %v3516
    %3518 = vmatprep.mubr.f32.mxu0 0.0
    %3519 = vmatmul.mubr.f32.gmra.mrb[0].mxu0 %v1060
    %v3520 = vpop.f32.mrb[0].mxu0
    %v3521 = vadd.f32 %v3441, %v3520
    %v3522 = vpop.f32.mrb[0].mxu0
    %v3523 = vadd.f32 %v3445, %v3522
    %3524 = vmatprep.mubr.f32.mxu0 0.0
    %3525 = vmatmul.mubr.f32.gmra.mrb[0].mxu0 %v1456
    %v3526 = vpop.f32.mrb[0].mxu0
    %v3527 = vadd.f32 %v3441, %v3526
    %v3528 = vpop.f32.mrb[0].mxu0
    %v3529 = vadd.f32 %v3445, %v3528
    %3530 = vmatprep.mubr.f32.mxu0 0.0
    %3531 = vmatmul.mubr.f32.gmra.mrb[0].mxu0 %v1852
    %v3532 = vpop.f32.mrb[0].mxu0
    %v3533 = vadd.f32 %v3441, %v3532
    %v3534 = vpop.f32.mrb[0].mxu0
    %v3535 = vadd.f32 %v3445, %v3534
    %3536 = vmatprep.mubr.f32.mxu0 0.0
    %3537 = vmatmul.mubr.f32.gmra.mrb[0].mxu0 %v2248
    %v3538 = vpop.f32.mrb[0].mxu0
    %v3539 = vadd.f32 %v3441, %v3538
    %v3540 = vpop.f32.mrb[0].mxu0
    %v3541 = vadd.f32 %v3445, %v3540
    %3542 = vmatprep.mubr.f32.mxu0 0.0
    %3543 = vmatmul.mubr.f32.gmra.mrb[0].mxu0 %v2644
    %v3544 = vpop.f32.mrb[0].mxu0
    %v3545 = vadd.f32 %v3441, %v3544
    %v3546 = vpop.f32.mrb[0].mxu0
    %v3547 = vadd.f32 %v3445, %v3546
    %3548 = vmatprep.mubr.f32.mxu0 0.0
    %3549 = vmatmul.mubr.f32.gmra.mrb[0].mxu0 %v3040
    %v3550 = vpop.f32.mrb[0].mxu0
    %v3551 = vadd.f32 %v3441, %v3550
    %v3552 = vpop.f32.mrb[0].mxu0
    %v3553 = vadd.f32 %v3445, %v3552
    %3554 = vmatprep.mubr.f32.mxu0 0.0
    %3555 = vmatmul.mubr.f32.gmra.mrb[0].mxu0 %v3436
    %v3556 = vpop.f32.mrb[0].mxu0
    %v3557 = vadd.f32 %v3441, %v3556
    %v3558 = vpop.f32.mrb[0].mxu0
    %v3559 = vadd.f32 %v3445, %v3558
    %3560 = vdwg.mxu0
    %3561 = vst [vmem:[#allocation13] sm:$0xff] %v3515
    %3562 = vst [vmem:[#allocation13 + $0x8] sm:$0xff] %v3517
    %3563 = vst [vmem:[#allocation13 + $0x10] sm:$0xff] %v3521
    %3564 = vst [vmem:[#allocation13 + $0x18] sm:$0xff] %v3523
    %3565 = vst [vmem:[#allocation13 + $0x20] sm:$0xff] %v3527
    %3566 = vst [vmem:[#allocation13 + $0x28] sm:$0xff] %v3529
    %3567 = vst [vmem:[#allocation13 + $0x30] sm:$0xff] %v3533
    %3568 = vst [vmem:[#allocation13 + $0x38] sm:$0xff] %v3535
    %3569 = vst [vmem:[#allocation13 + $0x40] sm:$0xff] %v3539
    %3570 = vst [vmem:[#allocation13 + $0x48] sm:$0xff] %v3541
    %3571 = vst [vmem:[#allocation13 + $0x50] sm:$0xff] %v3545
    %3572 = vst [vmem:[#allocation13 + $0x58] sm:$0xff] %v3547
    %3573 = vst [vmem:[#allocation13 + $0x60] sm:$0xff] %v3551
    %3574 = vst [vmem:[#allocation13 + $0x68] sm:$0xff] %v3553
    %3575 = vst [vmem:[#allocation13 + $0x70] sm:$0xff] %v3557
    %3576 = vst [vmem:[#allocation13 + $0x78] sm:$0xff] %v3559
    // Predicated region
    $region62: #{tpu_custom_call.1} parent=1 // pred_check
      _
    $region63: #{tpu_custom_call.1} parent=1 // pred_check_branch
      %3578 = sbr.rel (0) target = $region65
    $region64: #{tpu_custom_call.1} parent=1 // pred_region
      %s3580 = ssub.s32 2048, 2048
      %3581 = vsyncadd [#allocation4], %s3580
      %s3582 = sshll.u32 [#allocation13], 4
      %s3583 = int_to_ptr.vmem [resolvable:$true] %s3582
      %3588 = dma.vmem_to_hbm [thread:$0]  %s3583, 2048, %s9, [#allocation4], 256, 256, 16
    $region65: #{tpu_custom_call.1} parent=1 // pred_fallthru
      _
    // Predicated region
    $region66: #{tpu_custom_call.1} parent=1 // pred_check
      _
    $region67: #{tpu_custom_call.1} parent=1 // pred_check_branch
      %3590 = sbr.rel (0) target = $region69
    $region68: #{tpu_custom_call.1} parent=1 // pred_region
      %3591 = dma.done [#allocation4], 2048
    $region69: #{tpu_custom_call.1} parent=1 // pred_fallthru
      _
    %3592 = vsyncpa [#allocation3], 1
    %3593 = vsyncpa [#allocation6], 1
    %3594 = vsyncpa [#allocation9], 1
    %3595 = vsyncpa [#allocation12], 1
    %3596 = vsyncpa [#allocation4], 1

</llo_original>
